<compile_context>
chip_gen: v7x
topology: tpu7x:2x2x1
jax: 0.10.0
libtpu: 0.0.40
codegen_flags: <defaults>
</compile_context>

<pallas_src>
import functools

import jax
import jax.numpy as jnp
from jax import lax
from jax.experimental import pallas as pl
from jax.experimental.pallas import tpu as pltpu

VMEM_LIMIT = 32 * 1024 * 1024  # explicit, safe on v5e / v6e / v7x


def _round_up(x, m):
    return ((x + m - 1) // m) * m


# ---------------------------------------------------------------------------
# Kernel 1: out = relu?(x @ w + b)   (bf16 inputs, f32 accumulate + epilogue)
# ---------------------------------------------------------------------------
def _gemm_bias_act_kernel(x_ref, w_ref, b_ref, o_ref, *, apply_relu):
    acc = jnp.dot(x_ref[...], w_ref[...], preferred_element_type=jnp.float32)
    acc = acc + b_ref[...]                       # (1, N) broadcasts over rows, f32
    if apply_relu:
        acc = jnp.maximum(acc, 0.0)
    o_ref[...] = acc.astype(o_ref.dtype)


def _gemm_bias_act(x, w, b, *, apply_relu, out_dtype, tm_max=512):
    M, K = x.shape
    Kw, N = w.shape
    assert K == Kw, (K, Kw)
    M8 = _round_up(M, 8)                         # sublane-multiple M
    tm = min(tm_max, M8)
    Mp = _round_up(M8, tm)
    if Mp != M:
        x = jnp.pad(x, ((0, Mp - M), (0, 0)))
    grid = (Mp // tm,)

    flops = 2 * Mp * K * N
    bytes_accessed = (Mp * K * x.dtype.itemsize + K * N * w.dtype.itemsize
                      + N * 4 + Mp * N * jnp.dtype(out_dtype).itemsize)

    out = pl.pallas_call(
        functools.partial(_gemm_bias_act_kernel, apply_relu=apply_relu),
        out_shape=jax.ShapeDtypeStruct((Mp, N), out_dtype),
        grid_spec=pltpu.PrefetchScalarGridSpec(
            num_scalar_prefetch=0,
            grid=grid,
            in_specs=[
                pl.BlockSpec((tm, K), lambda i: (i, 0)),
                pl.BlockSpec((K, N), lambda i: (0, 0)),   # weight resident
                pl.BlockSpec((1, N), lambda i: (0, 0)),
            ],
            out_specs=pl.BlockSpec((tm, N), lambda i: (i, 0)),
        ),
        compiler_params=pltpu.CompilerParams(
            dimension_semantics=("parallel",),
            vmem_limit_bytes=VMEM_LIMIT),
        cost_estimate=pl.CostEstimate(flops=flops, transcendentals=0,
                                      bytes_accessed=bytes_accessed),
    )(x, w, b)
    return out[:M]


# ---------------------------------------------------------------------------
# Kernel 2: fused conv2-GEMM + ReLU + FFN, accumulated over spatial positions.
#   patches2: (S=25, Bp, 2048) bf16   (S ordered h*5+w, K ordered (kh, kw, cin))
#   w2:       (2048, 128) bf16        (resident across the whole grid)
#   wf:       (25, 128, 512) bf16     (streamed in chunks of s_per_step)
#   out:      (Bp, 512) f32           (resident accumulator per batch tile)
# ---------------------------------------------------------------------------
def _conv2_ffn_kernel(p2_ref, w2_ref, b2_ref, wf_ref, bf_ref, o_ref, *, s_per_step):
    t = pl.program_id(1)

    @pl.when(t == 0)
    def _init():
        o_ref[...] = jnp.broadcast_to(bf_ref[...], o_ref.shape)

    contrib = None
    for i in range(s_per_step):                      # static unroll
        p = p2_ref[i]                                # (bt, 2048) bf16
        y2 = jnp.dot(p, w2_ref[...], preferred_element_type=jnp.float32)
        y2 = jnp.maximum(y2 + b2_ref[...], 0.0)      # f32 epilogue
        d = jnp.dot(y2.astype(jnp.bfloat16), wf_ref[i],
                    preferred_element_type=jnp.float32)   # (bt, 512)
        contrib = d if contrib is None else contrib + d
    o_ref[...] += contrib


def _conv2_ffn(pat2, w2, b2, wf, bf, *, s_per=5, bt_max=256):
    S, B, K2 = pat2.shape
    assert S % s_per == 0
    N1 = w2.shape[1]         # 128
    N2 = wf.shape[2]         # 512

    Bp = _round_up(B, 8)
    bt = min(bt_max, Bp)
    Bp = _round_up(Bp, bt)
    if Bp != B:
        pat2 = jnp.pad(pat2, ((0, 0), (0, Bp - B), (0, 0)))
    grid = (Bp // bt, S // s_per)                    # (parallel batch, reduction)

    flops = 2 * S * Bp * (K2 * N1 + N1 * N2)
    bytes_accessed = (S * Bp * K2 * pat2.dtype.itemsize
                      + K2 * N1 * 2
                      + (Bp // bt) * S * N1 * N2 * 2
                      + Bp * N2 * 4)

    out = pl.pallas_call(
        functools.partial(_conv2_ffn_kernel, s_per_step=s_per),
        out_shape=jax.ShapeDtypeStruct((Bp, N2), jnp.float32),
        grid_spec=pltpu.PrefetchScalarGridSpec(
            num_scalar_prefetch=0,
            grid=grid,
            in_specs=[
                pl.BlockSpec((s_per, bt, K2), lambda b, t: (t, b, 0)),
                pl.BlockSpec((K2, N1), lambda b, t: (0, 0)),       # conv2 W resident
                pl.BlockSpec((1, N1), lambda b, t: (0, 0)),
                pl.BlockSpec((s_per, N1, N2), lambda b, t: (t, 0, 0)),  # FFN W streamed
                pl.BlockSpec((1, N2), lambda b, t: (0, 0)),
            ],
            out_specs=pl.BlockSpec((bt, N2), lambda b, t: (b, 0)),
        ),
        compiler_params=pltpu.CompilerParams(
            dimension_semantics=("parallel", "arbitrary"),
            vmem_limit_bytes=VMEM_LIMIT),
        cost_estimate=pl.CostEstimate(flops=flops, transcendentals=0,
                                      bytes_accessed=bytes_accessed),
    )(pat2, w2, b2, wf, bf)
    return out


# ---------------------------------------------------------------------------
# im2col (XLA glue inside jit): patches ordered (kh, kw, c) to match packed W.
# ---------------------------------------------------------------------------
def _im2col(x_nhwc, k, s):
    B, H, W, C = x_nhwc.shape
    Ho = (H - k) // s + 1
    Wo = (W - k) // s + 1
    rows = []
    for i in range(k):
        cols = []
        for j in range(k):
            cols.append(x_nhwc[:, i:i + s * Ho:s, j:j + s * Wo:s, :])  # (B,Ho,Wo,C)
        rows.append(jnp.stack(cols, axis=3))                            # (B,Ho,Wo,kj,C)
    pat = jnp.stack(rows, axis=3)                                       # (B,Ho,Wo,ki,kj,C)
    return pat, Ho, Wo


# ---------------------------------------------------------------------------
# MapEncoder forward (jitted end-to-end)
# ---------------------------------------------------------------------------
@jax.jit
def map_encoder_forward(x, p):
    B = x.shape[0]
    x_nhwc = jnp.transpose(x, (0, 2, 3, 1))                      # NCHW -> NHWC

    # conv1 (8x8, stride 2) as GEMM, output channels lane-padded to 128
    pat1, Ho1, Wo1 = _im2col(x_nhwc, 8, 2)                       # (B,12,12,8,8,10)
    pat1 = pat1.reshape(B * Ho1 * Wo1, 8 * 8 * 10).astype(jnp.bfloat16)
    y1 = _gemm_bias_act(pat1, p["w1"], p["b1"],
                        apply_relu=True, out_dtype=jnp.bfloat16)  # (B*144, 128)
    y1 = y1.reshape(B, Ho1, Wo1, 128)

    # conv2 (4x4, stride 2) + FFN fused in one kernel.
    pat2, Ho2, Wo2 = _im2col(y1, 4, 2)                           # (B,5,5,4,4,128)
    S = Ho2 * Wo2                                                # 25
    pat2 = pat2.reshape(B, S, 4 * 4 * 128)
    pat2 = jnp.transpose(pat2, (1, 0, 2))                        # (25, B, 2048)
    out = _conv2_ffn(pat2, p["w2"], p["b2"], p["wf"], p["bf"])   # (Bp, 512) f32
    return out[:B]


# ---------------------------------------------------------------------------
# Parameter init (PyTorch-default-style, "torch layout") + one-time packing
# ---------------------------------------------------------------------------
def init_params(key):
    ks = jax.random.split(key, 6)

    def u(k, shape, fan_in):
        bound = 1.0 / float(fan_in) ** 0.5
        return jax.random.uniform(k, shape, jnp.float32, -bound, bound)

    return {
        "conv1_w": u(ks[0], (64, 10, 8, 8), 10 * 8 * 8),
        "conv1_b": u(ks[1], (64,), 10 * 8 * 8),
        "conv2_w": u(ks[2], (128, 64, 4, 4), 64 * 4 * 4),
        "conv2_b": u(ks[3], (128,), 64 * 4 * 4),
        "ffn_w":   u(ks[4], (512, 3200), 3200),
        "ffn_b":   u(ks[5], (512,), 3200),
    }


def pack_params(raw):
    # conv1 OIHW (64,10,8,8) -> rows (kh,kw,cin) -> (640, 64), pad out-ch to 128
    w1 = jnp.transpose(raw["conv1_w"], (2, 3, 1, 0)).reshape(8 * 8 * 10, 64)
    w1 = jnp.pad(w1, ((0, 0), (0, 64)))                                # (640, 128)
    b1 = jnp.pad(raw["conv1_b"], (0, 64)).reshape(1, 128)              # padded ch bias=0

    # conv2 OIHW (128,64,4,4) -> (kh,kw,cin,o); pad cin 64->128 (zero rows) -> (2048,128)
    w2 = jnp.transpose(raw["conv2_w"], (2, 3, 1, 0))                   # (4,4,64,128)
    w2 = jnp.pad(w2, ((0, 0), (0, 0), (0, 64), (0, 0))).reshape(4 * 4 * 128, 128)
    b2 = raw["conv2_b"].reshape(1, 128)

    # ffn (512, 3200): torch flatten index = c*25 + (h*5+w)  ->  Wf2[s, c, n]
    wf = jnp.transpose(raw["ffn_w"].reshape(512, 128, 25), (2, 1, 0))  # (25,128,512)
    bf = raw["ffn_b"].reshape(1, 512)

    return {
        "w1": w1.astype(jnp.bfloat16), "b1": b1.astype(jnp.float32),
        "w2": w2.astype(jnp.bfloat16), "b2": b2.astype(jnp.float32),
        "wf": wf.astype(jnp.bfloat16), "bf": bf.astype(jnp.float32),
    }


# ---------------------------------------------------------------------------
# Pure-JAX f32 reference (lax conv, NCHW) for correctness check
# ---------------------------------------------------------------------------
def reference_forward(x, params):
    dn = ("NCHW", "OIHW", "NCHW")
    y = lax.conv_general_dilated(x, params["conv1_w"], (2, 2), "VALID",
                                 dimension_numbers=dn)
    y = jax.nn.relu(y + params["conv1_b"][None, :, None, None])
    y = lax.conv_general_dilated(y, params["conv2_w"], (2, 2), "VALID",
                                 dimension_numbers=dn)
    y = jax.nn.relu(y + params["conv2_b"][None, :, None, None])
    flat = y.reshape(y.shape[0], 3200)
    return flat @ params["ffn_w"].T + params["ffn_b"]


if __name__ == "__main__":
    key = jax.random.PRNGKey(0)
    pkey, xkey = jax.random.split(key)
    raw = init_params(pkey)
    packed = pack_params(raw)

    # Input spatial size 30x30 is dictated by the module's flatten to 3200.
    x = jax.random.normal(xkey, (2, 10, 30, 30), jnp.float32)

    out = map_encoder_forward(x, packed)
    out = jax.block_until_ready(out)
    assert out.shape == (2, 512), out.shape

    ref = reference_forward(x, raw)
    err = float(jnp.max(jnp.abs(out - ref)))
    assert jnp.allclose(out, ref, rtol=2e-2, atol=2e-2), err

    print("KERNEL_OK")
</pallas_src>

<mosaic_0001>
module attributes {stable_mosaic.version = 11 : i64} {
  func.func @_gemm_bias_act_kernel(%arg0: i32, %arg1: memref<288x640xbf16, #tpu.memory_space<vmem>>, %arg2: memref<640x128xbf16, #tpu.memory_space<vmem>>, %arg3: memref<1x128xf32, #tpu.memory_space<vmem>>, %arg4: memref<288x128xbf16, #tpu.memory_space<vmem>>) attributes {dimension_semantics = [#tpu.dimension_semantics<parallel>], iteration_bounds = array<i64: 1>, scalar_prefetch = 0 : i64, scratch_operands = 0 : i64, tpu.core_type = #tpu.core_type<tc>, window_params = [{transform_indices = @transform_0, window_bounds = array<i64: 288, 640>}, {pipeline_mode = #tpu.pipeline_mode<synchronous>, transform_indices = @transform_1, window_bounds = array<i64: 640, 128>}, {pipeline_mode = #tpu.pipeline_mode<synchronous>, transform_indices = @transform_2, window_bounds = array<i64: 1, 128>}, {transform_indices = @transform_3, window_bounds = array<i64: 288, 128>}]} {
    %c0 = arith.constant 0 : index
    %c0_0 = arith.constant 0 : index
    %0 = vector.load %arg1[%c0, %c0_0] : memref<288x640xbf16, #tpu.memory_space<vmem>>, vector<288x640xbf16>
    %c0_1 = arith.constant 0 : index
    %c0_2 = arith.constant 0 : index
    %1 = vector.load %arg2[%c0_1, %c0_2] : memref<640x128xbf16, #tpu.memory_space<vmem>>, vector<640x128xbf16>
    %cst = arith.constant dense<0.000000e+00> : vector<288x128xf32>
    %2 = tpu.matmul %0, %1, %cst {dimension_numbers = #tpu.dot_dimension_numbers<[1], [0], [0], [1], [0, 0, 1, 1], [], []>} : vector<288x640xbf16>, vector<640x128xbf16>, vector<288x128xf32> -> vector<288x128xf32>
    %c0_3 = arith.constant 0 : index
    %c0_4 = arith.constant 0 : index
    %3 = vector.load %arg3[%c0_3, %c0_4] : memref<1x128xf32, #tpu.memory_space<vmem>>, vector<1x128xf32>
    %4 = vector.broadcast %3 : vector<1x128xf32> to vector<288x128xf32>
    %5 = arith.addf %2, %4 : vector<288x128xf32>
    %cst_5 = arith.constant 0.000000e+00 : f32
    %6 = vector.broadcast %cst_5 : f32 to vector<288x128xf32>
    %7 = arith.maximumf %5, %6 : vector<288x128xf32>
    %8 = arith.truncf %7 : vector<288x128xf32> to vector<288x128xbf16>
    %c0_6 = arith.constant 0 : index
    %c0_7 = arith.constant 0 : index
    %9 = vector.load %arg4[%c0_6, %c0_7] : memref<288x128xbf16, #tpu.memory_space<vmem>>, vector<288x128xbf16>
    tpu.vector_store %arg4[%c0_6, %c0_7], %8 {strides = array<i32>} : memref<288x128xbf16, #tpu.memory_space<vmem>>, vector<288x128xbf16>,
    return
  }
  func.func @transform_0(%arg0: i32) -> (i32, i32) {
    %c0_i32 = arith.constant 0 : i32
    %c0_i32_0 = arith.constant 0 : i32
    return %arg0, %c0_i32 : i32, i32
  }
  func.func @transform_1(%arg0: i32) -> (i32, i32) {
    %c0_i32 = arith.constant 0 : i32
    %c0_i32_0 = arith.constant 0 : i32
    %c0_i32_1 = arith.constant 0 : i32
    return %c0_i32, %c0_i32_0 : i32, i32
  }
  func.func @transform_2(%arg0: i32) -> (i32, i32) {
    %c0_i32 = arith.constant 0 : i32
    %c0_i32_0 = arith.constant 0 : i32
    %c0_i32_1 = arith.constant 0 : i32
    return %c0_i32, %c0_i32_0 : i32, i32
  }
  func.func @transform_3(%arg0: i32) -> (i32, i32) {
    %c0_i32 = arith.constant 0 : i32
    %c0_i32_0 = arith.constant 0 : i32
    return %arg0, %c0_i32 : i32, i32
  }
}

module attributes {stable_mosaic.version = 11 : i64} {
  func.func @_conv2_ffn_kernel(%arg0: i32, %arg1: i32, %arg2: memref<5x8x2048xbf16, #tpu.memory_space<vmem>>, %arg3: memref<2048x128xbf16, #tpu.memory_space<vmem>>, %arg4: memref<1x128xf32, #tpu.memory_space<vmem>>, %arg5: memref<5x128x512xbf16, #tpu.memory_space<vmem>>, %arg6: memref<1x512xf32, #tpu.memory_space<vmem>>, %arg7: memref<8x512xf32, #tpu.memory_space<vmem>>) attributes {dimension_semantics = [#tpu.dimension_semantics<parallel>, #tpu.dimension_semantics<arbitrary>], iteration_bounds = array<i64: 1, 5>, scalar_prefetch = 0 : i64, scratch_operands = 0 : i64, tpu.core_type = #tpu.core_type<tc>, window_params = [{transform_indices = @transform_0, window_bounds = array<i64: 5, 8, 2048>}, {pipeline_mode = #tpu.pipeline_mode<synchronous>, transform_indices = @transform_1, window_bounds = array<i64: 2048, 128>}, {pipeline_mode = #tpu.pipeline_mode<synchronous>, transform_indices = @transform_2, window_bounds = array<i64: 1, 128>}, {transform_indices = @transform_3, window_bounds = array<i64: 5, 128, 512>}, {pipeline_mode = #tpu.pipeline_mode<synchronous>, transform_indices = @transform_4, window_bounds = array<i64: 1, 512>}, {transform_indices = @transform_5, window_bounds = array<i64: 8, 512>}]} {
    %c0_i32 = arith.constant 0 : i32
    %0 = arith.cmpi eq, %arg1, %c0_i32 : i32
    %1 = arith.extui %0 : i1 to i32
    %c0_i32_0 = arith.constant 0 : i32
    %2 = arith.cmpi ne, %1, %c0_i32_0 : i32
    scf.if %2 {
      %c0_64 = arith.constant 0 : index
      %c0_65 = arith.constant 0 : index
      %75 = vector.load %arg6[%c0_64, %c0_65] : memref<1x512xf32, #tpu.memory_space<vmem>>, vector<1x512xf32>
      %76 = vector.shape_cast %75 : vector<1x512xf32> to vector<1x512xf32>
      %77 = vector.broadcast %76 : vector<1x512xf32> to vector<8x512xf32>
      %c0_66 = arith.constant 0 : index
      %c0_67 = arith.constant 0 : index
      %78 = vector.load %arg7[%c0_66, %c0_67] : memref<8x512xf32, #tpu.memory_space<vmem>>, vector<8x512xf32>
      tpu.vector_store %arg7[%c0_66, %c0_67], %77 {strides = array<i32>} : memref<8x512xf32, #tpu.memory_space<vmem>>, vector<8x512xf32>,
    } else {
    }
    %c0 = arith.constant 0 : index
    %c0_1 = arith.constant 0 : index
    %c0_2 = arith.constant 0 : index
    %3 = vector.load %arg2[%c0, %c0_1, %c0_2] : memref<5x8x2048xbf16, #tpu.memory_space<vmem>>, vector<1x8x2048xbf16>
    %4 = vector.shape_cast %3 : vector<1x8x2048xbf16> to vector<8x2048xbf16>
    %c0_3 = arith.constant 0 : index
    %c0_4 = arith.constant 0 : index
    %5 = vector.load %arg3[%c0_3, %c0_4] : memref<2048x128xbf16, #tpu.memory_space<vmem>>, vector<2048x128xbf16>
    %cst = arith.constant dense<0.000000e+00> : vector<8x128xf32>
    %6 = tpu.matmul %4, %5, %cst {dimension_numbers = #tpu.dot_dimension_numbers<[1], [0], [0], [1], [0, 0, 1, 1], [], []>} : vector<8x2048xbf16>, vector<2048x128xbf16>, vector<8x128xf32> -> vector<8x128xf32>
    %c0_5 = arith.constant 0 : index
    %c0_6 = arith.constant 0 : index
    %7 = vector.load %arg4[%c0_5, %c0_6] : memref<1x128xf32, #tpu.memory_space<vmem>>, vector<1x128xf32>
    %8 = vector.broadcast %7 : vector<1x128xf32> to vector<8x128xf32>
    %9 = arith.addf %6, %8 : vector<8x128xf32>
    %cst_7 = arith.constant 0.000000e+00 : f32
    %10 = vector.broadcast %cst_7 : f32 to vector<8x128xf32>
    %11 = arith.maximumf %9, %10 : vector<8x128xf32>
    %12 = arith.truncf %11 : vector<8x128xf32> to vector<8x128xbf16>
    %c0_8 = arith.constant 0 : index
    %c0_9 = arith.constant 0 : index
    %c0_10 = arith.constant 0 : index
    %13 = vector.load %arg5[%c0_8, %c0_9, %c0_10] : memref<5x128x512xbf16, #tpu.memory_space<vmem>>, vector<1x128x512xbf16>
    %14 = vector.shape_cast %13 : vector<1x128x512xbf16> to vector<128x512xbf16>
    %cst_11 = arith.constant dense<0.000000e+00> : vector<8x512xf32>
    %15 = tpu.matmul %12, %14, %cst_11 {dimension_numbers = #tpu.dot_dimension_numbers<[1], [0], [0], [1], [0, 0, 1, 1], [], []>} : vector<8x128xbf16>, vector<128x512xbf16>, vector<8x512xf32> -> vector<8x512xf32>
    %c1 = arith.constant 1 : index
    %c0_12 = arith.constant 0 : index
    %c0_13 = arith.constant 0 : index
    %16 = vector.load %arg2[%c1, %c0_12, %c0_13] : memref<5x8x2048xbf16, #tpu.memory_space<vmem>>, vector<1x8x2048xbf16>
    %17 = vector.shape_cast %16 : vector<1x8x2048xbf16> to vector<8x2048xbf16>
    %c0_14 = arith.constant 0 : index
    %c0_15 = arith.constant 0 : index
    %18 = vector.load %arg3[%c0_14, %c0_15] : memref<2048x128xbf16, #tpu.memory_space<vmem>>, vector<2048x128xbf16>
    %cst_16 = arith.constant dense<0.000000e+00> : vector<8x128xf32>
    %19 = tpu.matmul %17, %18, %cst_16 {dimension_numbers = #tpu.dot_dimension_numbers<[1], [0], [0], [1], [0, 0, 1, 1], [], []>} : vector<8x2048xbf16>, vector<2048x128xbf16>, vector<8x128xf32> -> vector<8x128xf32>
    %c0_17 = arith.constant 0 : index
    %c0_18 = arith.constant 0 : index
    %20 = vector.load %arg4[%c0_17, %c0_18] : memref<1x128xf32, #tpu.memory_space<vmem>>, vector<1x128xf32>
    %21 = vector.broadcast %20 : vector<1x128xf32> to vector<8x128xf32>
    %22 = arith.addf %19, %21 : vector<8x128xf32>
    %cst_19 = arith.constant 0.000000e+00 : f32
    %23 = vector.broadcast %cst_19 : f32 to vector<8x128xf32>
    %24 = arith.maximumf %22, %23 : vector<8x128xf32>
    %25 = arith.truncf %24 : vector<8x128xf32> to vector<8x128xbf16>
    %c1_20 = arith.constant 1 : index
    %c0_21 = arith.constant 0 : index
    %c0_22 = arith.constant 0 : index
    %26 = vector.load %arg5[%c1_20, %c0_21, %c0_22] : memref<5x128x512xbf16, #tpu.memory_space<vmem>>, vector<1x128x512xbf16>
    %27 = vector.shape_cast %26 : vector<1x128x512xbf16> to vector<128x512xbf16>
    %cst_23 = arith.constant dense<0.000000e+00> : vector<8x512xf32>
    %28 = tpu.matmul %25, %27, %cst_23 {dimension_numbers = #tpu.dot_dimension_numbers<[1], [0], [0], [1], [0, 0, 1, 1], [], []>} : vector<8x128xbf16>, vector<128x512xbf16>, vector<8x512xf32> -> vector<8x512xf32>
    %29 = arith.addf %15, %28 : vector<8x512xf32>
    %c2 = arith.constant 2 : index
    %c0_24 = arith.constant 0 : index
    %c0_25 = arith.constant 0 : index
    %30 = vector.load %arg2[%c2, %c0_24, %c0_25] : memref<5x8x2048xbf16, #tpu.memory_space<vmem>>, vector<1x8x2048xbf16>
    %31 = vector.shape_cast %30 : vector<1x8x2048xbf16> to vector<8x2048xbf16>
    %c0_26 = arith.constant 0 : index
    %c0_27 = arith.constant 0 : index
    %32 = vector.load %arg3[%c0_26, %c0_27] : memref<2048x128xbf16, #tpu.memory_space<vmem>>, vector<2048x128xbf16>
    %cst_28 = arith.constant dense<0.000000e+00> : vector<8x128xf32>
    %33 = tpu.matmul %31, %32, %cst_28 {dimension_numbers = #tpu.dot_dimension_numbers<[1], [0], [0], [1], [0, 0, 1, 1], [], []>} : vector<8x2048xbf16>, vector<2048x128xbf16>, vector<8x128xf32> -> vector<8x128xf32>
    %c0_29 = arith.constant 0 : index
    %c0_30 = arith.constant 0 : index
    %34 = vector.load %arg4[%c0_29, %c0_30] : memref<1x128xf32, #tpu.memory_space<vmem>>, vector<1x128xf32>
    %35 = vector.broadcast %34 : vector<1x128xf32> to vector<8x128xf32>
    %36 = arith.addf %33, %35 : vector<8x128xf32>
    %cst_31 = arith.constant 0.000000e+00 : f32
    %37 = vector.broadcast %cst_31 : f32 to vector<8x128xf32>
    %38 = arith.maximumf %36, %37 : vector<8x128xf32>
    %39 = arith.truncf %38 : vector<8x128xf32> to vector<8x128xbf16>
    %c2_32 = arith.constant 2 : index
    %c0_33 = arith.constant 0 : index
    %c0_34 = arith.constant 0 : index
    %40 = vector.load %arg5[%c2_32, %c0_33, %c0_34] : memref<5x128x512xbf16, #tpu.memory_space<vmem>>, vector<1x128x512xbf16>
    %41 = vector.shape_cast %40 : vector<1x128x512xbf16> to vector<128x512xbf16>
    %cst_35 = arith.constant dense<0.000000e+00> : vector<8x512xf32>
    %42 = tpu.matmul %39, %41, %cst_35 {dimension_numbers = #tpu.dot_dimension_numbers<[1], [0], [0], [1], [0, 0, 1, 1], [], []>} : vector<8x128xbf16>, vector<128x512xbf16>, vector<8x512xf32> -> vector<8x512xf32>
    %43 = arith.addf %29, %42 : vector<8x512xf32>
    %c3 = arith.constant 3 : index
    %c0_36 = arith.constant 0 : index
    %c0_37 = arith.constant 0 : index
    %44 = vector.load %arg2[%c3, %c0_36, %c0_37] : memref<5x8x2048xbf16, #tpu.memory_space<vmem>>, vector<1x8x2048xbf16>
    %45 = vector.shape_cast %44 : vector<1x8x2048xbf16> to vector<8x2048xbf16>
    %c0_38 = arith.constant 0 : index
    %c0_39 = arith.constant 0 : index
    %46 = vector.load %arg3[%c0_38, %c0_39] : memref<2048x128xbf16, #tpu.memory_space<vmem>>, vector<2048x128xbf16>
    %cst_40 = arith.constant dense<0.000000e+00> : vector<8x128xf32>
    %47 = tpu.matmul %45, %46, %cst_40 {dimension_numbers = #tpu.dot_dimension_numbers<[1], [0], [0], [1], [0, 0, 1, 1], [], []>} : vector<8x2048xbf16>, vector<2048x128xbf16>, vector<8x128xf32> -> vector<8x128xf32>
    %c0_41 = arith.constant 0 : index
    %c0_42 = arith.constant 0 : index
    %48 = vector.load %arg4[%c0_41, %c0_42] : memref<1x128xf32, #tpu.memory_space<vmem>>, vector<1x128xf32>
    %49 = vector.broadcast %48 : vector<1x128xf32> to vector<8x128xf32>
    %50 = arith.addf %47, %49 : vector<8x128xf32>
    %cst_43 = arith.constant 0.000000e+00 : f32
    %51 = vector.broadcast %cst_43 : f32 to vector<8x128xf32>
    %52 = arith.maximumf %50, %51 : vector<8x128xf32>
    %53 = arith.truncf %52 : vector<8x128xf32> to vector<8x128xbf16>
    %c3_44 = arith.constant 3 : index
    %c0_45 = arith.constant 0 : index
    %c0_46 = arith.constant 0 : index
    %54 = vector.load %arg5[%c3_44, %c0_45, %c0_46] : memref<5x128x512xbf16, #tpu.memory_space<vmem>>, vector<1x128x512xbf16>
    %55 = vector.shape_cast %54 : vector<1x128x512xbf16> to vector<128x512xbf16>
    %cst_47 = arith.constant dense<0.000000e+00> : vector<8x512xf32>
    %56 = tpu.matmul %53, %55, %cst_47 {dimension_numbers = #tpu.dot_dimension_numbers<[1], [0], [0], [1], [0, 0, 1, 1], [], []>} : vector<8x128xbf16>, vector<128x512xbf16>, vector<8x512xf32> -> vector<8x512xf32>
    %57 = arith.addf %43, %56 : vector<8x512xf32>
    %c4 = arith.constant 4 : index
    %c0_48 = arith.constant 0 : index
    %c0_49 = arith.constant 0 : index
    %58 = vector.load %arg2[%c4, %c0_48, %c0_49] : memref<5x8x2048xbf16, #tpu.memory_space<vmem>>, vector<1x8x2048xbf16>
    %59 = vector.shape_cast %58 : vector<1x8x2048xbf16> to vector<8x2048xbf16>
    %c0_50 = arith.constant 0 : index
    %c0_51 = arith.constant 0 : index
    %60 = vector.load %arg3[%c0_50, %c0_51] : memref<2048x128xbf16, #tpu.memory_space<vmem>>, vector<2048x128xbf16>
    %cst_52 = arith.constant dense<0.000000e+00> : vector<8x128xf32>
    %61 = tpu.matmul %59, %60, %cst_52 {dimension_numbers = #tpu.dot_dimension_numbers<[1], [0], [0], [1], [0, 0, 1, 1], [], []>} : vector<8x2048xbf16>, vector<2048x128xbf16>, vector<8x128xf32> -> vector<8x128xf32>
    %c0_53 = arith.constant 0 : index
    %c0_54 = arith.constant 0 : index
    %62 = vector.load %arg4[%c0_53, %c0_54] : memref<1x128xf32, #tpu.memory_space<vmem>>, vector<1x128xf32>
    %63 = vector.broadcast %62 : vector<1x128xf32> to vector<8x128xf32>
    %64 = arith.addf %61, %63 : vector<8x128xf32>
    %cst_55 = arith.constant 0.000000e+00 : f32
    %65 = vector.broadcast %cst_55 : f32 to vector<8x128xf32>
    %66 = arith.maximumf %64, %65 : vector<8x128xf32>
    %67 = arith.truncf %66 : vector<8x128xf32> to vector<8x128xbf16>
    %c4_56 = arith.constant 4 : index
    %c0_57 = arith.constant 0 : index
    %c0_58 = arith.constant 0 : index
    %68 = vector.load %arg5[%c4_56, %c0_57, %c0_58] : memref<5x128x512xbf16, #tpu.memory_space<vmem>>, vector<1x128x512xbf16>
    %69 = vector.shape_cast %68 : vector<1x128x512xbf16> to vector<128x512xbf16>
    %cst_59 = arith.constant dense<0.000000e+00> : vector<8x512xf32>
    %70 = tpu.matmul %67, %69, %cst_59 {dimension_numbers = #tpu.dot_dimension_numbers<[1], [0], [0], [1], [0, 0, 1, 1], [], []>} : vector<8x128xbf16>, vector<128x512xbf16>, vector<8x512xf32> -> vector<8x512xf32>
    %71 = arith.addf %57, %70 : vector<8x512xf32>
    %c0_60 = arith.constant 0 : index
    %c0_61 = arith.constant 0 : index
    %72 = vector.load %arg7[%c0_60, %c0_61] : memref<8x512xf32, #tpu.memory_space<vmem>>, vector<8x512xf32>
    %73 = arith.addf %72, %71 : vector<8x512xf32>
    %c0_62 = arith.constant 0 : index
    %c0_63 = arith.constant 0 : index
    %74 = vector.load %arg7[%c0_62, %c0_63] : memref<8x512xf32, #tpu.memory_space<vmem>>, vector<8x512xf32>
    tpu.vector_store %arg7[%c0_62, %c0_63], %73 {strides = array<i32>} : memref<8x512xf32, #tpu.memory_space<vmem>>, vector<8x512xf32>,
    return
  }
  func.func @transform_0(%arg0: i32, %arg1: i32) -> (i32, i32, i32) {
    %c0_i32 = arith.constant 0 : i32
    %c0_i32_0 = arith.constant 0 : i32
    return %arg1, %arg0, %c0_i32 : i32, i32, i32
  }
  func.func @transform_1(%arg0: i32, %arg1: i32) -> (i32, i32) {
    %c0_i32 = arith.constant 0 : i32
    %c0_i32_0 = arith.constant 0 : i32
    %c0_i32_1 = arith.constant 0 : i32
    return %c0_i32, %c0_i32_0 : i32, i32
  }
  func.func @transform_2(%arg0: i32, %arg1: i32) -> (i32, i32) {
    %c0_i32 = arith.constant 0 : i32
    %c0_i32_0 = arith.constant 0 : i32
    %c0_i32_1 = arith.constant 0 : i32
    return %c0_i32, %c0_i32_0 : i32, i32
  }
  func.func @transform_3(%arg0: i32, %arg1: i32) -> (i32, i32, i32) {
    %c0_i32 = arith.constant 0 : i32
    %c0_i32_0 = arith.constant 0 : i32
    %c0_i32_1 = arith.constant 0 : i32
    return %arg1, %c0_i32, %c0_i32_0 : i32, i32, i32
  }
  func.func @transform_4(%arg0: i32, %arg1: i32) -> (i32, i32) {
    %c0_i32 = arith.constant 0 : i32
    %c0_i32_0 = arith.constant 0 : i32
    %c0_i32_1 = arith.constant 0 : i32
    return %c0_i32, %c0_i32_0 : i32, i32
  }
  func.func @transform_5(%arg0: i32, %arg1: i32) -> (i32, i32) {
    %c0_i32 = arith.constant 0 : i32
    %c0_i32_0 = arith.constant 0 : i32
    return %arg0, %c0_i32 : i32, i32
  }
}

</mosaic_0001>

<llo_original>
// kernel: map_encoder_forward.2
$region0: #{map_encoder_forward.2}
  #allocation0 [shape = 'u32[]', space=smem, size = 0x4, offset = 0x4, fixed_abs, tag = 'smem constant byte address 0x4 - core index']
  #allocation1 [shape = 'u32[144,128]{1,0:T(1,128)}', space=vmem, size = 0x12000, scoped, tag = 'internal scratch']
  %s0 = inlined_call_operand.vmem [shape: bf16[288,640], index: 0, kind: input, shape index: {}]
  %s1 = inlined_call_operand.vmem [shape: bf16[640,128], index: 1, kind: input, shape index: {}]
  %s2 = inlined_call_operand.vmem [shape: f32[1,128], index: 2, kind: input, shape index: {}]
  %s3 = inlined_call_operand.vmem [shape: bf16[288,128], index: 3, kind: output, shape index: {}]
  %s4 = sld [smem:[#allocation0]]
  $region22: #{map_encoder_forward.2} parent=0
    _
  %s6 = ssub.s32 1, %s4
  %s7 = scalar_select 0, %s6, %s4
  // Predicated region
  $region2: #{map_encoder_forward.2} parent=0 // pred_check
    _
  $region3: #{map_encoder_forward.2} parent=0 // pred_check_branch
    %9 = sbr.rel (0) target = $region5
  $region4: #{map_encoder_forward.2} parent=0 // pred_region
    _
  $region5: #{map_encoder_forward.2} parent=0 // pred_fallthru
    _
  // Predicated region
  $region6: #{map_encoder_forward.2} parent=0 // pred_check
    _
  $region7: #{map_encoder_forward.2} parent=0 // pred_check_branch
    %11 = sbr.rel (0) target = $region9
  $region8: #{map_encoder_forward.2} parent=0 // pred_region
    _
  $region9: #{map_encoder_forward.2} parent=0 // pred_fallthru
    _
  // Predicated region
  $region10: #{map_encoder_forward.2} parent=0 // pred_check
    _
  $region11: #{map_encoder_forward.2} parent=0 // pred_check_branch
    %13 = sbr.rel (0) target = $region13
  $region12: #{map_encoder_forward.2} parent=0 // pred_region
    _
  $region13: #{map_encoder_forward.2} parent=0 // pred_fallthru
    _
  %v15 = vld [vmem:[%s0] sm:$0xff]
  %v16 = vld [vmem:[%s0 + $0x8] sm:$0xff]
  %v17 = vld [vmem:[%s0 + $0x10] sm:$0xf]
  %v18 = vld [vmem:[%s0 + $0x14] sm:$0xff]
  %v19 = vld [vmem:[%s0 + $0x1c] sm:$0xff]
  %v20 = vld [vmem:[%s0 + $0x24] sm:$0xf]
  %v21 = vld [vmem:[%s0 + $0x28] sm:$0xff]
  %v22 = vld [vmem:[%s0 + $0x30] sm:$0xff]
  %v23 = vld [vmem:[%s0 + $0x38] sm:$0xf]
  %v24 = vld [vmem:[%s0 + $0x3c] sm:$0xff]
  %v25 = vld [vmem:[%s0 + $0x44] sm:$0xff]
  %v26 = vld [vmem:[%s0 + $0x4c] sm:$0xf]
  %v27 = vld [vmem:[%s0 + $0x50] sm:$0xff]
  %v28 = vld [vmem:[%s0 + $0x58] sm:$0xff]
  %v29 = vld [vmem:[%s0 + $0x60] sm:$0xf]
  %v30 = vld [vmem:[%s0 + $0x64] sm:$0xff]
  %v31 = vld [vmem:[%s0 + $0x6c] sm:$0xff]
  %v32 = vld [vmem:[%s0 + $0x74] sm:$0xf]
  %v33 = vld [vmem:[%s0 + $0x78] sm:$0xff]
  %v34 = vld [vmem:[%s0 + $0x80] sm:$0xff]
  %v35 = vld [vmem:[%s0 + $0x88] sm:$0xf]
  %v36 = vld [vmem:[%s0 + $0x8c] sm:$0xff]
  %v37 = vld [vmem:[%s0 + $0x94] sm:$0xff]
  %v38 = vld [vmem:[%s0 + $0x9c] sm:$0xf]
  %v39 = vld [vmem:[%s0 + $0xa0] sm:$0xff]
  %v40 = vld [vmem:[%s0 + $0xa8] sm:$0xff]
  %v41 = vld [vmem:[%s0 + $0xb0] sm:$0xf]
  %v42 = vld [vmem:[%s0 + $0xb4] sm:$0xff]
  %v43 = vld [vmem:[%s0 + $0xbc] sm:$0xff]
  %v44 = vld [vmem:[%s0 + $0xc4] sm:$0xf]
  %v45 = vld [vmem:[%s0 + $0xc8] sm:$0xff]
  %v46 = vld [vmem:[%s0 + $0xd0] sm:$0xff]
  %v47 = vld [vmem:[%s0 + $0xd8] sm:$0xf]
  %v48 = vld [vmem:[%s0 + $0xdc] sm:$0xff]
  %v49 = vld [vmem:[%s0 + $0xe4] sm:$0xff]
  %v50 = vld [vmem:[%s0 + $0xec] sm:$0xf]
  %v51 = vld [vmem:[%s0 + $0xf0] sm:$0xff]
  %v52 = vld [vmem:[%s0 + $0xf8] sm:$0xff]
  %v53 = vld [vmem:[%s0 + $0x100] sm:$0xf]
  %v54 = vld [vmem:[%s0 + $0x104] sm:$0xff]
  %v55 = vld [vmem:[%s0 + $0x10c] sm:$0xff]
  %v56 = vld [vmem:[%s0 + $0x114] sm:$0xf]
  %v57 = vld [vmem:[%s0 + $0x118] sm:$0xff]
  %v58 = vld [vmem:[%s0 + $0x120] sm:$0xff]
  %v59 = vld [vmem:[%s0 + $0x128] sm:$0xf]
  %v60 = vld [vmem:[%s0 + $0x12c] sm:$0xff]
  %v61 = vld [vmem:[%s0 + $0x134] sm:$0xff]
  %v62 = vld [vmem:[%s0 + $0x13c] sm:$0xf]
  %v63 = vld [vmem:[%s0 + $0x140] sm:$0xff]
  %v64 = vld [vmem:[%s0 + $0x148] sm:$0xff]
  %v65 = vld [vmem:[%s0 + $0x150] sm:$0xf]
  %v66 = vld [vmem:[%s0 + $0x154] sm:$0xff]
  %v67 = vld [vmem:[%s0 + $0x15c] sm:$0xff]
  %v68 = vld [vmem:[%s0 + $0x164] sm:$0xf]
  %v69 = vld [vmem:[%s0 + $0x168] sm:$0xff]
  %v70 = vld [vmem:[%s0 + $0x170] sm:$0xff]
  %v71 = vld [vmem:[%s0 + $0x178] sm:$0xf]
  %v72 = vld [vmem:[%s0 + $0x17c] sm:$0xff]
  %v73 = vld [vmem:[%s0 + $0x184] sm:$0xff]
  %v74 = vld [vmem:[%s0 + $0x18c] sm:$0xf]
  %v75 = vld [vmem:[%s0 + $0x190] sm:$0xff]
  %v76 = vld [vmem:[%s0 + $0x198] sm:$0xff]
  %v77 = vld [vmem:[%s0 + $0x1a0] sm:$0xf]
  %v78 = vld [vmem:[%s0 + $0x1a4] sm:$0xff]
  %v79 = vld [vmem:[%s0 + $0x1ac] sm:$0xff]
  %v80 = vld [vmem:[%s0 + $0x1b4] sm:$0xf]
  %v81 = vld [vmem:[%s0 + $0x1b8] sm:$0xff]
  %v82 = vld [vmem:[%s0 + $0x1c0] sm:$0xff]
  %v83 = vld [vmem:[%s0 + $0x1c8] sm:$0xf]
  %v84 = vld [vmem:[%s0 + $0x1cc] sm:$0xff]
  %v85 = vld [vmem:[%s0 + $0x1d4] sm:$0xff]
  %v86 = vld [vmem:[%s0 + $0x1dc] sm:$0xf]
  %v87 = vld [vmem:[%s0 + $0x1e0] sm:$0xff]
  %v88 = vld [vmem:[%s0 + $0x1e8] sm:$0xff]
  %v89 = vld [vmem:[%s0 + $0x1f0] sm:$0xf]
  %v90 = vld [vmem:[%s0 + $0x1f4] sm:$0xff]
  %v91 = vld [vmem:[%s0 + $0x1fc] sm:$0xff]
  %v92 = vld [vmem:[%s0 + $0x204] sm:$0xf]
  %v93 = vld [vmem:[%s0 + $0x208] sm:$0xff]
  %v94 = vld [vmem:[%s0 + $0x210] sm:$0xff]
  %v95 = vld [vmem:[%s0 + $0x218] sm:$0xf]
  %v96 = vld [vmem:[%s0 + $0x21c] sm:$0xff]
  %v97 = vld [vmem:[%s0 + $0x224] sm:$0xff]
  %v98 = vld [vmem:[%s0 + $0x22c] sm:$0xf]
  %v99 = vld [vmem:[%s0 + $0x230] sm:$0xff]
  %v100 = vld [vmem:[%s0 + $0x238] sm:$0xff]
  %v101 = vld [vmem:[%s0 + $0x240] sm:$0xf]
  %v102 = vld [vmem:[%s0 + $0x244] sm:$0xff]
  %v103 = vld [vmem:[%s0 + $0x24c] sm:$0xff]
  %v104 = vld [vmem:[%s0 + $0x254] sm:$0xf]
  %v105 = vld [vmem:[%s0 + $0x258] sm:$0xff]
  %v106 = vld [vmem:[%s0 + $0x260] sm:$0xff]
  %v107 = vld [vmem:[%s0 + $0x268] sm:$0xf]
  %v108 = vld [vmem:[%s0 + $0x26c] sm:$0xff]
  %v109 = vld [vmem:[%s0 + $0x274] sm:$0xff]
  %v110 = vld [vmem:[%s0 + $0x27c] sm:$0xf]
  %v111 = vld [vmem:[%s0 + $0x280] sm:$0xff]
  %v112 = vld [vmem:[%s0 + $0x288] sm:$0xff]
  %v113 = vld [vmem:[%s0 + $0x290] sm:$0xf]
  %v114 = vld [vmem:[%s0 + $0x294] sm:$0xff]
  %v115 = vld [vmem:[%s0 + $0x29c] sm:$0xff]
  %v116 = vld [vmem:[%s0 + $0x2a4] sm:$0xf]
  %v117 = vld [vmem:[%s0 + $0x2a8] sm:$0xff]
  %v118 = vld [vmem:[%s0 + $0x2b0] sm:$0xff]
  %v119 = vld [vmem:[%s0 + $0x2b8] sm:$0xf]
  %v120 = vld [vmem:[%s0 + $0x2bc] sm:$0xff]
  %v121 = vld [vmem:[%s0 + $0x2c4] sm:$0xff]
  %v122 = vld [vmem:[%s0 + $0x2cc] sm:$0xf]
  %v123 = vld [vmem:[%s1] sm:$0xf]
  %v124 = vld [vmem:[%s1 + $0x4] sm:$0xf]
  %v125 = vld [vmem:[%s1 + $0x8] sm:$0xf]
  %v126 = vld [vmem:[%s1 + $0xc] sm:$0xf]
  %v127 = vld [vmem:[%s1 + $0x10] sm:$0xf]
  %v128 = vld [vmem:[%s1 + $0x14] sm:$0xf]
  %v129 = vld [vmem:[%s1 + $0x18] sm:$0xf]
  %v130 = vld [vmem:[%s1 + $0x1c] sm:$0xf]
  %v131 = vld [vmem:[%s1 + $0x20] sm:$0xf]
  %v132 = vld [vmem:[%s1 + $0x24] sm:$0xf]
  %v133 = vld [vmem:[%s1 + $0x28] sm:$0xf]
  %v134 = vld [vmem:[%s1 + $0x2c] sm:$0xf]
  %v135 = vld [vmem:[%s1 + $0x30] sm:$0xf]
  %v136 = vld [vmem:[%s1 + $0x34] sm:$0xf]
  %v137 = vld [vmem:[%s1 + $0x38] sm:$0xf]
  %v138 = vld [vmem:[%s1 + $0x3c] sm:$0xf]
  %v139 = vld [vmem:[%s1 + $0x40] sm:$0xf]
  %v140 = vld [vmem:[%s1 + $0x44] sm:$0xf]
  %v141 = vld [vmem:[%s1 + $0x48] sm:$0xf]
  %v142 = vld [vmem:[%s1 + $0x4c] sm:$0xf]
  %v143 = vld [vmem:[%s1 + $0x50] sm:$0xf]
  %v144 = vld [vmem:[%s1 + $0x54] sm:$0xf]
  %v145 = vld [vmem:[%s1 + $0x58] sm:$0xf]
  %v146 = vld [vmem:[%s1 + $0x5c] sm:$0xf]
  %v147 = vld [vmem:[%s1 + $0x60] sm:$0xf]
  %v148 = vld [vmem:[%s1 + $0x64] sm:$0xf]
  %v149 = vld [vmem:[%s1 + $0x68] sm:$0xf]
  %v150 = vld [vmem:[%s1 + $0x6c] sm:$0xf]
  %v151 = vld [vmem:[%s1 + $0x70] sm:$0xf]
  %v152 = vld [vmem:[%s1 + $0x74] sm:$0xf]
  %v153 = vld [vmem:[%s1 + $0x78] sm:$0xf]
  %v154 = vld [vmem:[%s1 + $0x7c] sm:$0xf]
  %v155 = vld [vmem:[%s1 + $0x80] sm:$0xf]
  %v156 = vld [vmem:[%s1 + $0x84] sm:$0xf]
  %v157 = vld [vmem:[%s1 + $0x88] sm:$0xf]
  %v158 = vld [vmem:[%s1 + $0x8c] sm:$0xf]
  %v159 = vld [vmem:[%s1 + $0x90] sm:$0xf]
  %v160 = vld [vmem:[%s1 + $0x94] sm:$0xf]
  %v161 = vld [vmem:[%s1 + $0x98] sm:$0xf]
  %v162 = vld [vmem:[%s1 + $0x9c] sm:$0xf]
  %v163 = vld [vmem:[%s1 + $0xa0] sm:$0xf]
  %v164 = vld [vmem:[%s1 + $0xa4] sm:$0xf]
  %v165 = vld [vmem:[%s1 + $0xa8] sm:$0xf]
  %v166 = vld [vmem:[%s1 + $0xac] sm:$0xf]
  %v167 = vld [vmem:[%s1 + $0xb0] sm:$0xf]
  %v168 = vld [vmem:[%s1 + $0xb4] sm:$0xf]
  %v169 = vld [vmem:[%s1 + $0xb8] sm:$0xf]
  %v170 = vld [vmem:[%s1 + $0xbc] sm:$0xf]
  %v171 = vld [vmem:[%s1 + $0xc0] sm:$0xf]
  %v172 = vld [vmem:[%s1 + $0xc4] sm:$0xf]
  %v173 = vld [vmem:[%s1 + $0xc8] sm:$0xf]
  %v174 = vld [vmem:[%s1 + $0xcc] sm:$0xf]
  %v175 = vld [vmem:[%s1 + $0xd0] sm:$0xf]
  %v176 = vld [vmem:[%s1 + $0xd4] sm:$0xf]
  %v177 = vld [vmem:[%s1 + $0xd8] sm:$0xf]
  %v178 = vld [vmem:[%s1 + $0xdc] sm:$0xf]
  %v179 = vld [vmem:[%s1 + $0xe0] sm:$0xf]
  %v180 = vld [vmem:[%s1 + $0xe4] sm:$0xf]
  %v181 = vld [vmem:[%s1 + $0xe8] sm:$0xf]
  %v182 = vld [vmem:[%s1 + $0xec] sm:$0xf]
  %v183 = vld [vmem:[%s1 + $0xf0] sm:$0xf]
  %v184 = vld [vmem:[%s1 + $0xf4] sm:$0xf]
  %v185 = vld [vmem:[%s1 + $0xf8] sm:$0xf]
  %v186 = vld [vmem:[%s1 + $0xfc] sm:$0xf]
  %v187 = vld [vmem:[%s1 + $0x100] sm:$0xf]
  %v188 = vld [vmem:[%s1 + $0x104] sm:$0xf]
  %v189 = vld [vmem:[%s1 + $0x108] sm:$0xf]
  %v190 = vld [vmem:[%s1 + $0x10c] sm:$0xf]
  %v191 = vld [vmem:[%s1 + $0x110] sm:$0xf]
  %v192 = vld [vmem:[%s1 + $0x114] sm:$0xf]
  %v193 = vld [vmem:[%s1 + $0x118] sm:$0xf]
  %v194 = vld [vmem:[%s1 + $0x11c] sm:$0xf]
  %v195 = vld [vmem:[%s1 + $0x120] sm:$0xf]
  %v196 = vld [vmem:[%s1 + $0x124] sm:$0xf]
  %v197 = vld [vmem:[%s1 + $0x128] sm:$0xf]
  %v198 = vld [vmem:[%s1 + $0x12c] sm:$0xf]
  %v199 = vld [vmem:[%s1 + $0x130] sm:$0xf]
  %v200 = vld [vmem:[%s1 + $0x134] sm:$0xf]
  %v201 = vld [vmem:[%s1 + $0x138] sm:$0xf]
  %v202 = vld [vmem:[%s1 + $0x13c] sm:$0xf]
  %v203 = vld [vmem:[%s2] sm:$0x1]
  %v205 = vlaneseq
  %v206 = vshrl.u32 %v205, 7
  %v207 = vsub.s32 0, %v206
  %v208 = vrot.slane %v203, %v207
  %v318 = vunpack.c.l.b16 %v15
  %v319 = vunpack.c.h.b16 %v15
  %v320 = vunpack.c.l.b16 %v16
  %v321 = vunpack.c.h.b16 %v16
  %v322 = vunpack.c.l.b16 %v17
  %v323 = vunpack.c.l.b16 %v18
  %v324 = vunpack.c.h.b16 %v18
  %v325 = vunpack.c.l.b16 %v19
  %v326 = vunpack.c.h.b16 %v19
  %v327 = vunpack.c.l.b16 %v20
  %v328 = vunpack.c.l.b16 %v21
  %v329 = vunpack.c.h.b16 %v21
  %v330 = vunpack.c.l.b16 %v22
  %v331 = vunpack.c.h.b16 %v22
  %v332 = vunpack.c.l.b16 %v23
  %v333 = vunpack.c.l.b16 %v24
  %v334 = vunpack.c.h.b16 %v24
  %v335 = vunpack.c.l.b16 %v25
  %v336 = vunpack.c.h.b16 %v25
  %v337 = vunpack.c.l.b16 %v26
  %v338 = vunpack.c.l.b16 %v27
  %v339 = vunpack.c.h.b16 %v27
  %v340 = vunpack.c.l.b16 %v28
  %v341 = vunpack.c.h.b16 %v28
  %v342 = vunpack.c.l.b16 %v29
  %v343 = vunpack.c.l.b16 %v30
  %v344 = vunpack.c.h.b16 %v30
  %v345 = vunpack.c.l.b16 %v31
  %v346 = vunpack.c.h.b16 %v31
  %v347 = vunpack.c.l.b16 %v32
  %v348 = vunpack.c.l.b16 %v33
  %v349 = vunpack.c.h.b16 %v33
  %v350 = vunpack.c.l.b16 %v34
  %v351 = vunpack.c.h.b16 %v34
  %v352 = vunpack.c.l.b16 %v35
  %v353 = vunpack.c.l.b16 %v36
  %v354 = vunpack.c.h.b16 %v36
  %v355 = vunpack.c.l.b16 %v37
  %v356 = vunpack.c.h.b16 %v37
  %v357 = vunpack.c.l.b16 %v38
  %v358 = vunpack.c.l.b16 %v39
  %v359 = vunpack.c.h.b16 %v39
  %v360 = vunpack.c.l.b16 %v40
  %v361 = vunpack.c.h.b16 %v40
  %v362 = vunpack.c.l.b16 %v41
  %v363 = vunpack.c.l.b16 %v42
  %v364 = vunpack.c.h.b16 %v42
  %v365 = vunpack.c.l.b16 %v43
  %v366 = vunpack.c.h.b16 %v43
  %v367 = vunpack.c.l.b16 %v44
  %v368 = vunpack.c.l.b16 %v45
  %v369 = vunpack.c.h.b16 %v45
  %v370 = vunpack.c.l.b16 %v46
  %v371 = vunpack.c.h.b16 %v46
  %v372 = vunpack.c.l.b16 %v47
  %v373 = vunpack.c.l.b16 %v48
  %v374 = vunpack.c.h.b16 %v48
  %v375 = vunpack.c.l.b16 %v49
  %v376 = vunpack.c.h.b16 %v49
  %v377 = vunpack.c.l.b16 %v50
  %v378 = vunpack.c.l.b16 %v51
  %v379 = vunpack.c.h.b16 %v51
  %v380 = vunpack.c.l.b16 %v52
  %v381 = vunpack.c.h.b16 %v52
  %v382 = vunpack.c.l.b16 %v53
  %v383 = vunpack.c.l.b16 %v54
  %v384 = vunpack.c.h.b16 %v54
  %v385 = vunpack.c.l.b16 %v55
  %v386 = vunpack.c.h.b16 %v55
  %v387 = vunpack.c.l.b16 %v56
  %v388 = vunpack.c.l.b16 %v57
  %v389 = vunpack.c.h.b16 %v57
  %v390 = vunpack.c.l.b16 %v58
  %v391 = vunpack.c.h.b16 %v58
  %v392 = vunpack.c.l.b16 %v59
  %v393 = vunpack.c.l.b16 %v60
  %v394 = vunpack.c.h.b16 %v60
  %v395 = vunpack.c.l.b16 %v61
  %v396 = vunpack.c.h.b16 %v61
  %v397 = vunpack.c.l.b16 %v62
  %v398 = vunpack.c.l.b16 %v63
  %v399 = vunpack.c.h.b16 %v63
  %v400 = vunpack.c.l.b16 %v64
  %v401 = vunpack.c.h.b16 %v64
  %v402 = vunpack.c.l.b16 %v65
  %v403 = vunpack.c.l.b16 %v66
  %v404 = vunpack.c.h.b16 %v66
  %v405 = vunpack.c.l.b16 %v67
  %v406 = vunpack.c.h.b16 %v67
  %v407 = vunpack.c.l.b16 %v68
  %v408 = vunpack.c.l.b16 %v69
  %v409 = vunpack.c.h.b16 %v69
  %v410 = vunpack.c.l.b16 %v70
  %v411 = vunpack.c.h.b16 %v70
  %v412 = vunpack.c.l.b16 %v71
  %v413 = vunpack.c.l.b16 %v72
  %v414 = vunpack.c.h.b16 %v72
  %v415 = vunpack.c.l.b16 %v73
  %v416 = vunpack.c.h.b16 %v73
  %v417 = vunpack.c.l.b16 %v74
  %v418 = vunpack.c.l.b16 %v75
  %v419 = vunpack.c.h.b16 %v75
  %v420 = vunpack.c.l.b16 %v76
  %v421 = vunpack.c.h.b16 %v76
  %v422 = vunpack.c.l.b16 %v77
  %v423 = vunpack.c.l.b16 %v78
  %v424 = vunpack.c.h.b16 %v78
  %v425 = vunpack.c.l.b16 %v79
  %v426 = vunpack.c.h.b16 %v79
  %v427 = vunpack.c.l.b16 %v80
  %v428 = vunpack.c.l.b16 %v81
  %v429 = vunpack.c.h.b16 %v81
  %v430 = vunpack.c.l.b16 %v82
  %v431 = vunpack.c.h.b16 %v82
  %v432 = vunpack.c.l.b16 %v83
  %v433 = vunpack.c.l.b16 %v84
  %v434 = vunpack.c.h.b16 %v84
  %v435 = vunpack.c.l.b16 %v85
  %v436 = vunpack.c.h.b16 %v85
  %v437 = vunpack.c.l.b16 %v86
  %v438 = vunpack.c.l.b16 %v87
  %v439 = vunpack.c.h.b16 %v87
  %v440 = vunpack.c.l.b16 %v88
  %v441 = vunpack.c.h.b16 %v88
  %v442 = vunpack.c.l.b16 %v89
  %v443 = vunpack.c.l.b16 %v90
  %v444 = vunpack.c.h.b16 %v90
  %v445 = vunpack.c.l.b16 %v91
  %v446 = vunpack.c.h.b16 %v91
  %v447 = vunpack.c.l.b16 %v92
  %v448 = vunpack.c.l.b16 %v93
  %v449 = vunpack.c.h.b16 %v93
  %v450 = vunpack.c.l.b16 %v94
  %v451 = vunpack.c.h.b16 %v94
  %v452 = vunpack.c.l.b16 %v95
  %v453 = vunpack.c.l.b16 %v96
  %v454 = vunpack.c.h.b16 %v96
  %v455 = vunpack.c.l.b16 %v97
  %v456 = vunpack.c.h.b16 %v97
  %v457 = vunpack.c.l.b16 %v98
  %v458 = vunpack.c.l.b16 %v99
  %v459 = vunpack.c.h.b16 %v99
  %v460 = vunpack.c.l.b16 %v100
  %v461 = vunpack.c.h.b16 %v100
  %v462 = vunpack.c.l.b16 %v101
  %v463 = vunpack.c.l.b16 %v102
  %v464 = vunpack.c.h.b16 %v102
  %v465 = vunpack.c.l.b16 %v103
  %v466 = vunpack.c.h.b16 %v103
  %v467 = vunpack.c.l.b16 %v104
  %v468 = vunpack.c.l.b16 %v105
  %v469 = vunpack.c.h.b16 %v105
  %v470 = vunpack.c.l.b16 %v106
  %v471 = vunpack.c.h.b16 %v106
  %v472 = vunpack.c.l.b16 %v107
  %v473 = vunpack.c.l.b16 %v108
  %v474 = vunpack.c.h.b16 %v108
  %v475 = vunpack.c.l.b16 %v109
  %v476 = vunpack.c.h.b16 %v109
  %v477 = vunpack.c.l.b16 %v110
  %v478 = vunpack.c.l.b16 %v111
  %v479 = vunpack.c.h.b16 %v111
  %v480 = vunpack.c.l.b16 %v112
  %v481 = vunpack.c.h.b16 %v112
  %v482 = vunpack.c.l.b16 %v113
  %v483 = vunpack.c.l.b16 %v114
  %v484 = vunpack.c.h.b16 %v114
  %v485 = vunpack.c.l.b16 %v115
  %v486 = vunpack.c.h.b16 %v115
  %v487 = vunpack.c.l.b16 %v116
  %v488 = vunpack.c.l.b16 %v117
  %v489 = vunpack.c.h.b16 %v117
  %v490 = vunpack.c.l.b16 %v118
  %v491 = vunpack.c.h.b16 %v118
  %v492 = vunpack.c.l.b16 %v119
  %v493 = vunpack.c.l.b16 %v120
  %v494 = vunpack.c.h.b16 %v120
  %v495 = vunpack.c.l.b16 %v121
  %v496 = vunpack.c.h.b16 %v121
  %v497 = vunpack.c.l.b16 %v122
  %v498 = vpack.c.b16 %v323, %v318
  %v499 = vpack.c.b16 %v324, %v319
  %v500 = vpack.c.b16 %v325, %v320
  %v501 = vpack.c.b16 %v326, %v321
  %v502 = vpack.c.b16 %v327, %v322
  %v503 = vpack.c.b16 %v333, %v328
  %v504 = vpack.c.b16 %v334, %v329
  %v505 = vpack.c.b16 %v335, %v330
  %v506 = vpack.c.b16 %v336, %v331
  %v507 = vpack.c.b16 %v337, %v332
  %v508 = vpack.c.b16 %v343, %v338
  %v509 = vpack.c.b16 %v344, %v339
  %v510 = vpack.c.b16 %v345, %v340
  %v511 = vpack.c.b16 %v346, %v341
  %v512 = vpack.c.b16 %v347, %v342
  %v513 = vpack.c.b16 %v353, %v348
  %v514 = vpack.c.b16 %v354, %v349
  %v515 = vpack.c.b16 %v355, %v350
  %v516 = vpack.c.b16 %v356, %v351
  %v517 = vpack.c.b16 %v357, %v352
  %v518 = vpack.c.b16 %v363, %v358
  %v519 = vpack.c.b16 %v364, %v359
  %v520 = vpack.c.b16 %v365, %v360
  %v521 = vpack.c.b16 %v366, %v361
  %v522 = vpack.c.b16 %v367, %v362
  %v523 = vpack.c.b16 %v373, %v368
  %v524 = vpack.c.b16 %v374, %v369
  %v525 = vpack.c.b16 %v375, %v370
  %v526 = vpack.c.b16 %v376, %v371
  %v527 = vpack.c.b16 %v377, %v372
  %v528 = vpack.c.b16 %v383, %v378
  %v529 = vpack.c.b16 %v384, %v379
  %v530 = vpack.c.b16 %v385, %v380
  %v531 = vpack.c.b16 %v386, %v381
  %v532 = vpack.c.b16 %v387, %v382
  %v533 = vpack.c.b16 %v393, %v388
  %v534 = vpack.c.b16 %v394, %v389
  %v535 = vpack.c.b16 %v395, %v390
  %v536 = vpack.c.b16 %v396, %v391
  %v537 = vpack.c.b16 %v397, %v392
  %v538 = vpack.c.b16 %v403, %v398
  %v539 = vpack.c.b16 %v404, %v399
  %v540 = vpack.c.b16 %v405, %v400
  %v541 = vpack.c.b16 %v406, %v401
  %v542 = vpack.c.b16 %v407, %v402
  %v543 = vpack.c.b16 %v413, %v408
  %v544 = vpack.c.b16 %v414, %v409
  %v545 = vpack.c.b16 %v415, %v410
  %v546 = vpack.c.b16 %v416, %v411
  %v547 = vpack.c.b16 %v417, %v412
  %v548 = vpack.c.b16 %v423, %v418
  %v549 = vpack.c.b16 %v424, %v419
  %v550 = vpack.c.b16 %v425, %v420
  %v551 = vpack.c.b16 %v426, %v421
  %v552 = vpack.c.b16 %v427, %v422
  %v553 = vpack.c.b16 %v433, %v428
  %v554 = vpack.c.b16 %v434, %v429
  %v555 = vpack.c.b16 %v435, %v430
  %v556 = vpack.c.b16 %v436, %v431
  %v557 = vpack.c.b16 %v437, %v432
  %v558 = vpack.c.b16 %v443, %v438
  %v559 = vpack.c.b16 %v444, %v439
  %v560 = vpack.c.b16 %v445, %v440
  %v561 = vpack.c.b16 %v446, %v441
  %v562 = vpack.c.b16 %v447, %v442
  %v563 = vpack.c.b16 %v453, %v448
  %v564 = vpack.c.b16 %v454, %v449
  %v565 = vpack.c.b16 %v455, %v450
  %v566 = vpack.c.b16 %v456, %v451
  %v567 = vpack.c.b16 %v457, %v452
  %v568 = vpack.c.b16 %v463, %v458
  %v569 = vpack.c.b16 %v464, %v459
  %v570 = vpack.c.b16 %v465, %v460
  %v571 = vpack.c.b16 %v466, %v461
  %v572 = vpack.c.b16 %v467, %v462
  %v573 = vpack.c.b16 %v473, %v468
  %v574 = vpack.c.b16 %v474, %v469
  %v575 = vpack.c.b16 %v475, %v470
  %v576 = vpack.c.b16 %v476, %v471
  %v577 = vpack.c.b16 %v477, %v472
  %v578 = vpack.c.b16 %v483, %v478
  %v579 = vpack.c.b16 %v484, %v479
  %v580 = vpack.c.b16 %v485, %v480
  %v581 = vpack.c.b16 %v486, %v481
  %v582 = vpack.c.b16 %v487, %v482
  %v583 = vpack.c.b16 %v493, %v488
  %v584 = vpack.c.b16 %v494, %v489
  %v585 = vpack.c.b16 %v495, %v490
  %v586 = vpack.c.b16 %v496, %v491
  %v587 = vpack.c.b16 %v497, %v492
  %v758 = vunpack.c.l.b16 %v123
  %v759 = vunpack.c.l.b16 %v124
  %v760 = vunpack.c.l.b16 %v125
  %v761 = vunpack.c.l.b16 %v126
  %v762 = vunpack.c.l.b16 %v127
  %v763 = vunpack.c.l.b16 %v128
  %v764 = vunpack.c.l.b16 %v129
  %v765 = vunpack.c.l.b16 %v130
  %v766 = vunpack.c.l.b16 %v131
  %v767 = vunpack.c.l.b16 %v132
  %v768 = vunpack.c.l.b16 %v133
  %v769 = vunpack.c.l.b16 %v134
  %v770 = vunpack.c.l.b16 %v135
  %v771 = vunpack.c.l.b16 %v136
  %v772 = vunpack.c.l.b16 %v137
  %v773 = vunpack.c.l.b16 %v138
  %v774 = vunpack.c.l.b16 %v139
  %v775 = vunpack.c.l.b16 %v140
  %v776 = vunpack.c.l.b16 %v141
  %v777 = vunpack.c.l.b16 %v142
  %v778 = vunpack.c.l.b16 %v143
  %v779 = vunpack.c.l.b16 %v144
  %v780 = vunpack.c.l.b16 %v145
  %v781 = vunpack.c.l.b16 %v146
  %v782 = vunpack.c.l.b16 %v147
  %v783 = vunpack.c.l.b16 %v148
  %v784 = vunpack.c.l.b16 %v149
  %v785 = vunpack.c.l.b16 %v150
  %v786 = vunpack.c.l.b16 %v151
  %v787 = vunpack.c.l.b16 %v152
  %v788 = vunpack.c.l.b16 %v153
  %v789 = vunpack.c.l.b16 %v154
  %v790 = vunpack.c.l.b16 %v155
  %v791 = vunpack.c.l.b16 %v156
  %v792 = vunpack.c.l.b16 %v157
  %v793 = vunpack.c.l.b16 %v158
  %v794 = vunpack.c.l.b16 %v159
  %v795 = vunpack.c.l.b16 %v160
  %v796 = vunpack.c.l.b16 %v161
  %v797 = vunpack.c.l.b16 %v162
  %v798 = vunpack.c.l.b16 %v163
  %v799 = vunpack.c.l.b16 %v164
  %v800 = vunpack.c.l.b16 %v165
  %v801 = vunpack.c.l.b16 %v166
  %v802 = vunpack.c.l.b16 %v167
  %v803 = vunpack.c.l.b16 %v168
  %v804 = vunpack.c.l.b16 %v169
  %v805 = vunpack.c.l.b16 %v170
  %v806 = vunpack.c.l.b16 %v171
  %v807 = vunpack.c.l.b16 %v172
  %v808 = vunpack.c.l.b16 %v173
  %v809 = vunpack.c.l.b16 %v174
  %v810 = vunpack.c.l.b16 %v175
  %v811 = vunpack.c.l.b16 %v176
  %v812 = vunpack.c.l.b16 %v177
  %v813 = vunpack.c.l.b16 %v178
  %v814 = vunpack.c.l.b16 %v179
  %v815 = vunpack.c.l.b16 %v180
  %v816 = vunpack.c.l.b16 %v181
  %v817 = vunpack.c.l.b16 %v182
  %v818 = vunpack.c.l.b16 %v183
  %v819 = vunpack.c.l.b16 %v184
  %v820 = vunpack.c.l.b16 %v185
  %v821 = vunpack.c.l.b16 %v186
  %v822 = vunpack.c.l.b16 %v187
  %v823 = vunpack.c.l.b16 %v188
  %v824 = vunpack.c.l.b16 %v189
  %v825 = vunpack.c.l.b16 %v190
  %v826 = vunpack.c.l.b16 %v191
  %v827 = vunpack.c.l.b16 %v192
  %v828 = vunpack.c.l.b16 %v193
  %v829 = vunpack.c.l.b16 %v194
  %v830 = vunpack.c.l.b16 %v195
  %v831 = vunpack.c.l.b16 %v196
  %v832 = vunpack.c.l.b16 %v197
  %v833 = vunpack.c.l.b16 %v198
  %v834 = vunpack.c.l.b16 %v199
  %v835 = vunpack.c.l.b16 %v200
  %v836 = vunpack.c.l.b16 %v201
  %v837 = vunpack.c.l.b16 %v202
  %v838 = vpack.c.b16 %v759, %v758
  %v839 = vpack.c.b16 %v761, %v760
  %v840 = vpack.c.b16 %v763, %v762
  %v841 = vpack.c.b16 %v765, %v764
  %v842 = vpack.c.b16 %v767, %v766
  %v843 = vpack.c.b16 %v769, %v768
  %v844 = vpack.c.b16 %v771, %v770
  %v845 = vpack.c.b16 %v773, %v772
  %v846 = vpack.c.b16 %v775, %v774
  %v847 = vpack.c.b16 %v777, %v776
  %v848 = vpack.c.b16 %v779, %v778
  %v849 = vpack.c.b16 %v781, %v780
  %v850 = vpack.c.b16 %v783, %v782
  %v851 = vpack.c.b16 %v785, %v784
  %v852 = vpack.c.b16 %v787, %v786
  %v853 = vpack.c.b16 %v789, %v788
  %v854 = vpack.c.b16 %v791, %v790
  %v855 = vpack.c.b16 %v793, %v792
  %v856 = vpack.c.b16 %v795, %v794
  %v857 = vpack.c.b16 %v797, %v796
  %v858 = vpack.c.b16 %v799, %v798
  %v859 = vpack.c.b16 %v801, %v800
  %v860 = vpack.c.b16 %v803, %v802
  %v861 = vpack.c.b16 %v805, %v804
  %v862 = vpack.c.b16 %v807, %v806
  %v863 = vpack.c.b16 %v809, %v808
  %v864 = vpack.c.b16 %v811, %v810
  %v865 = vpack.c.b16 %v813, %v812
  %v866 = vpack.c.b16 %v815, %v814
  %v867 = vpack.c.b16 %v817, %v816
  %v868 = vpack.c.b16 %v819, %v818
  %v869 = vpack.c.b16 %v821, %v820
  %v870 = vpack.c.b16 %v823, %v822
  %v871 = vpack.c.b16 %v825, %v824
  %v872 = vpack.c.b16 %v827, %v826
  %v873 = vpack.c.b16 %v829, %v828
  %v874 = vpack.c.b16 %v831, %v830
  %v875 = vpack.c.b16 %v833, %v832
  %v876 = vpack.c.b16 %v835, %v834
  %v877 = vpack.c.b16 %v837, %v836
  %918 = vmatprep.subr.bf16.mxu0 0
  %919 = vmatpush1.bf16.msra.mxu0 %v838
  %920 = vmatprep.subr.bf16.mxu0 0
  %921 = vmatpush1.bf16.msra.mxu0 %v839
  %922 = vmatprep.subr.bf16.mxu0 0
  %923 = vmatpush1.bf16.msra.mxu0 %v840
  %924 = vmatprep.subr.bf16.mxu0 0
  %925 = vmatpush1.bf16.msra.mxu0 %v841
  %926 = vmatprep.subr.bf16.mxu0 0
  %927 = vmatpush1.bf16.msra.mxu0 %v842
  %928 = vmatprep.subr.bf16.mxu0 0
  %929 = vmatpush1.bf16.msra.mxu0 %v843
  %930 = vmatprep.subr.bf16.mxu0 0
  %931 = vmatpush1.bf16.msra.mxu0 %v844
  %932 = vmatprep.subr.bf16.mxu0 0
  %933 = vmatpush1.bf16.msra.mxu0 %v845
  %934 = vmatprep.subr.bf16.mxu0 0
  %935 = vmatpush1.bf16.msra.mxu0 %v846
  %936 = vmatprep.subr.bf16.mxu0 0
  %937 = vmatpush1.bf16.msra.mxu0 %v847
  %938 = vmatprep.subr.bf16.mxu0 0
  %939 = vmatpush1.bf16.msra.mxu0 %v848
  %940 = vmatprep.subr.bf16.mxu0 0
  %941 = vmatpush1.bf16.msra.mxu0 %v849
  %942 = vmatprep.subr.bf16.mxu0 0
  %943 = vmatpush1.bf16.msra.mxu0 %v850
  %944 = vmatprep.subr.bf16.mxu0 0
  %945 = vmatpush1.bf16.msra.mxu0 %v851
  %946 = vmatprep.subr.bf16.mxu0 0
  %947 = vmatpush1.bf16.msra.mxu0 %v852
  %948 = vmatprep.subr.bf16.mxu0 0
  %949 = vmatpush1.bf16.msra.mxu0 %v853
  %950 = vmatprep.mubr.bf16.mxu0 %v499
  %951 = vmatmul.mubr.bf16.gmra.mrb[0].mxu0 %v498
  %v952 = vpop.f32.mrb[0].mxu0
  %v953 = vadd.f32 %v208, %v952
  %v954 = vpop.f32.mrb[0].mxu0
  %v955 = vpop.f32.mrb[0].mxu0
  %v956 = vadd.f32 %v208, %v955
  %v957 = vpop.f32.mrb[0].mxu0
  %958 = vmatprep.mubr.bf16.mxu0 %v504
  %959 = vmatmul.mubr.bf16.gmra.mrb[0].mxu0 %v503
  %v960 = vpop.f32.mrb[0].mxu0
  %v961 = vadd.f32 %v208, %v960
  %v962 = vpop.f32.mrb[0].mxu0
  %v963 = vpop.f32.mrb[0].mxu0
  %v964 = vadd.f32 %v208, %v963
  %v965 = vpop.f32.mrb[0].mxu0
  %966 = vmatprep.mubr.bf16.mxu0 %v509
  %967 = vmatmul.mubr.bf16.gmra.mrb[0].mxu0 %v508
  %v968 = vpop.f32.mrb[0].mxu0
  %v969 = vadd.f32 %v208, %v968
  %v970 = vpop.f32.mrb[0].mxu0
  %v971 = vpop.f32.mrb[0].mxu0
  %v972 = vadd.f32 %v208, %v971
  %v973 = vpop.f32.mrb[0].mxu0
  %974 = vmatprep.mubr.bf16.mxu0 %v514
  %975 = vmatmul.mubr.bf16.gmra.mrb[0].mxu0 %v513
  %v976 = vpop.f32.mrb[0].mxu0
  %v977 = vadd.f32 %v208, %v976
  %v978 = vpop.f32.mrb[0].mxu0
  %v979 = vpop.f32.mrb[0].mxu0
  %v980 = vadd.f32 %v208, %v979
  %v981 = vpop.f32.mrb[0].mxu0
  %982 = vmatprep.mubr.bf16.mxu0 %v519
  %983 = vmatmul.mubr.bf16.gmra.mrb[0].mxu0 %v518
  %v984 = vpop.f32.mrb[0].mxu0
  %v985 = vadd.f32 %v208, %v984
  %v986 = vpop.f32.mrb[0].mxu0
  %v987 = vpop.f32.mrb[0].mxu0
  %v988 = vadd.f32 %v208, %v987
  %v989 = vpop.f32.mrb[0].mxu0
  %990 = vmatprep.mubr.bf16.mxu0 %v524
  %991 = vmatmul.mubr.bf16.gmra.mrb[0].mxu0 %v523
  %v992 = vpop.f32.mrb[0].mxu0
  %v993 = vadd.f32 %v208, %v992
  %v994 = vpop.f32.mrb[0].mxu0
  %v995 = vpop.f32.mrb[0].mxu0
  %v996 = vadd.f32 %v208, %v995
  %v997 = vpop.f32.mrb[0].mxu0
  %998 = vmatprep.mubr.bf16.mxu0 %v529
  %999 = vmatmul.mubr.bf16.gmra.mrb[0].mxu0 %v528
  %v1000 = vpop.f32.mrb[0].mxu0
  %v1001 = vadd.f32 %v208, %v1000
  %v1002 = vpop.f32.mrb[0].mxu0
  %v1003 = vpop.f32.mrb[0].mxu0
  %v1004 = vadd.f32 %v208, %v1003
  %v1005 = vpop.f32.mrb[0].mxu0
  %1006 = vmatprep.mubr.bf16.mxu0 %v534
  %1007 = vmatmul.mubr.bf16.gmra.mrb[0].mxu0 %v533
  %v1008 = vpop.f32.mrb[0].mxu0
  %v1009 = vadd.f32 %v208, %v1008
  %v1010 = vpop.f32.mrb[0].mxu0
  %v1011 = vpop.f32.mrb[0].mxu0
  %v1012 = vadd.f32 %v208, %v1011
  %v1013 = vpop.f32.mrb[0].mxu0
  %1014 = vmatprep.mubr.bf16.mxu0 %v539
  %1015 = vmatmul.mubr.bf16.gmra.mrb[0].mxu0 %v538
  %v1016 = vpop.f32.mrb[0].mxu0
  %v1017 = vadd.f32 %v208, %v1016
  %v1018 = vpop.f32.mrb[0].mxu0
  %v1019 = vpop.f32.mrb[0].mxu0
  %v1020 = vadd.f32 %v208, %v1019
  %v1021 = vpop.f32.mrb[0].mxu0
  %1022 = vmatprep.mubr.bf16.mxu0 %v544
  %1023 = vmatmul.mubr.bf16.gmra.mrb[0].mxu0 %v543
  %v1024 = vpop.f32.mrb[0].mxu0
  %v1025 = vadd.f32 %v208, %v1024
  %v1026 = vpop.f32.mrb[0].mxu0
  %v1027 = vpop.f32.mrb[0].mxu0
  %v1028 = vadd.f32 %v208, %v1027
  %v1029 = vpop.f32.mrb[0].mxu0
  %1030 = vmatprep.mubr.bf16.mxu0 %v549
  %1031 = vmatmul.mubr.bf16.gmra.mrb[0].mxu0 %v548
  %v1032 = vpop.f32.mrb[0].mxu0
  %v1033 = vadd.f32 %v208, %v1032
  %v1034 = vpop.f32.mrb[0].mxu0
  %v1035 = vpop.f32.mrb[0].mxu0
  %v1036 = vadd.f32 %v208, %v1035
  %v1037 = vpop.f32.mrb[0].mxu0
  %1038 = vmatprep.mubr.bf16.mxu0 %v554
  %1039 = vmatmul.mubr.bf16.gmra.mrb[0].mxu0 %v553
  %v1040 = vpop.f32.mrb[0].mxu0
  %v1041 = vadd.f32 %v208, %v1040
  %v1042 = vpop.f32.mrb[0].mxu0
  %v1043 = vpop.f32.mrb[0].mxu0
  %v1044 = vadd.f32 %v208, %v1043
  %v1045 = vpop.f32.mrb[0].mxu0
  %1046 = vmatprep.mubr.bf16.mxu0 %v559
  %1047 = vmatmul.mubr.bf16.gmra.mrb[0].mxu0 %v558
  %v1048 = vpop.f32.mrb[0].mxu0
  %v1049 = vadd.f32 %v208, %v1048
  %v1050 = vpop.f32.mrb[0].mxu0
  %v1051 = vpop.f32.mrb[0].mxu0
  %v1052 = vadd.f32 %v208, %v1051
  %v1053 = vpop.f32.mrb[0].mxu0
  %1054 = vmatprep.mubr.bf16.mxu0 %v564
  %1055 = vmatmul.mubr.bf16.gmra.mrb[0].mxu0 %v563
  %v1056 = vpop.f32.mrb[0].mxu0
  %v1057 = vadd.f32 %v208, %v1056
  %v1058 = vpop.f32.mrb[0].mxu0
  %v1059 = vpop.f32.mrb[0].mxu0
  %v1060 = vadd.f32 %v208, %v1059
  %v1061 = vpop.f32.mrb[0].mxu0
  %1062 = vmatprep.mubr.bf16.mxu0 %v569
  %1063 = vmatmul.mubr.bf16.gmra.mrb[0].mxu0 %v568
  %v1064 = vpop.f32.mrb[0].mxu0
  %v1065 = vadd.f32 %v208, %v1064
  %v1066 = vpop.f32.mrb[0].mxu0
  %v1067 = vpop.f32.mrb[0].mxu0
  %v1068 = vadd.f32 %v208, %v1067
  %v1069 = vpop.f32.mrb[0].mxu0
  %1070 = vmatprep.mubr.bf16.mxu0 %v574
  %1071 = vmatmul.mubr.bf16.gmra.mrb[0].mxu0 %v573
  %v1072 = vpop.f32.mrb[0].mxu0
  %v1073 = vadd.f32 %v208, %v1072
  %v1074 = vpop.f32.mrb[0].mxu0
  %v1075 = vpop.f32.mrb[0].mxu0
  %v1076 = vadd.f32 %v208, %v1075
  %v1077 = vpop.f32.mrb[0].mxu0
  %1078 = vmatprep.mubr.bf16.mxu0 %v579
  %1079 = vmatmul.mubr.bf16.gmra.mrb[0].mxu0 %v578
  %v1080 = vpop.f32.mrb[0].mxu0
  %v1081 = vadd.f32 %v208, %v1080
  %v1082 = vpop.f32.mrb[0].mxu0
  %v1083 = vpop.f32.mrb[0].mxu0
  %v1084 = vadd.f32 %v208, %v1083
  %v1085 = vpop.f32.mrb[0].mxu0
  %1086 = vmatprep.mubr.bf16.mxu0 %v584
  %1087 = vmatmul.mubr.bf16.gmra.mrb[0].mxu0 %v583
  %v1088 = vpop.f32.mrb[0].mxu0
  %v1089 = vadd.f32 %v208, %v1088
  %v1090 = vpop.f32.mrb[0].mxu0
  %v1091 = vpop.f32.mrb[0].mxu0
  %v1092 = vadd.f32 %v208, %v1091
  %v1093 = vpop.f32.mrb[0].mxu0
  %1094 = vdwg.mxu0
  %1095 = vmatprep.subr.bf16.mxu0 0
  %1096 = vmatpush1.bf16.msra.mxu0 %v854
  %1097 = vmatprep.subr.bf16.mxu0 0
  %1098 = vmatpush1.bf16.msra.mxu0 %v855
  %1099 = vmatprep.subr.bf16.mxu0 0
  %1100 = vmatpush1.bf16.msra.mxu0 %v856
  %1101 = vmatprep.subr.bf16.mxu0 0
  %1102 = vmatpush1.bf16.msra.mxu0 %v857
  %1103 = vmatprep.subr.bf16.mxu0 0
  %1104 = vmatpush1.bf16.msra.mxu0 %v858
  %1105 = vmatprep.subr.bf16.mxu0 0
  %1106 = vmatpush1.bf16.msra.mxu0 %v859
  %1107 = vmatprep.subr.bf16.mxu0 0
  %1108 = vmatpush1.bf16.msra.mxu0 %v860
  %1109 = vmatprep.subr.bf16.mxu0 0
  %1110 = vmatpush1.bf16.msra.mxu0 %v861
  %1111 = vmatprep.subr.bf16.mxu0 0
  %1112 = vmatpush1.bf16.msra.mxu0 %v862
  %1113 = vmatprep.subr.bf16.mxu0 0
  %1114 = vmatpush1.bf16.msra.mxu0 %v863
  %1115 = vmatprep.subr.bf16.mxu0 0
  %1116 = vmatpush1.bf16.msra.mxu0 %v864
  %1117 = vmatprep.subr.bf16.mxu0 0
  %1118 = vmatpush1.bf16.msra.mxu0 %v865
  %1119 = vmatprep.subr.bf16.mxu0 0
  %1120 = vmatpush1.bf16.msra.mxu0 %v866
  %1121 = vmatprep.subr.bf16.mxu0 0
  %1122 = vmatpush1.bf16.msra.mxu0 %v867
  %1123 = vmatprep.subr.bf16.mxu0 0
  %1124 = vmatpush1.bf16.msra.mxu0 %v868
  %1125 = vmatprep.subr.bf16.mxu0 0
  %1126 = vmatpush1.bf16.msra.mxu0 %v869
  %1127 = vmatprep.mubr.bf16.mxu0 %v501
  %1128 = vmatmul.mubr.bf16.gmra.mrb[0].mxu0 %v500
  %v1129 = vpop.f32.mrb[0].mxu0
  %v1130 = vadd.f32 %v953, %v1129
  %v1131 = vpop.f32.mrb[0].mxu0
  %v1132 = vpop.f32.mrb[0].mxu0
  %v1133 = vadd.f32 %v956, %v1132
  %v1134 = vpop.f32.mrb[0].mxu0
  %1135 = vmatprep.mubr.bf16.mxu0 %v506
  %1136 = vmatmul.mubr.bf16.gmra.mrb[0].mxu0 %v505
  %v1137 = vpop.f32.mrb[0].mxu0
  %v1138 = vadd.f32 %v961, %v1137
  %v1139 = vpop.f32.mrb[0].mxu0
  %v1140 = vpop.f32.mrb[0].mxu0
  %v1141 = vadd.f32 %v964, %v1140
  %v1142 = vpop.f32.mrb[0].mxu0
  %1143 = vmatprep.mubr.bf16.mxu0 %v511
  %1144 = vmatmul.mubr.bf16.gmra.mrb[0].mxu0 %v510
  %v1145 = vpop.f32.mrb[0].mxu0
  %v1146 = vadd.f32 %v969, %v1145
  %v1147 = vpop.f32.mrb[0].mxu0
  %v1148 = vpop.f32.mrb[0].mxu0
  %v1149 = vadd.f32 %v972, %v1148
  %v1150 = vpop.f32.mrb[0].mxu0
  %1151 = vmatprep.mubr.bf16.mxu0 %v516
  %1152 = vmatmul.mubr.bf16.gmra.mrb[0].mxu0 %v515
  %v1153 = vpop.f32.mrb[0].mxu0
  %v1154 = vadd.f32 %v977, %v1153
  %v1155 = vpop.f32.mrb[0].mxu0
  %v1156 = vpop.f32.mrb[0].mxu0
  %v1157 = vadd.f32 %v980, %v1156
  %v1158 = vpop.f32.mrb[0].mxu0
  %1159 = vmatprep.mubr.bf16.mxu0 %v521
  %1160 = vmatmul.mubr.bf16.gmra.mrb[0].mxu0 %v520
  %v1161 = vpop.f32.mrb[0].mxu0
  %v1162 = vadd.f32 %v985, %v1161
  %v1163 = vpop.f32.mrb[0].mxu0
  %v1164 = vpop.f32.mrb[0].mxu0
  %v1165 = vadd.f32 %v988, %v1164
  %v1166 = vpop.f32.mrb[0].mxu0
  %1167 = vmatprep.mubr.bf16.mxu0 %v526
  %1168 = vmatmul.mubr.bf16.gmra.mrb[0].mxu0 %v525
  %v1169 = vpop.f32.mrb[0].mxu0
  %v1170 = vadd.f32 %v993, %v1169
  %v1171 = vpop.f32.mrb[0].mxu0
  %v1172 = vpop.f32.mrb[0].mxu0
  %v1173 = vadd.f32 %v996, %v1172
  %v1174 = vpop.f32.mrb[0].mxu0
  %1175 = vmatprep.mubr.bf16.mxu0 %v531
  %1176 = vmatmul.mubr.bf16.gmra.mrb[0].mxu0 %v530
  %v1177 = vpop.f32.mrb[0].mxu0
  %v1178 = vadd.f32 %v1001, %v1177
  %v1179 = vpop.f32.mrb[0].mxu0
  %v1180 = vpop.f32.mrb[0].mxu0
  %v1181 = vadd.f32 %v1004, %v1180
  %v1182 = vpop.f32.mrb[0].mxu0
  %1183 = vmatprep.mubr.bf16.mxu0 %v536
  %1184 = vmatmul.mubr.bf16.gmra.mrb[0].mxu0 %v535
  %v1185 = vpop.f32.mrb[0].mxu0
  %v1186 = vadd.f32 %v1009, %v1185
  %v1187 = vpop.f32.mrb[0].mxu0
  %v1188 = vpop.f32.mrb[0].mxu0
  %v1189 = vadd.f32 %v1012, %v1188
  %v1190 = vpop.f32.mrb[0].mxu0
  %1191 = vmatprep.mubr.bf16.mxu0 %v541
  %1192 = vmatmul.mubr.bf16.gmra.mrb[0].mxu0 %v540
  %v1193 = vpop.f32.mrb[0].mxu0
  %v1194 = vadd.f32 %v1017, %v1193
  %v1195 = vpop.f32.mrb[0].mxu0
  %v1196 = vpop.f32.mrb[0].mxu0
  %v1197 = vadd.f32 %v1020, %v1196
  %v1198 = vpop.f32.mrb[0].mxu0
  %1199 = vmatprep.mubr.bf16.mxu0 %v546
  %1200 = vmatmul.mubr.bf16.gmra.mrb[0].mxu0 %v545
  %v1201 = vpop.f32.mrb[0].mxu0
  %v1202 = vadd.f32 %v1025, %v1201
  %v1203 = vpop.f32.mrb[0].mxu0
  %v1204 = vpop.f32.mrb[0].mxu0
  %v1205 = vadd.f32 %v1028, %v1204
  %v1206 = vpop.f32.mrb[0].mxu0
  %1207 = vmatprep.mubr.bf16.mxu0 %v551
  %1208 = vmatmul.mubr.bf16.gmra.mrb[0].mxu0 %v550
  %v1209 = vpop.f32.mrb[0].mxu0
  %v1210 = vadd.f32 %v1033, %v1209
  %v1211 = vpop.f32.mrb[0].mxu0
  %v1212 = vpop.f32.mrb[0].mxu0
  %v1213 = vadd.f32 %v1036, %v1212
  %v1214 = vpop.f32.mrb[0].mxu0
  %1215 = vmatprep.mubr.bf16.mxu0 %v556
  %1216 = vmatmul.mubr.bf16.gmra.mrb[0].mxu0 %v555
  %v1217 = vpop.f32.mrb[0].mxu0
  %v1218 = vadd.f32 %v1041, %v1217
  %v1219 = vpop.f32.mrb[0].mxu0
  %v1220 = vpop.f32.mrb[0].mxu0
  %v1221 = vadd.f32 %v1044, %v1220
  %v1222 = vpop.f32.mrb[0].mxu0
  %1223 = vmatprep.mubr.bf16.mxu0 %v561
  %1224 = vmatmul.mubr.bf16.gmra.mrb[0].mxu0 %v560
  %v1225 = vpop.f32.mrb[0].mxu0
  %v1226 = vadd.f32 %v1049, %v1225
  %v1227 = vpop.f32.mrb[0].mxu0
  %v1228 = vpop.f32.mrb[0].mxu0
  %v1229 = vadd.f32 %v1052, %v1228
  %v1230 = vpop.f32.mrb[0].mxu0
  %1231 = vmatprep.mubr.bf16.mxu0 %v566
  %1232 = vmatmul.mubr.bf16.gmra.mrb[0].mxu0 %v565
  %v1233 = vpop.f32.mrb[0].mxu0
  %v1234 = vadd.f32 %v1057, %v1233
  %v1235 = vpop.f32.mrb[0].mxu0
  %v1236 = vpop.f32.mrb[0].mxu0
  %v1237 = vadd.f32 %v1060, %v1236
  %v1238 = vpop.f32.mrb[0].mxu0
  %1239 = vmatprep.mubr.bf16.mxu0 %v571
  %1240 = vmatmul.mubr.bf16.gmra.mrb[0].mxu0 %v570
  %v1241 = vpop.f32.mrb[0].mxu0
  %v1242 = vadd.f32 %v1065, %v1241
  %v1243 = vpop.f32.mrb[0].mxu0
  %v1244 = vpop.f32.mrb[0].mxu0
  %v1245 = vadd.f32 %v1068, %v1244
  %v1246 = vpop.f32.mrb[0].mxu0
  %1247 = vmatprep.mubr.bf16.mxu0 %v576
  %1248 = vmatmul.mubr.bf16.gmra.mrb[0].mxu0 %v575
  %v1249 = vpop.f32.mrb[0].mxu0
  %v1250 = vadd.f32 %v1073, %v1249
  %v1251 = vpop.f32.mrb[0].mxu0
  %v1252 = vpop.f32.mrb[0].mxu0
  %v1253 = vadd.f32 %v1076, %v1252
  %v1254 = vpop.f32.mrb[0].mxu0
  %1255 = vmatprep.mubr.bf16.mxu0 %v581
  %1256 = vmatmul.mubr.bf16.gmra.mrb[0].mxu0 %v580
  %v1257 = vpop.f32.mrb[0].mxu0
  %v1258 = vadd.f32 %v1081, %v1257
  %v1259 = vpop.f32.mrb[0].mxu0
  %v1260 = vpop.f32.mrb[0].mxu0
  %v1261 = vadd.f32 %v1084, %v1260
  %v1262 = vpop.f32.mrb[0].mxu0
  %1263 = vmatprep.mubr.bf16.mxu0 %v586
  %1264 = vmatmul.mubr.bf16.gmra.mrb[0].mxu0 %v585
  %v1265 = vpop.f32.mrb[0].mxu0
  %v1266 = vadd.f32 %v1089, %v1265
  %v1267 = vpop.f32.mrb[0].mxu0
  %v1268 = vpop.f32.mrb[0].mxu0
  %v1269 = vadd.f32 %v1092, %v1268
  %v1270 = vpop.f32.mrb[0].mxu0
  %1271 = vdwg.mxu0
  %1272 = vmatprep.subr.bf16.mxu0 0
  %1273 = vmatpush1.bf16.msra.mxu0 %v870
  %1274 = vmatprep.subr.bf16.mxu0 0
  %1275 = vmatpush1.bf16.msra.mxu0 %v871
  %1276 = vmatprep.subr.bf16.mxu0 0
  %1277 = vmatpush1.bf16.msra.mxu0 %v872
  %1278 = vmatprep.subr.bf16.mxu0 0
  %1279 = vmatpush1.bf16.msra.mxu0 %v873
  %1280 = vmatprep.subr.bf16.mxu0 0
  %1281 = vmatpush1.bf16.msra.mxu0 %v874
  %1282 = vmatprep.subr.bf16.mxu0 0
  %1283 = vmatpush1.bf16.msra.mxu0 %v875
  %1284 = vmatprep.subr.bf16.mxu0 0
  %1285 = vmatpush1.bf16.msra.mxu0 %v876
  %1286 = vmatprep.subr.bf16.mxu0 0
  %1287 = vmatpush1.bf16.msra.mxu0 %v877
  %1288 = vmatprep.subr.bf16.mxu0 0
  %1289 = vmatpush1.bf16.msra.mxu0 0
  %1290 = vmatprep.subr.bf16.mxu0 0
  %1291 = vmatpush1.bf16.msra.mxu0 0
  %1292 = vmatprep.subr.bf16.mxu0 0
  %1293 = vmatpush1.bf16.msra.mxu0 0
  %1294 = vmatprep.subr.bf16.mxu0 0
  %1295 = vmatpush1.bf16.msra.mxu0 0
  %1296 = vmatprep.subr.bf16.mxu0 0
  %1297 = vmatpush1.bf16.msra.mxu0 0
  %1298 = vmatprep.subr.bf16.mxu0 0
  %1299 = vmatpush1.bf16.msra.mxu0 0
  %1300 = vmatprep.subr.bf16.mxu0 0
  %1301 = vmatpush1.bf16.msra.mxu0 0
  %1302 = vmatprep.subr.bf16.mxu0 0
  %1303 = vmatpush1.bf16.msra.mxu0 0
  %1304 = vmatprep.mubr.bf16.mxu0 0
  %1305 = vmatmul.mubr.bf16.gmra.mrb[0].mxu0 %v502
  %v1306 = vpop.f32.mrb[0].mxu0
  %v1307 = vadd.f32 %v1130, %v1306
  %v1308 = vpop.f32.mrb[0].mxu0
  %v1309 = vpop.f32.mrb[0].mxu0
  %v1310 = vadd.f32 %v1133, %v1309
  %v1311 = vpop.f32.mrb[0].mxu0
  %1312 = vmatprep.mubr.bf16.mxu0 0
  %1313 = vmatmul.mubr.bf16.gmra.mrb[0].mxu0 %v507
  %v1314 = vpop.f32.mrb[0].mxu0
  %v1315 = vadd.f32 %v1138, %v1314
  %v1316 = vpop.f32.mrb[0].mxu0
  %v1317 = vpop.f32.mrb[0].mxu0
  %v1318 = vadd.f32 %v1141, %v1317
  %v1319 = vpop.f32.mrb[0].mxu0
  %1320 = vmatprep.mubr.bf16.mxu0 0
  %1321 = vmatmul.mubr.bf16.gmra.mrb[0].mxu0 %v512
  %v1322 = vpop.f32.mrb[0].mxu0
  %v1323 = vadd.f32 %v1146, %v1322
  %v1324 = vpop.f32.mrb[0].mxu0
  %v1325 = vpop.f32.mrb[0].mxu0
  %v1326 = vadd.f32 %v1149, %v1325
  %v1327 = vpop.f32.mrb[0].mxu0
  %1328 = vmatprep.mubr.bf16.mxu0 0
  %1329 = vmatmul.mubr.bf16.gmra.mrb[0].mxu0 %v517
  %v1330 = vpop.f32.mrb[0].mxu0
  %v1331 = vadd.f32 %v1154, %v1330
  %v1332 = vpop.f32.mrb[0].mxu0
  %v1333 = vpop.f32.mrb[0].mxu0
  %v1334 = vadd.f32 %v1157, %v1333
  %v1335 = vpop.f32.mrb[0].mxu0
  %1336 = vmatprep.mubr.bf16.mxu0 0
  %1337 = vmatmul.mubr.bf16.gmra.mrb[0].mxu0 %v522
  %v1338 = vpop.f32.mrb[0].mxu0
  %v1339 = vadd.f32 %v1162, %v1338
  %v1340 = vpop.f32.mrb[0].mxu0
  %v1341 = vpop.f32.mrb[0].mxu0
  %v1342 = vadd.f32 %v1165, %v1341
  %v1343 = vpop.f32.mrb[0].mxu0
  %1344 = vmatprep.mubr.bf16.mxu0 0
  %1345 = vmatmul.mubr.bf16.gmra.mrb[0].mxu0 %v527
  %v1346 = vpop.f32.mrb[0].mxu0
  %v1347 = vadd.f32 %v1170, %v1346
  %v1348 = vpop.f32.mrb[0].mxu0
  %v1349 = vpop.f32.mrb[0].mxu0
  %v1350 = vadd.f32 %v1173, %v1349
  %v1351 = vpop.f32.mrb[0].mxu0
  %1352 = vmatprep.mubr.bf16.mxu0 0
  %1353 = vmatmul.mubr.bf16.gmra.mrb[0].mxu0 %v532
  %v1354 = vpop.f32.mrb[0].mxu0
  %v1355 = vadd.f32 %v1178, %v1354
  %v1356 = vpop.f32.mrb[0].mxu0
  %v1357 = vpop.f32.mrb[0].mxu0
  %v1358 = vadd.f32 %v1181, %v1357
  %v1359 = vpop.f32.mrb[0].mxu0
  %1360 = vmatprep.mubr.bf16.mxu0 0
  %1361 = vmatmul.mubr.bf16.gmra.mrb[0].mxu0 %v537
  %v1362 = vpop.f32.mrb[0].mxu0
  %v1363 = vadd.f32 %v1186, %v1362
  %v1364 = vpop.f32.mrb[0].mxu0
  %v1365 = vpop.f32.mrb[0].mxu0
  %v1366 = vadd.f32 %v1189, %v1365
  %v1367 = vpop.f32.mrb[0].mxu0
  %1368 = vmatprep.mubr.bf16.mxu0 0
  %1369 = vmatmul.mubr.bf16.gmra.mrb[0].mxu0 %v542
  %v1370 = vpop.f32.mrb[0].mxu0
  %v1371 = vadd.f32 %v1194, %v1370
  %v1372 = vpop.f32.mrb[0].mxu0
  %v1373 = vpop.f32.mrb[0].mxu0
  %v1374 = vadd.f32 %v1197, %v1373
  %v1375 = vpop.f32.mrb[0].mxu0
  %1376 = vmatprep.mubr.bf16.mxu0 0
  %1377 = vmatmul.mubr.bf16.gmra.mrb[0].mxu0 %v547
  %v1378 = vpop.f32.mrb[0].mxu0
  %v1379 = vadd.f32 %v1202, %v1378
  %v1380 = vpop.f32.mrb[0].mxu0
  %v1381 = vpop.f32.mrb[0].mxu0
  %v1382 = vadd.f32 %v1205, %v1381
  %v1383 = vpop.f32.mrb[0].mxu0
  %1384 = vmatprep.mubr.bf16.mxu0 0
  %1385 = vmatmul.mubr.bf16.gmra.mrb[0].mxu0 %v552
  %v1386 = vpop.f32.mrb[0].mxu0
  %v1387 = vadd.f32 %v1210, %v1386
  %v1388 = vpop.f32.mrb[0].mxu0
  %v1389 = vpop.f32.mrb[0].mxu0
  %v1390 = vadd.f32 %v1213, %v1389
  %v1391 = vpop.f32.mrb[0].mxu0
  %1392 = vmatprep.mubr.bf16.mxu0 0
  %1393 = vmatmul.mubr.bf16.gmra.mrb[0].mxu0 %v557
  %v1394 = vpop.f32.mrb[0].mxu0
  %v1395 = vadd.f32 %v1218, %v1394
  %v1396 = vpop.f32.mrb[0].mxu0
  %v1397 = vpop.f32.mrb[0].mxu0
  %v1398 = vadd.f32 %v1221, %v1397
  %v1399 = vpop.f32.mrb[0].mxu0
  %1400 = vmatprep.mubr.bf16.mxu0 0
  %1401 = vmatmul.mubr.bf16.gmra.mrb[0].mxu0 %v562
  %v1402 = vpop.f32.mrb[0].mxu0
  %v1403 = vadd.f32 %v1226, %v1402
  %v1404 = vpop.f32.mrb[0].mxu0
  %v1405 = vpop.f32.mrb[0].mxu0
  %v1406 = vadd.f32 %v1229, %v1405
  %v1407 = vpop.f32.mrb[0].mxu0
  %1408 = vmatprep.mubr.bf16.mxu0 0
  %1409 = vmatmul.mubr.bf16.gmra.mrb[0].mxu0 %v567
  %v1410 = vpop.f32.mrb[0].mxu0
  %v1411 = vadd.f32 %v1234, %v1410
  %v1412 = vpop.f32.mrb[0].mxu0
  %v1413 = vpop.f32.mrb[0].mxu0
  %v1414 = vadd.f32 %v1237, %v1413
  %v1415 = vpop.f32.mrb[0].mxu0
  %1416 = vmatprep.mubr.bf16.mxu0 0
  %1417 = vmatmul.mubr.bf16.gmra.mrb[0].mxu0 %v572
  %v1418 = vpop.f32.mrb[0].mxu0
  %v1419 = vadd.f32 %v1242, %v1418
  %v1420 = vpop.f32.mrb[0].mxu0
  %v1421 = vpop.f32.mrb[0].mxu0
  %v1422 = vadd.f32 %v1245, %v1421
  %v1423 = vpop.f32.mrb[0].mxu0
  %1424 = vmatprep.mubr.bf16.mxu0 0
  %1425 = vmatmul.mubr.bf16.gmra.mrb[0].mxu0 %v577
  %v1426 = vpop.f32.mrb[0].mxu0
  %v1427 = vadd.f32 %v1250, %v1426
  %v1428 = vpop.f32.mrb[0].mxu0
  %v1429 = vpop.f32.mrb[0].mxu0
  %v1430 = vadd.f32 %v1253, %v1429
  %v1431 = vpop.f32.mrb[0].mxu0
  %1432 = vmatprep.mubr.bf16.mxu0 0
  %1433 = vmatmul.mubr.bf16.gmra.mrb[0].mxu0 %v582
  %v1434 = vpop.f32.mrb[0].mxu0
  %v1435 = vadd.f32 %v1258, %v1434
  %v1436 = vpop.f32.mrb[0].mxu0
  %v1437 = vpop.f32.mrb[0].mxu0
  %v1438 = vadd.f32 %v1261, %v1437
  %v1439 = vpop.f32.mrb[0].mxu0
  %1440 = vmatprep.mubr.bf16.mxu0 0
  %1441 = vmatmul.mubr.bf16.gmra.mrb[0].mxu0 %v587
  %v1442 = vpop.f32.mrb[0].mxu0
  %v1443 = vadd.f32 %v1266, %v1442
  %v1444 = vpop.f32.mrb[0].mxu0
  %v1445 = vpop.f32.mrb[0].mxu0
  %v1446 = vadd.f32 %v1269, %v1445
  %v1447 = vpop.f32.mrb[0].mxu0
  %1448 = vdwg.mxu0
  %v1449 = vmax.f32 %v1307, 0.0
  %v1450 = vmax.f32 %v1310, 0.0
  %v1451 = vmax.f32 %v1315, 0.0
  %v1452 = vmax.f32 %v1318, 0.0
  %v1453 = vmax.f32 %v1323, 0.0
  %v1454 = vmax.f32 %v1326, 0.0
  %v1455 = vmax.f32 %v1331, 0.0
  %v1456 = vmax.f32 %v1334, 0.0
  %v1457 = vmax.f32 %v1339, 0.0
  %v1458 = vmax.f32 %v1342, 0.0
  %v1459 = vmax.f32 %v1347, 0.0
  %v1460 = vmax.f32 %v1350, 0.0
  %v1461 = vmax.f32 %v1355, 0.0
  %v1462 = vmax.f32 %v1358, 0.0
  %v1463 = vmax.f32 %v1363, 0.0
  %v1464 = vmax.f32 %v1366, 0.0
  %v1465 = vmax.f32 %v1371, 0.0
  %v1466 = vmax.f32 %v1374, 0.0
  %v1467 = vmax.f32 %v1379, 0.0
  %v1468 = vmax.f32 %v1382, 0.0
  %v1469 = vmax.f32 %v1387, 0.0
  %v1470 = vmax.f32 %v1390, 0.0
  %v1471 = vmax.f32 %v1395, 0.0
  %v1472 = vmax.f32 %v1398, 0.0
  %v1473 = vmax.f32 %v1403, 0.0
  %v1474 = vmax.f32 %v1406, 0.0
  %v1475 = vmax.f32 %v1411, 0.0
  %v1476 = vmax.f32 %v1414, 0.0
  %v1477 = vmax.f32 %v1419, 0.0
  %v1478 = vmax.f32 %v1422, 0.0
  %v1479 = vmax.f32 %v1427, 0.0
  %v1480 = vmax.f32 %v1430, 0.0
  %v1481 = vmax.f32 %v1435, 0.0
  %v1482 = vmax.f32 %v1438, 0.0
  %v1483 = vmax.f32 %v1443, 0.0
  %v1484 = vmax.f32 %v1446, 0.0
  %v1485 = vpack.c.bf16 %v1450, %v1449
  %v1486 = vpack.c.bf16 %v1452, %v1451
  %v1487 = vpack.c.bf16 %v1454, %v1453
  %v1488 = vpack.c.bf16 %v1456, %v1455
  %v1489 = vpack.c.bf16 %v1458, %v1457
  %v1490 = vpack.c.bf16 %v1460, %v1459
  %v1491 = vpack.c.bf16 %v1462, %v1461
  %v1492 = vpack.c.bf16 %v1464, %v1463
  %v1493 = vpack.c.bf16 %v1466, %v1465
  %v1494 = vpack.c.bf16 %v1468, %v1467
  %v1495 = vpack.c.bf16 %v1470, %v1469
  %v1496 = vpack.c.bf16 %v1472, %v1471
  %v1497 = vpack.c.bf16 %v1474, %v1473
  %v1498 = vpack.c.bf16 %v1476, %v1475
  %v1499 = vpack.c.bf16 %v1478, %v1477
  %v1500 = vpack.c.bf16 %v1480, %v1479
  %v1501 = vpack.c.bf16 %v1482, %v1481
  %v1502 = vpack.c.bf16 %v1484, %v1483
  %v1521 = vunpack.c.l.b16 %v1485
  %v1522 = vunpack.c.h.b16 %v1485
  %v1523 = vunpack.c.l.b16 %v1486
  %v1524 = vunpack.c.h.b16 %v1486
  %v1525 = vunpack.c.l.b16 %v1487
  %v1526 = vunpack.c.h.b16 %v1487
  %v1527 = vunpack.c.l.b16 %v1488
  %v1528 = vunpack.c.h.b16 %v1488
  %v1529 = vunpack.c.l.b16 %v1489
  %v1530 = vunpack.c.h.b16 %v1489
  %v1531 = vunpack.c.l.b16 %v1490
  %v1532 = vunpack.c.h.b16 %v1490
  %v1533 = vunpack.c.l.b16 %v1491
  %v1534 = vunpack.c.h.b16 %v1491
  %v1535 = vunpack.c.l.b16 %v1492
  %v1536 = vunpack.c.h.b16 %v1492
  %v1537 = vunpack.c.l.b16 %v1493
  %v1538 = vunpack.c.h.b16 %v1493
  %v1539 = vunpack.c.l.b16 %v1494
  %v1540 = vunpack.c.h.b16 %v1494
  %v1541 = vunpack.c.l.b16 %v1495
  %v1542 = vunpack.c.h.b16 %v1495
  %v1543 = vunpack.c.l.b16 %v1496
  %v1544 = vunpack.c.h.b16 %v1496
  %v1545 = vunpack.c.l.b16 %v1497
  %v1546 = vunpack.c.h.b16 %v1497
  %v1547 = vunpack.c.l.b16 %v1498
  %v1548 = vunpack.c.h.b16 %v1498
  %v1549 = vunpack.c.l.b16 %v1499
  %v1550 = vunpack.c.h.b16 %v1499
  %v1551 = vunpack.c.l.b16 %v1500
  %v1552 = vunpack.c.h.b16 %v1500
  %v1553 = vunpack.c.l.b16 %v1501
  %v1554 = vunpack.c.h.b16 %v1501
  %v1555 = vunpack.c.l.b16 %v1502
  %v1556 = vunpack.c.h.b16 %v1502
  %v1557 = vpack.c.b16 %v1521, %v1521
  %v1558 = vpack.c.b16 %v1522, %v1522
  %v1559 = vpack.c.b16 %v1523, %v1523
  %v1560 = vpack.c.b16 %v1524, %v1524
  %v1561 = vpack.c.b16 %v1525, %v1525
  %v1562 = vpack.c.b16 %v1526, %v1526
  %v1563 = vpack.c.b16 %v1527, %v1527
  %v1564 = vpack.c.b16 %v1528, %v1528
  %v1565 = vpack.c.b16 %v1529, %v1529
  %v1566 = vpack.c.b16 %v1530, %v1530
  %v1567 = vpack.c.b16 %v1531, %v1531
  %v1568 = vpack.c.b16 %v1532, %v1532
  %v1569 = vpack.c.b16 %v1533, %v1533
  %v1570 = vpack.c.b16 %v1534, %v1534
  %v1571 = vpack.c.b16 %v1535, %v1535
  %v1572 = vpack.c.b16 %v1536, %v1536
  %v1573 = vpack.c.b16 %v1537, %v1537
  %v1574 = vpack.c.b16 %v1538, %v1538
  %v1575 = vpack.c.b16 %v1539, %v1539
  %v1576 = vpack.c.b16 %v1540, %v1540
  %v1577 = vpack.c.b16 %v1541, %v1541
  %v1578 = vpack.c.b16 %v1542, %v1542
  %v1579 = vpack.c.b16 %v1543, %v1543
  %v1580 = vpack.c.b16 %v1544, %v1544
  %v1581 = vpack.c.b16 %v1545, %v1545
  %v1582 = vpack.c.b16 %v1546, %v1546
  %v1583 = vpack.c.b16 %v1547, %v1547
  %v1584 = vpack.c.b16 %v1548, %v1548
  %v1585 = vpack.c.b16 %v1549, %v1549
  %v1586 = vpack.c.b16 %v1550, %v1550
  %v1587 = vpack.c.b16 %v1551, %v1551
  %v1588 = vpack.c.b16 %v1552, %v1552
  %v1589 = vpack.c.b16 %v1553, %v1553
  %v1590 = vpack.c.b16 %v1554, %v1554
  %v1591 = vpack.c.b16 %v1555, %v1555
  %v1592 = vpack.c.b16 %v1556, %v1556
  %1629 = vst [vmem:[%s3] sm:$0xf] %v1557
  %1630 = vst [vmem:[%s3 + $0x4] sm:$0xf] %v1558
  %1631 = vst [vmem:[%s3 + $0x8] sm:$0xf] %v1559
  %1632 = vst [vmem:[%s3 + $0xc] sm:$0xf] %v1560
  %1633 = vst [vmem:[%s3 + $0x10] sm:$0xf] %v1561
  %1634 = vst [vmem:[%s3 + $0x14] sm:$0xf] %v1562
  %1635 = vst [vmem:[%s3 + $0x18] sm:$0xf] %v1563
  %1636 = vst [vmem:[%s3 + $0x1c] sm:$0xf] %v1564
  %1637 = vst [vmem:[%s3 + $0x20] sm:$0xf] %v1565
  %1638 = vst [vmem:[%s3 + $0x24] sm:$0xf] %v1566
  %1639 = vst [vmem:[%s3 + $0x28] sm:$0xf] %v1567
  %1640 = vst [vmem:[%s3 + $0x2c] sm:$0xf] %v1568
  %1641 = vst [vmem:[%s3 + $0x30] sm:$0xf] %v1569
  %1642 = vst [vmem:[%s3 + $0x34] sm:$0xf] %v1570
  %1643 = vst [vmem:[%s3 + $0x38] sm:$0xf] %v1571
  %1644 = vst [vmem:[%s3 + $0x3c] sm:$0xf] %v1572
  %1645 = vst [vmem:[%s3 + $0x40] sm:$0xf] %v1573
  %1646 = vst [vmem:[%s3 + $0x44] sm:$0xf] %v1574
  %1647 = vst [vmem:[%s3 + $0x48] sm:$0xf] %v1575
  %1648 = vst [vmem:[%s3 + $0x4c] sm:$0xf] %v1576
  %1649 = vst [vmem:[%s3 + $0x50] sm:$0xf] %v1577
  %1650 = vst [vmem:[%s3 + $0x54] sm:$0xf] %v1578
  %1651 = vst [vmem:[%s3 + $0x58] sm:$0xf] %v1579
  %1652 = vst [vmem:[%s3 + $0x5c] sm:$0xf] %v1580
  %1653 = vst [vmem:[%s3 + $0x60] sm:$0xf] %v1581
  %1654 = vst [vmem:[%s3 + $0x64] sm:$0xf] %v1582
  %1655 = vst [vmem:[%s3 + $0x68] sm:$0xf] %v1583
  %1656 = vst [vmem:[%s3 + $0x6c] sm:$0xf] %v1584
  %1657 = vst [vmem:[%s3 + $0x70] sm:$0xf] %v1585
  %1658 = vst [vmem:[%s3 + $0x74] sm:$0xf] %v1586
  %1659 = vst [vmem:[%s3 + $0x78] sm:$0xf] %v1587
  %1660 = vst [vmem:[%s3 + $0x7c] sm:$0xf] %v1588
  %1661 = vst [vmem:[%s3 + $0x80] sm:$0xf] %v1589
  %1662 = vst [vmem:[%s3 + $0x84] sm:$0xf] %v1590
  %1663 = vst [vmem:[%s3 + $0x88] sm:$0xf] %v1591
  %1664 = vst [vmem:[%s3 + $0x8c] sm:$0xf] %v1592
  // Predicated region
  $region14: #{map_encoder_forward.2} parent=0 // pred_check
    _
  $region15: #{map_encoder_forward.2} parent=0 // pred_check_branch
    %1666 = sbr.rel (0) target = $region17
  $region16: #{map_encoder_forward.2} parent=0 // pred_region
    _
  $region17: #{map_encoder_forward.2} parent=0 // pred_fallthru
    _
  // Predicated region
  $region18: #{map_encoder_forward.2} parent=0 // pred_check
    _
  $region19: #{map_encoder_forward.2} parent=0 // pred_check_branch
    %1668 = sbr.rel (0) target = $region21
  $region20: #{map_encoder_forward.2} parent=0 // pred_region
    _
  $region21: #{map_encoder_forward.2} parent=0 // pred_fallthru
    _

// kernel: map_encoder_forward.3
$region0: #{map_encoder_forward.3}
  #allocation0 [shape = 'u32[]', space=smem, size = 0x4, offset = 0x4, fixed_abs, tag = 'smem constant byte address 0x4 - core index']
  #allocation1 [shape = 'u32[144,128]{1,0:T(1,128)}', space=vmem, size = 0x12000, scoped, tag = 'internal scratch']
  %s0 = inlined_call_operand.vmem [shape: bf16[25,8,2048], index: 0, kind: input, shape index: {}]
  %s1 = inlined_call_operand.vmem [shape: bf16[2048,128], index: 1, kind: input, shape index: {}]
  %s2 = inlined_call_operand.vmem [shape: f32[1,128], index: 2, kind: input, shape index: {}]
  %s3 = inlined_call_operand.vmem [shape: bf16[25,128,512], index: 3, kind: input, shape index: {}]
  %s4 = inlined_call_operand.vmem [shape: f32[1,512], index: 4, kind: input, shape index: {}]
  %s5 = inlined_call_operand.vmem [shape: f32[8,512], index: 5, kind: output, shape index: {}]
  %s6 = sld [smem:[#allocation0]]
  $region57: #{map_encoder_forward.3} parent=0
    _
  %s8 = ssub.s32 1, %s6
  %s9 = scalar_select 0, %s8, %s6
  loop: start=0, step=1, limit=7
  $region2: #{map_encoder_forward.3} parent=0 // loop_pre_header
    _
  $region3: #{map_encoder_forward.3} parent=0 // loop_header
    %s11 = sphi 0, %s15
    %p12 = scmp.ge.s32.totalorder %s11, 7
    %s18 = sphi 0, %s30
    %s19 = sphi 0, %s26
    %s20 = sphi 0, %s18
    %s21 = sphi 0, %s19
    %s22 = sphi 0, %s20
    %s23 = sphi 0, %s21
    %s35 = sphi 0, %s37
    %s38 = sphi 0, %s35
    %s39 = sphi 0, %s38
    %s55 = sphi 0, %s39
    %s59 = sphi 0, %s59
    %s61 = sphi 0, %s59
    %s62 = sphi 0, %s61
    %s76 = sphi 0, %s62
    %s80 = sphi 0, %s80
    %s82 = sphi 0, %s80
    %s83 = sphi 0, %s82
    %s97 = sphi 0, %s83
    %s103 = sphi 0, %s105
    %s106 = sphi 0, %s103
    %s107 = sphi 0, %s106
    %s123 = sphi 0, %s107
    %s127 = sphi 0, %s127
    %s129 = sphi 0, %s127
    %s130 = sphi 0, %s129
    %s144 = sphi 0, %s130
    %s150 = sphi 0, %s152
    %s153 = sphi 0, %s150
    %s154 = sphi 0, %s153
    %s170 = sphi 0, %s154
  $region4: #{map_encoder_forward.3} parent=0 // loop_header_branch
    %14 = sbr.rel (%p12) target = $region8
  $region5: #{map_encoder_forward.3} parent=0 // loop_body
    %s16 = ssub.s32 %s11, 1
    %s17 = ssub.s32 %s11, 2
    %s24 = sadd.s32 1, %s19
    %p25 = scmp.ge.s32.totalorder %s24, 5
    %s26 = scalar_select %p25, 0, %s24
    %s27 = sadd.s32 1, %s18
    %s28 = scalar_select %p25, %s27, %s18
    %p29 = scmp.ge.s32.totalorder %s28, 1
    %s30 = scalar_select %p29, 0, %s28
    %s31 = ssub.s32 %s19, %s26
    %s32 = ssub.s32 %s18, %s30
    %s33 = sor.u32 %s31, %s32
    %p34 = scmp.eq.s32.totalorder %s33, 0
    %s36 = sadd.s32 %s35, 1
    %s37 = scalar_select %p34, %s35, %s36
    %p40 = pneg %p34
    %p41 = scmp.eq.s32.totalorder %s11, 4
    %p42 = por %p40, %p41
    %p43 = scmp.ne.s32.totalorder %s35, %s38
    %p44 = scmp.eq.s32.totalorder %s11, 0
    %p45 = por %p43, %p44
    %p46 = scmp.ne.s32.totalorder %s35, %s38
    %p47 = scmp.eq.s32.totalorder %s16, 4
    %p48 = por %p46, %p47
    %p49 = scmp.ne.s32.totalorder %s38, %s39
    %p50 = scmp.eq.s32.totalorder %s16, 0
    %p51 = por %p49, %p50
    %p52 = scmp.ne.s32.totalorder %s38, %s39
    %p53 = scmp.eq.s32.totalorder %s17, 4
    %p54 = por %p52, %p53
    %p56 = scmp.ne.s32.totalorder %s39, %s55
    %p57 = scmp.eq.s32.totalorder %s17, 0
    %p58 = por %p56, %p57
    %s60 = sadd.s32 %s59, 1
    %p63 = scmp.eq.s32.totalorder %s11, 4
    %p64 = scmp.ne.s32.totalorder %s59, %s61
    %p65 = scmp.eq.s32.totalorder %s11, 0
    %p66 = por %p64, %p65
    %p67 = scmp.ne.s32.totalorder %s59, %s61
    %p68 = scmp.eq.s32.totalorder %s16, 4
    %p69 = por %p67, %p68
    %p70 = scmp.ne.s32.totalorder %s61, %s62
    %p71 = scmp.eq.s32.totalorder %s16, 0
    %p72 = por %p70, %p71
    %p73 = scmp.ne.s32.totalorder %s61, %s62
    %p74 = scmp.eq.s32.totalorder %s17, 4
    %p75 = por %p73, %p74
    %p77 = scmp.ne.s32.totalorder %s62, %s76
    %p78 = scmp.eq.s32.totalorder %s17, 0
    %p79 = por %p77, %p78
    %s81 = sadd.s32 %s80, 1
    %p84 = scmp.eq.s32.totalorder %s11, 4
    %p85 = scmp.ne.s32.totalorder %s80, %s82
    %p86 = scmp.eq.s32.totalorder %s11, 0
    %p87 = por %p85, %p86
    %p88 = scmp.ne.s32.totalorder %s80, %s82
    %p89 = scmp.eq.s32.totalorder %s16, 4
    %p90 = por %p88, %p89
    %p91 = scmp.ne.s32.totalorder %s82, %s83
    %p92 = scmp.eq.s32.totalorder %s16, 0
    %p93 = por %p91, %p92
    %p94 = scmp.ne.s32.totalorder %s82, %s83
    %p95 = scmp.eq.s32.totalorder %s17, 4
    %p96 = por %p94, %p95
    %p98 = scmp.ne.s32.totalorder %s83, %s97
    %p99 = scmp.eq.s32.totalorder %s17, 0
    %p100 = por %p98, %p99
    %s101 = ssub.s32 %s19, %s26
    %p102 = scmp.eq.s32.totalorder %s101, 0
    %s104 = sadd.s32 %s103, 1
    %s105 = scalar_select %p102, %s103, %s104
    %p108 = pneg %p102
    %p109 = scmp.eq.s32.totalorder %s11, 4
    %p110 = por %p108, %p109
    %p111 = scmp.ne.s32.totalorder %s103, %s106
    %p112 = scmp.eq.s32.totalorder %s11, 0
    %p113 = por %p111, %p112
    %p114 = scmp.ne.s32.totalorder %s103, %s106
    %p115 = scmp.eq.s32.totalorder %s16, 4
    %p116 = por %p114, %p115
    %p117 = scmp.ne.s32.totalorder %s106, %s107
    %p118 = scmp.eq.s32.totalorder %s16, 0
    %p119 = por %p117, %p118
    %p120 = scmp.ne.s32.totalorder %s106, %s107
    %p121 = scmp.eq.s32.totalorder %s17, 4
    %p122 = por %p120, %p121
    %p124 = scmp.ne.s32.totalorder %s107, %s123
    %p125 = scmp.eq.s32.totalorder %s17, 0
    %p126 = por %p124, %p125
    %s128 = sadd.s32 %s127, 1
    %p131 = scmp.eq.s32.totalorder %s11, 4
    %p132 = scmp.ne.s32.totalorder %s127, %s129
    %p133 = scmp.eq.s32.totalorder %s11, 0
    %p134 = por %p132, %p133
    %p135 = scmp.ne.s32.totalorder %s127, %s129
    %p136 = scmp.eq.s32.totalorder %s16, 4
    %p137 = por %p135, %p136
    %p138 = scmp.ne.s32.totalorder %s129, %s130
    %p139 = scmp.eq.s32.totalorder %s16, 0
    %p140 = por %p138, %p139
    %p141 = scmp.ne.s32.totalorder %s129, %s130
    %p142 = scmp.eq.s32.totalorder %s17, 4
    %p143 = por %p141, %p142
    %p145 = scmp.ne.s32.totalorder %s130, %s144
    %p146 = scmp.eq.s32.totalorder %s17, 0
    %p147 = por %p145, %p146
    %s148 = ssub.s32 %s18, %s30
    %p149 = scmp.eq.s32.totalorder %s148, 0
    %s151 = sadd.s32 %s150, 1
    %s152 = scalar_select %p149, %s150, %s151
    %p155 = pneg %p149
    %p156 = scmp.eq.s32.totalorder %s11, 4
    %p157 = por %p155, %p156
    %p158 = scmp.ne.s32.totalorder %s150, %s153
    %p159 = scmp.eq.s32.totalorder %s11, 0
    %p160 = por %p158, %p159
    %p161 = scmp.ne.s32.totalorder %s150, %s153
    %p162 = scmp.eq.s32.totalorder %s16, 4
    %p163 = por %p161, %p162
    %p164 = scmp.ne.s32.totalorder %s153, %s154
    %p165 = scmp.eq.s32.totalorder %s16, 0
    %p166 = por %p164, %p165
    %p167 = scmp.ne.s32.totalorder %s153, %s154
    %p168 = scmp.eq.s32.totalorder %s17, 4
    %p169 = por %p167, %p168
    %p171 = scmp.ne.s32.totalorder %s154, %s170
    %p172 = scmp.eq.s32.totalorder %s17, 0
    %p173 = por %p171, %p172
    %p174 = scmp.le.s32.totalorder 1, %s11
    %p175 = scmp.lt.s32.totalorder %s11, 6
    %p176 = pnand %p174, %p175
    %p177 = pneg %p176
    // Predicated region
    $region9: #{map_encoder_forward.3} parent=5 // pred_check
      _
    $region10: #{map_encoder_forward.3} parent=5 // pred_check_branch
      %179 = sbr.rel (%p176) target = $region12
    $region11: #{map_encoder_forward.3} parent=5 // pred_region
      %s180 = ssub.s32 %s11, 1
      // Predicated region
      $region13: #{map_encoder_forward.3} parent=11 // pred_check
        %p181 = pneg %p72
      $region14: #{map_encoder_forward.3} parent=11 // pred_check_branch
        %183 = sbr.rel (%p181) target = $region16
      $region15: #{map_encoder_forward.3} parent=11 // pred_region
        _
      $region16: #{map_encoder_forward.3} parent=11 // pred_fallthru
        _
      // Predicated region
      $region17: #{map_encoder_forward.3} parent=11 // pred_check
        %p184 = pneg %p93
      $region18: #{map_encoder_forward.3} parent=11 // pred_check_branch
        %186 = sbr.rel (%p184) target = $region20
      $region19: #{map_encoder_forward.3} parent=11 // pred_region
        _
      $region20: #{map_encoder_forward.3} parent=11 // pred_fallthru
        _
      // Predicated region
      $region21: #{map_encoder_forward.3} parent=11 // pred_check
        %p187 = pneg %p140
      $region22: #{map_encoder_forward.3} parent=11 // pred_check_branch
        %189 = sbr.rel (%p187) target = $region24
      $region23: #{map_encoder_forward.3} parent=11 // pred_region
        _
      $region24: #{map_encoder_forward.3} parent=11 // pred_fallthru
        _
    $region12: #{map_encoder_forward.3} parent=5 // pred_fallthru
      _
    %p190 = scmp.lt.s32.totalorder %s11, 5
    // Predicated region
    $region25: #{map_encoder_forward.3} parent=5 // pred_check
      %p191 = pneg %p190
    $region26: #{map_encoder_forward.3} parent=5 // pred_check_branch
      %193 = sbr.rel (%p191) target = $region28
    $region27: #{map_encoder_forward.3} parent=5 // pred_region
      // Predicated region
      $region29: #{map_encoder_forward.3} parent=27 // pred_check
        %p194 = pneg %p45
      $region30: #{map_encoder_forward.3} parent=27 // pred_check_branch
        %196 = sbr.rel (%p194) target = $region32
      $region31: #{map_encoder_forward.3} parent=27 // pred_region
        %s197 = smul.u32 5, %s19
        %p198 = scmp.lt.s32.totalorder %s197, 24
        %s199 = scalar_select %p198, %s197, 24
        %p200 = scmp.lt.s32.totalorder %s18, 0
        %s201 = scalar_select %p200, %s18, 0
        %s202 = smul.addr %s201, 16
        %s203 = smul.addr %s199, 16
        %s204 = sadd.s32 %s202, %s203
        %s205 = smul.addr %s204, 4
        %s206 = scalar_lea.vmem %s0, %s205
        %s207 = smul.u32 5, %s19
      $region32: #{map_encoder_forward.3} parent=27 // pred_fallthru
        _
      // Predicated region
      $region33: #{map_encoder_forward.3} parent=27 // pred_check
        %p208 = pneg %p113
      $region34: #{map_encoder_forward.3} parent=27 // pred_check_branch
        %210 = sbr.rel (%p208) target = $region36
      $region35: #{map_encoder_forward.3} parent=27 // pred_region
        %s211 = smul.u32 5, %s19
        %p212 = scmp.lt.s32.totalorder %s211, 24
        %s213 = scalar_select %p212, %s211, 24
        %s214 = smul.addr %s213, 64
        %s215 = smul.addr %s214, 4
        %s216 = scalar_lea.vmem %s3, %s215
        %s217 = smul.u32 5, %s19
      $region36: #{map_encoder_forward.3} parent=27 // pred_fallthru
        _
    $region28: #{map_encoder_forward.3} parent=5 // pred_fallthru
      _
    %p218 = scmp.le.s32.totalorder 1, %s11
    %p219 = scmp.lt.s32.totalorder %s11, 6
    %p220 = pnand %p218, %p219
    %p221 = pneg %p220
    // Predicated region
    $region37: #{map_encoder_forward.3} parent=5 // pred_check
      _
    $region38: #{map_encoder_forward.3} parent=5 // pred_check_branch
      %223 = sbr.rel (%p220) target = $region40
    $region39: #{map_encoder_forward.3} parent=5 // pred_region
      %s224 = ssub.s32 %s11, 1
      %s225 = smul.u32 5, %s21
      %p226 = scmp.lt.s32.totalorder %s225, 24
      %s227 = scalar_select %p226, %s225, 24
      %p228 = scmp.lt.s32.totalorder %s20, 0
      %s229 = scalar_select %p228, %s20, 0
      %s230 = smul.addr %s229, 16
      %s231 = smul.addr %s227, 16
      %s232 = sadd.s32 %s230, %s231
      %s233 = smul.addr %s232, 4
      %s234 = scalar_lea.vmem %s0, %s233
      %p235 = pneg %p51
      %p236 = pneg %p48
      %p237 = pneg %p72
      %p238 = pneg %p69
      %p239 = pneg %p93
      %p240 = pneg %p90
      %s241 = smul.u32 5, %s21
      %p242 = scmp.lt.s32.totalorder %s241, 24
      %s243 = scalar_select %p242, %s241, 24
      %s244 = smul.addr %s243, 64
      %s245 = smul.addr %s244, 4
      %s246 = scalar_lea.vmem %s3, %s245
      %p247 = pneg %p119
      %p248 = pneg %p116
      %p249 = pneg %p140
      %p250 = pneg %p137
      %p251 = pneg %p166
      %p252 = pneg %p163
      %p253 = scmp.lt.s32.totalorder %s20, 0
      %s254 = scalar_select %p253, %s20, 0
      %s255 = smul.addr %s254, 4
      %s256 = smul.addr %s255, 8
      %s257 = scalar_lea.vmem %s5, %s256
      %s258 = smul.u32 5, %s21
      %p259 = scmp.lt.s32.totalorder %s258, 24
      %s260 = scalar_select %p259, %s258, 24
      %p261 = scmp.lt.s32.totalorder %s20, 0
      %s262 = scalar_select %p261, %s20, 0
      %s263 = smul.addr %s262, 16
      %s264 = smul.addr %s260, 16
      %s265 = sadd.s32 %s263, %s264
      %s266 = smul.addr %s265, 4
      %s267 = scalar_lea.vmem %s0, %s266
      %s268 = smul.u32 5, %s21
      %s269 = smul.u32 5, %s21
      %p270 = scmp.lt.s32.totalorder %s269, 24
      %s271 = scalar_select %p270, %s269, 24
      %s272 = smul.addr %s271, 64
      %s273 = smul.addr %s272, 4
      %s274 = scalar_lea.vmem %s3, %s273
      %s275 = smul.u32 5, %s21
      %p276 = scmp.lt.s32.totalorder %s20, 0
      %s277 = scalar_select %p276, %s20, 0
      %s278 = smul.addr %s277, 4
      %s279 = smul.addr %s278, 8
      %s280 = scalar_lea.vmem %s5, %s279
      %p282 = scmp.eq.s32.totalorder %s21, 0
      // Predicated region
      $region41: #{map_encoder_forward.3} parent=39 // pred_check
        %p283 = pneg %p282
      $region42: #{map_encoder_forward.3} parent=39 // pred_check_branch
        %285 = sbr.rel (%p283) target = $region44
      $region43: #{map_encoder_forward.3} parent=39 // pred_region
        %v286 = vld [vmem:[%s4] sm:$0xf]
        %v288 = vlaneseq
        %v289 = vshrl.u32 %v288, 7
        %v290 = vsub.s32 0, %v289
        %v291 = vrot.slane %v286, %v290
        %v292 = vlaneseq
        %v293 = vshrl.u32 %v292, 7
        %v294 = vsub.s32 1, %v293
        %v295 = vrot.slane %v286, %v294
        %v296 = vlaneseq
        %v297 = vshrl.u32 %v296, 7
        %v298 = vsub.s32 2, %v297
        %v299 = vrot.slane %v286, %v298
        %v300 = vlaneseq
        %v301 = vshrl.u32 %v300, 7
        %v302 = vsub.s32 3, %v301
        %v303 = vrot.slane %v286, %v302
        %308 = vst [vmem:[%s280] sm:$0xff] %v291
        %309 = vst [vmem:[%s280 + $0x8] sm:$0xff] %v295
        %310 = vst [vmem:[%s280 + $0x10] sm:$0xff] %v299
        %311 = vst [vmem:[%s280 + $0x18] sm:$0xff] %v303
      $region44: #{map_encoder_forward.3} parent=39 // pred_fallthru
        _
      %v312 = vld [vmem:[%s267] sm:$0xff]
      %v313 = vld [vmem:[%s267 + $0x8] sm:$0xff]
      %v314 = vld [vmem:[%s267 + $0x10] sm:$0xff]
      %v315 = vld [vmem:[%s267 + $0x18] sm:$0xff]
      %v316 = vld [vmem:[%s267 + $0x20] sm:$0xff]
      %v317 = vld [vmem:[%s267 + $0x28] sm:$0xff]
      %v318 = vld [vmem:[%s267 + $0x30] sm:$0xff]
      %v319 = vld [vmem:[%s267 + $0x38] sm:$0xff]
      %v320 = vld [vmem:[%s1] sm:$0xf]
      %v321 = vld [vmem:[%s1 + $0x4] sm:$0xf]
      %v322 = vld [vmem:[%s1 + $0x8] sm:$0xf]
      %v323 = vld [vmem:[%s1 + $0xc] sm:$0xf]
      %v324 = vld [vmem:[%s1 + $0x10] sm:$0xf]
      %v325 = vld [vmem:[%s1 + $0x14] sm:$0xf]
      %v326 = vld [vmem:[%s1 + $0x18] sm:$0xf]
      %v327 = vld [vmem:[%s1 + $0x1c] sm:$0xf]
      %v328 = vld [vmem:[%s1 + $0x20] sm:$0xf]
      %v329 = vld [vmem:[%s1 + $0x24] sm:$0xf]
      %v330 = vld [vmem:[%s1 + $0x28] sm:$0xf]
      %v331 = vld [vmem:[%s1 + $0x2c] sm:$0xf]
      %v332 = vld [vmem:[%s1 + $0x30] sm:$0xf]
      %v333 = vld [vmem:[%s1 + $0x34] sm:$0xf]
      %v334 = vld [vmem:[%s1 + $0x38] sm:$0xf]
      %v335 = vld [vmem:[%s1 + $0x3c] sm:$0xf]
      %v336 = vld [vmem:[%s1 + $0x40] sm:$0xf]
      %v337 = vld [vmem:[%s1 + $0x44] sm:$0xf]
      %v338 = vld [vmem:[%s1 + $0x48] sm:$0xf]
      %v339 = vld [vmem:[%s1 + $0x4c] sm:$0xf]
      %v340 = vld [vmem:[%s1 + $0x50] sm:$0xf]
      %v341 = vld [vmem:[%s1 + $0x54] sm:$0xf]
      %v342 = vld [vmem:[%s1 + $0x58] sm:$0xf]
      %v343 = vld [vmem:[%s1 + $0x5c] sm:$0xf]
      %v344 = vld [vmem:[%s1 + $0x60] sm:$0xf]
      %v345 = vld [vmem:[%s1 + $0x64] sm:$0xf]
      %v346 = vld [vmem:[%s1 + $0x68] sm:$0xf]
      %v347 = vld [vmem:[%s1 + $0x6c] sm:$0xf]
      %v348 = vld [vmem:[%s1 + $0x70] sm:$0xf]
      %v349 = vld [vmem:[%s1 + $0x74] sm:$0xf]
      %v350 = vld [vmem:[%s1 + $0x78] sm:$0xf]
      %v351 = vld [vmem:[%s1 + $0x7c] sm:$0xf]
      %v352 = vld [vmem:[%s1 + $0x80] sm:$0xf]
      %v353 = vld [vmem:[%s1 + $0x84] sm:$0xf]
      %v354 = vld [vmem:[%s1 + $0x88] sm:$0xf]
      %v355 = vld [vmem:[%s1 + $0x8c] sm:$0xf]
      %v356 = vld [vmem:[%s1 + $0x90] sm:$0xf]
      %v357 = vld [vmem:[%s1 + $0x94] sm:$0xf]
      %v358 = vld [vmem:[%s1 + $0x98] sm:$0xf]
      %v359 = vld [vmem:[%s1 + $0x9c] sm:$0xf]
      %v360 = vld [vmem:[%s1 + $0xa0] sm:$0xf]
      %v361 = vld [vmem:[%s1 + $0xa4] sm:$0xf]
      %v362 = vld [vmem:[%s1 + $0xa8] sm:$0xf]
      %v363 = vld [vmem:[%s1 + $0xac] sm:$0xf]
      %v364 = vld [vmem:[%s1 + $0xb0] sm:$0xf]
      %v365 = vld [vmem:[%s1 + $0xb4] sm:$0xf]
      %v366 = vld [vmem:[%s1 + $0xb8] sm:$0xf]
      %v367 = vld [vmem:[%s1 + $0xbc] sm:$0xf]
      %v368 = vld [vmem:[%s1 + $0xc0] sm:$0xf]
      %v369 = vld [vmem:[%s1 + $0xc4] sm:$0xf]
      %v370 = vld [vmem:[%s1 + $0xc8] sm:$0xf]
      %v371 = vld [vmem:[%s1 + $0xcc] sm:$0xf]
      %v372 = vld [vmem:[%s1 + $0xd0] sm:$0xf]
      %v373 = vld [vmem:[%s1 + $0xd4] sm:$0xf]
      %v374 = vld [vmem:[%s1 + $0xd8] sm:$0xf]
      %v375 = vld [vmem:[%s1 + $0xdc] sm:$0xf]
      %v376 = vld [vmem:[%s1 + $0xe0] sm:$0xf]
      %v377 = vld [vmem:[%s1 + $0xe4] sm:$0xf]
      %v378 = vld [vmem:[%s1 + $0xe8] sm:$0xf]
      %v379 = vld [vmem:[%s1 + $0xec] sm:$0xf]
      %v380 = vld [vmem:[%s1 + $0xf0] sm:$0xf]
      %v381 = vld [vmem:[%s1 + $0xf4] sm:$0xf]
      %v382 = vld [vmem:[%s1 + $0xf8] sm:$0xf]
      %v383 = vld [vmem:[%s1 + $0xfc] sm:$0xf]
      %v384 = vld [vmem:[%s1 + $0x100] sm:$0xf]
      %v385 = vld [vmem:[%s1 + $0x104] sm:$0xf]
      %v386 = vld [vmem:[%s1 + $0x108] sm:$0xf]
      %v387 = vld [vmem:[%s1 + $0x10c] sm:$0xf]
      %v388 = vld [vmem:[%s1 + $0x110] sm:$0xf]
      %v389 = vld [vmem:[%s1 + $0x114] sm:$0xf]
      %v390 = vld [vmem:[%s1 + $0x118] sm:$0xf]
      %v391 = vld [vmem:[%s1 + $0x11c] sm:$0xf]
      %v392 = vld [vmem:[%s1 + $0x120] sm:$0xf]
      %v393 = vld [vmem:[%s1 + $0x124] sm:$0xf]
      %v394 = vld [vmem:[%s1 + $0x128] sm:$0xf]
      %v395 = vld [vmem:[%s1 + $0x12c] sm:$0xf]
      %v396 = vld [vmem:[%s1 + $0x130] sm:$0xf]
      %v397 = vld [vmem:[%s1 + $0x134] sm:$0xf]
      %v398 = vld [vmem:[%s1 + $0x138] sm:$0xf]
      %v399 = vld [vmem:[%s1 + $0x13c] sm:$0xf]
      %v400 = vld [vmem:[%s1 + $0x140] sm:$0xf]
      %v401 = vld [vmem:[%s1 + $0x144] sm:$0xf]
      %v402 = vld [vmem:[%s1 + $0x148] sm:$0xf]
      %v403 = vld [vmem:[%s1 + $0x14c] sm:$0xf]
      %v404 = vld [vmem:[%s1 + $0x150] sm:$0xf]
      %v405 = vld [vmem:[%s1 + $0x154] sm:$0xf]
      %v406 = vld [vmem:[%s1 + $0x158] sm:$0xf]
      %v407 = vld [vmem:[%s1 + $0x15c] sm:$0xf]
      %v408 = vld [vmem:[%s1 + $0x160] sm:$0xf]
      %v409 = vld [vmem:[%s1 + $0x164] sm:$0xf]
      %v410 = vld [vmem:[%s1 + $0x168] sm:$0xf]
      %v411 = vld [vmem:[%s1 + $0x16c] sm:$0xf]
      %v412 = vld [vmem:[%s1 + $0x170] sm:$0xf]
      %v413 = vld [vmem:[%s1 + $0x174] sm:$0xf]
      %v414 = vld [vmem:[%s1 + $0x178] sm:$0xf]
      %v415 = vld [vmem:[%s1 + $0x17c] sm:$0xf]
      %v416 = vld [vmem:[%s1 + $0x180] sm:$0xf]
      %v417 = vld [vmem:[%s1 + $0x184] sm:$0xf]
      %v418 = vld [vmem:[%s1 + $0x188] sm:$0xf]
      %v419 = vld [vmem:[%s1 + $0x18c] sm:$0xf]
      %v420 = vld [vmem:[%s1 + $0x190] sm:$0xf]
      %v421 = vld [vmem:[%s1 + $0x194] sm:$0xf]
      %v422 = vld [vmem:[%s1 + $0x198] sm:$0xf]
      %v423 = vld [vmem:[%s1 + $0x19c] sm:$0xf]
      %v424 = vld [vmem:[%s1 + $0x1a0] sm:$0xf]
      %v425 = vld [vmem:[%s1 + $0x1a4] sm:$0xf]
      %v426 = vld [vmem:[%s1 + $0x1a8] sm:$0xf]
      %v427 = vld [vmem:[%s1 + $0x1ac] sm:$0xf]
      %v428 = vld [vmem:[%s1 + $0x1b0] sm:$0xf]
      %v429 = vld [vmem:[%s1 + $0x1b4] sm:$0xf]
      %v430 = vld [vmem:[%s1 + $0x1b8] sm:$0xf]
      %v431 = vld [vmem:[%s1 + $0x1bc] sm:$0xf]
      %v432 = vld [vmem:[%s1 + $0x1c0] sm:$0xf]
      %v433 = vld [vmem:[%s1 + $0x1c4] sm:$0xf]
      %v434 = vld [vmem:[%s1 + $0x1c8] sm:$0xf]
      %v435 = vld [vmem:[%s1 + $0x1cc] sm:$0xf]
      %v436 = vld [vmem:[%s1 + $0x1d0] sm:$0xf]
      %v437 = vld [vmem:[%s1 + $0x1d4] sm:$0xf]
      %v438 = vld [vmem:[%s1 + $0x1d8] sm:$0xf]
      %v439 = vld [vmem:[%s1 + $0x1dc] sm:$0xf]
      %v440 = vld [vmem:[%s1 + $0x1e0] sm:$0xf]
      %v441 = vld [vmem:[%s1 + $0x1e4] sm:$0xf]
      %v442 = vld [vmem:[%s1 + $0x1e8] sm:$0xf]
      %v443 = vld [vmem:[%s1 + $0x1ec] sm:$0xf]
      %v444 = vld [vmem:[%s1 + $0x1f0] sm:$0xf]
      %v445 = vld [vmem:[%s1 + $0x1f4] sm:$0xf]
      %v446 = vld [vmem:[%s1 + $0x1f8] sm:$0xf]
      %v447 = vld [vmem:[%s1 + $0x1fc] sm:$0xf]
      %v448 = vld [vmem:[%s1 + $0x200] sm:$0xf]
      %v449 = vld [vmem:[%s1 + $0x204] sm:$0xf]
      %v450 = vld [vmem:[%s1 + $0x208] sm:$0xf]
      %v451 = vld [vmem:[%s1 + $0x20c] sm:$0xf]
      %v452 = vld [vmem:[%s1 + $0x210] sm:$0xf]
      %v453 = vld [vmem:[%s1 + $0x214] sm:$0xf]
      %v454 = vld [vmem:[%s1 + $0x218] sm:$0xf]
      %v455 = vld [vmem:[%s1 + $0x21c] sm:$0xf]
      %v456 = vld [vmem:[%s1 + $0x220] sm:$0xf]
      %v457 = vld [vmem:[%s1 + $0x224] sm:$0xf]
      %v458 = vld [vmem:[%s1 + $0x228] sm:$0xf]
      %v459 = vld [vmem:[%s1 + $0x22c] sm:$0xf]
      %v460 = vld [vmem:[%s1 + $0x230] sm:$0xf]
      %v461 = vld [vmem:[%s1 + $0x234] sm:$0xf]
      %v462 = vld [vmem:[%s1 + $0x238] sm:$0xf]
      %v463 = vld [vmem:[%s1 + $0x23c] sm:$0xf]
      %v464 = vld [vmem:[%s1 + $0x240] sm:$0xf]
      %v465 = vld [vmem:[%s1 + $0x244] sm:$0xf]
      %v466 = vld [vmem:[%s1 + $0x248] sm:$0xf]
      %v467 = vld [vmem:[%s1 + $0x24c] sm:$0xf]
      %v468 = vld [vmem:[%s1 + $0x250] sm:$0xf]
      %v469 = vld [vmem:[%s1 + $0x254] sm:$0xf]
      %v470 = vld [vmem:[%s1 + $0x258] sm:$0xf]
      %v471 = vld [vmem:[%s1 + $0x25c] sm:$0xf]
      %v472 = vld [vmem:[%s1 + $0x260] sm:$0xf]
      %v473 = vld [vmem:[%s1 + $0x264] sm:$0xf]
      %v474 = vld [vmem:[%s1 + $0x268] sm:$0xf]
      %v475 = vld [vmem:[%s1 + $0x26c] sm:$0xf]
      %v476 = vld [vmem:[%s1 + $0x270] sm:$0xf]
      %v477 = vld [vmem:[%s1 + $0x274] sm:$0xf]
      %v478 = vld [vmem:[%s1 + $0x278] sm:$0xf]
      %v479 = vld [vmem:[%s1 + $0x27c] sm:$0xf]
      %v480 = vld [vmem:[%s1 + $0x280] sm:$0xf]
      %v481 = vld [vmem:[%s1 + $0x284] sm:$0xf]
      %v482 = vld [vmem:[%s1 + $0x288] sm:$0xf]
      %v483 = vld [vmem:[%s1 + $0x28c] sm:$0xf]
      %v484 = vld [vmem:[%s1 + $0x290] sm:$0xf]
      %v485 = vld [vmem:[%s1 + $0x294] sm:$0xf]
      %v486 = vld [vmem:[%s1 + $0x298] sm:$0xf]
      %v487 = vld [vmem:[%s1 + $0x29c] sm:$0xf]
      %v488 = vld [vmem:[%s1 + $0x2a0] sm:$0xf]
      %v489 = vld [vmem:[%s1 + $0x2a4] sm:$0xf]
      %v490 = vld [vmem:[%s1 + $0x2a8] sm:$0xf]
      %v491 = vld [vmem:[%s1 + $0x2ac] sm:$0xf]
      %v492 = vld [vmem:[%s1 + $0x2b0] sm:$0xf]
      %v493 = vld [vmem:[%s1 + $0x2b4] sm:$0xf]
      %v494 = vld [vmem:[%s1 + $0x2b8] sm:$0xf]
      %v495 = vld [vmem:[%s1 + $0x2bc] sm:$0xf]
      %v496 = vld [vmem:[%s1 + $0x2c0] sm:$0xf]
      %v497 = vld [vmem:[%s1 + $0x2c4] sm:$0xf]
      %v498 = vld [vmem:[%s1 + $0x2c8] sm:$0xf]
      %v499 = vld [vmem:[%s1 + $0x2cc] sm:$0xf]
      %v500 = vld [vmem:[%s1 + $0x2d0] sm:$0xf]
      %v501 = vld [vmem:[%s1 + $0x2d4] sm:$0xf]
      %v502 = vld [vmem:[%s1 + $0x2d8] sm:$0xf]
      %v503 = vld [vmem:[%s1 + $0x2dc] sm:$0xf]
      %v504 = vld [vmem:[%s1 + $0x2e0] sm:$0xf]
      %v505 = vld [vmem:[%s1 + $0x2e4] sm:$0xf]
      %v506 = vld [vmem:[%s1 + $0x2e8] sm:$0xf]
      %v507 = vld [vmem:[%s1 + $0x2ec] sm:$0xf]
      %v508 = vld [vmem:[%s1 + $0x2f0] sm:$0xf]
      %v509 = vld [vmem:[%s1 + $0x2f4] sm:$0xf]
      %v510 = vld [vmem:[%s1 + $0x2f8] sm:$0xf]
      %v511 = vld [vmem:[%s1 + $0x2fc] sm:$0xf]
      %v512 = vld [vmem:[%s1 + $0x300] sm:$0xf]
      %v513 = vld [vmem:[%s1 + $0x304] sm:$0xf]
      %v514 = vld [vmem:[%s1 + $0x308] sm:$0xf]
      %v515 = vld [vmem:[%s1 + $0x30c] sm:$0xf]
      %v516 = vld [vmem:[%s1 + $0x310] sm:$0xf]
      %v517 = vld [vmem:[%s1 + $0x314] sm:$0xf]
      %v518 = vld [vmem:[%s1 + $0x318] sm:$0xf]
      %v519 = vld [vmem:[%s1 + $0x31c] sm:$0xf]
      %v520 = vld [vmem:[%s1 + $0x320] sm:$0xf]
      %v521 = vld [vmem:[%s1 + $0x324] sm:$0xf]
      %v522 = vld [vmem:[%s1 + $0x328] sm:$0xf]
      %v523 = vld [vmem:[%s1 + $0x32c] sm:$0xf]
      %v524 = vld [vmem:[%s1 + $0x330] sm:$0xf]
      %v525 = vld [vmem:[%s1 + $0x334] sm:$0xf]
      %v526 = vld [vmem:[%s1 + $0x338] sm:$0xf]
      %v527 = vld [vmem:[%s1 + $0x33c] sm:$0xf]
      %v528 = vld [vmem:[%s1 + $0x340] sm:$0xf]
      %v529 = vld [vmem:[%s1 + $0x344] sm:$0xf]
      %v530 = vld [vmem:[%s1 + $0x348] sm:$0xf]
      %v531 = vld [vmem:[%s1 + $0x34c] sm:$0xf]
      %v532 = vld [vmem:[%s1 + $0x350] sm:$0xf]
      %v533 = vld [vmem:[%s1 + $0x354] sm:$0xf]
      %v534 = vld [vmem:[%s1 + $0x358] sm:$0xf]
      %v535 = vld [vmem:[%s1 + $0x35c] sm:$0xf]
      %v536 = vld [vmem:[%s1 + $0x360] sm:$0xf]
      %v537 = vld [vmem:[%s1 + $0x364] sm:$0xf]
      %v538 = vld [vmem:[%s1 + $0x368] sm:$0xf]
      %v539 = vld [vmem:[%s1 + $0x36c] sm:$0xf]
      %v540 = vld [vmem:[%s1 + $0x370] sm:$0xf]
      %v541 = vld [vmem:[%s1 + $0x374] sm:$0xf]
      %v542 = vld [vmem:[%s1 + $0x378] sm:$0xf]
      %v543 = vld [vmem:[%s1 + $0x37c] sm:$0xf]
      %v544 = vld [vmem:[%s1 + $0x380] sm:$0xf]
      %v545 = vld [vmem:[%s1 + $0x384] sm:$0xf]
      %v546 = vld [vmem:[%s1 + $0x388] sm:$0xf]
      %v547 = vld [vmem:[%s1 + $0x38c] sm:$0xf]
      %v548 = vld [vmem:[%s1 + $0x390] sm:$0xf]
      %v549 = vld [vmem:[%s1 + $0x394] sm:$0xf]
      %v550 = vld [vmem:[%s1 + $0x398] sm:$0xf]
      %v551 = vld [vmem:[%s1 + $0x39c] sm:$0xf]
      %v552 = vld [vmem:[%s1 + $0x3a0] sm:$0xf]
      %v553 = vld [vmem:[%s1 + $0x3a4] sm:$0xf]
      %v554 = vld [vmem:[%s1 + $0x3a8] sm:$0xf]
      %v555 = vld [vmem:[%s1 + $0x3ac] sm:$0xf]
      %v556 = vld [vmem:[%s1 + $0x3b0] sm:$0xf]
      %v557 = vld [vmem:[%s1 + $0x3b4] sm:$0xf]
      %v558 = vld [vmem:[%s1 + $0x3b8] sm:$0xf]
      %v559 = vld [vmem:[%s1 + $0x3bc] sm:$0xf]
      %v560 = vld [vmem:[%s1 + $0x3c0] sm:$0xf]
      %v561 = vld [vmem:[%s1 + $0x3c4] sm:$0xf]
      %v562 = vld [vmem:[%s1 + $0x3c8] sm:$0xf]
      %v563 = vld [vmem:[%s1 + $0x3cc] sm:$0xf]
      %v564 = vld [vmem:[%s1 + $0x3d0] sm:$0xf]
      %v565 = vld [vmem:[%s1 + $0x3d4] sm:$0xf]
      %v566 = vld [vmem:[%s1 + $0x3d8] sm:$0xf]
      %v567 = vld [vmem:[%s1 + $0x3dc] sm:$0xf]
      %v568 = vld [vmem:[%s1 + $0x3e0] sm:$0xf]
      %v569 = vld [vmem:[%s1 + $0x3e4] sm:$0xf]
      %v570 = vld [vmem:[%s1 + $0x3e8] sm:$0xf]
      %v571 = vld [vmem:[%s1 + $0x3ec] sm:$0xf]
      %v572 = vld [vmem:[%s1 + $0x3f0] sm:$0xf]
      %v573 = vld [vmem:[%s1 + $0x3f4] sm:$0xf]
      %v574 = vld [vmem:[%s1 + $0x3f8] sm:$0xf]
      %v575 = vld [vmem:[%s1 + $0x3fc] sm:$0xf]
      %v576 = vld [vmem:[%s2] sm:$0x1]
      %v578 = vlaneseq
      %v579 = vshrl.u32 %v578, 7
      %v580 = vsub.s32 0, %v579
      %v581 = vrot.slane %v576, %v580
      %v591 = vunpack.c.l.b16 %v312
      %v592 = vunpack.c.h.b16 %v312
      %v593 = vunpack.c.l.b16 %v313
      %v594 = vunpack.c.h.b16 %v313
      %v595 = vunpack.c.l.b16 %v314
      %v596 = vunpack.c.h.b16 %v314
      %v597 = vunpack.c.l.b16 %v315
      %v598 = vunpack.c.h.b16 %v315
      %v599 = vunpack.c.l.b16 %v316
      %v600 = vunpack.c.h.b16 %v316
      %v601 = vunpack.c.l.b16 %v317
      %v602 = vunpack.c.h.b16 %v317
      %v603 = vunpack.c.l.b16 %v318
      %v604 = vunpack.c.h.b16 %v318
      %v605 = vunpack.c.l.b16 %v319
      %v606 = vunpack.c.h.b16 %v319
      %v607 = vpack.c.b16 %v591, %v591
      %v608 = vpack.c.b16 %v592, %v592
      %v609 = vpack.c.b16 %v593, %v593
      %v610 = vpack.c.b16 %v594, %v594
      %v611 = vpack.c.b16 %v595, %v595
      %v612 = vpack.c.b16 %v596, %v596
      %v613 = vpack.c.b16 %v597, %v597
      %v614 = vpack.c.b16 %v598, %v598
      %v615 = vpack.c.b16 %v599, %v599
      %v616 = vpack.c.b16 %v600, %v600
      %v617 = vpack.c.b16 %v601, %v601
      %v618 = vpack.c.b16 %v602, %v602
      %v619 = vpack.c.b16 %v603, %v603
      %v620 = vpack.c.b16 %v604, %v604
      %v621 = vpack.c.b16 %v605, %v605
      %v622 = vpack.c.b16 %v606, %v606
      %v895 = vunpack.c.l.b16 %v320
      %v896 = vunpack.c.l.b16 %v321
      %v897 = vunpack.c.l.b16 %v322
      %v898 = vunpack.c.l.b16 %v323
      %v899 = vunpack.c.l.b16 %v324
      %v900 = vunpack.c.l.b16 %v325
      %v901 = vunpack.c.l.b16 %v326
      %v902 = vunpack.c.l.b16 %v327
      %v903 = vunpack.c.l.b16 %v328
      %v904 = vunpack.c.l.b16 %v329
      %v905 = vunpack.c.l.b16 %v330
      %v906 = vunpack.c.l.b16 %v331
      %v907 = vunpack.c.l.b16 %v332
      %v908 = vunpack.c.l.b16 %v333
      %v909 = vunpack.c.l.b16 %v334
      %v910 = vunpack.c.l.b16 %v335
      %v911 = vunpack.c.l.b16 %v336
      %v912 = vunpack.c.l.b16 %v337
      %v913 = vunpack.c.l.b16 %v338
      %v914 = vunpack.c.l.b16 %v339
      %v915 = vunpack.c.l.b16 %v340
      %v916 = vunpack.c.l.b16 %v341
      %v917 = vunpack.c.l.b16 %v342
      %v918 = vunpack.c.l.b16 %v343
      %v919 = vunpack.c.l.b16 %v344
      %v920 = vunpack.c.l.b16 %v345
      %v921 = vunpack.c.l.b16 %v346
      %v922 = vunpack.c.l.b16 %v347
      %v923 = vunpack.c.l.b16 %v348
      %v924 = vunpack.c.l.b16 %v349
      %v925 = vunpack.c.l.b16 %v350
      %v926 = vunpack.c.l.b16 %v351
      %v927 = vunpack.c.l.b16 %v352
      %v928 = vunpack.c.l.b16 %v353
      %v929 = vunpack.c.l.b16 %v354
      %v930 = vunpack.c.l.b16 %v355
      %v931 = vunpack.c.l.b16 %v356
      %v932 = vunpack.c.l.b16 %v357
      %v933 = vunpack.c.l.b16 %v358
      %v934 = vunpack.c.l.b16 %v359
      %v935 = vunpack.c.l.b16 %v360
      %v936 = vunpack.c.l.b16 %v361
      %v937 = vunpack.c.l.b16 %v362
      %v938 = vunpack.c.l.b16 %v363
      %v939 = vunpack.c.l.b16 %v364
      %v940 = vunpack.c.l.b16 %v365
      %v941 = vunpack.c.l.b16 %v366
      %v942 = vunpack.c.l.b16 %v367
      %v943 = vunpack.c.l.b16 %v368
      %v944 = vunpack.c.l.b16 %v369
      %v945 = vunpack.c.l.b16 %v370
      %v946 = vunpack.c.l.b16 %v371
      %v947 = vunpack.c.l.b16 %v372
      %v948 = vunpack.c.l.b16 %v373
      %v949 = vunpack.c.l.b16 %v374
      %v950 = vunpack.c.l.b16 %v375
      %v951 = vunpack.c.l.b16 %v376
      %v952 = vunpack.c.l.b16 %v377
      %v953 = vunpack.c.l.b16 %v378
      %v954 = vunpack.c.l.b16 %v379
      %v955 = vunpack.c.l.b16 %v380
      %v956 = vunpack.c.l.b16 %v381
      %v957 = vunpack.c.l.b16 %v382
      %v958 = vunpack.c.l.b16 %v383
      %v959 = vunpack.c.l.b16 %v384
      %v960 = vunpack.c.l.b16 %v385
      %v961 = vunpack.c.l.b16 %v386
      %v962 = vunpack.c.l.b16 %v387
      %v963 = vunpack.c.l.b16 %v388
      %v964 = vunpack.c.l.b16 %v389
      %v965 = vunpack.c.l.b16 %v390
      %v966 = vunpack.c.l.b16 %v391
      %v967 = vunpack.c.l.b16 %v392
      %v968 = vunpack.c.l.b16 %v393
      %v969 = vunpack.c.l.b16 %v394
      %v970 = vunpack.c.l.b16 %v395
      %v971 = vunpack.c.l.b16 %v396
      %v972 = vunpack.c.l.b16 %v397
      %v973 = vunpack.c.l.b16 %v398
      %v974 = vunpack.c.l.b16 %v399
      %v975 = vunpack.c.l.b16 %v400
      %v976 = vunpack.c.l.b16 %v401
      %v977 = vunpack.c.l.b16 %v402
      %v978 = vunpack.c.l.b16 %v403
      %v979 = vunpack.c.l.b16 %v404
      %v980 = vunpack.c.l.b16 %v405
      %v981 = vunpack.c.l.b16 %v406
      %v982 = vunpack.c.l.b16 %v407
      %v983 = vunpack.c.l.b16 %v408
      %v984 = vunpack.c.l.b16 %v409
      %v985 = vunpack.c.l.b16 %v410
      %v986 = vunpack.c.l.b16 %v411
      %v987 = vunpack.c.l.b16 %v412
      %v988 = vunpack.c.l.b16 %v413
      %v989 = vunpack.c.l.b16 %v414
      %v990 = vunpack.c.l.b16 %v415
      %v991 = vunpack.c.l.b16 %v416
      %v992 = vunpack.c.l.b16 %v417
      %v993 = vunpack.c.l.b16 %v418
      %v994 = vunpack.c.l.b16 %v419
      %v995 = vunpack.c.l.b16 %v420
      %v996 = vunpack.c.l.b16 %v421
      %v997 = vunpack.c.l.b16 %v422
      %v998 = vunpack.c.l.b16 %v423
      %v999 = vunpack.c.l.b16 %v424
      %v1000 = vunpack.c.l.b16 %v425
      %v1001 = vunpack.c.l.b16 %v426
      %v1002 = vunpack.c.l.b16 %v427
      %v1003 = vunpack.c.l.b16 %v428
      %v1004 = vunpack.c.l.b16 %v429
      %v1005 = vunpack.c.l.b16 %v430
      %v1006 = vunpack.c.l.b16 %v431
      %v1007 = vunpack.c.l.b16 %v432
      %v1008 = vunpack.c.l.b16 %v433
      %v1009 = vunpack.c.l.b16 %v434
      %v1010 = vunpack.c.l.b16 %v435
      %v1011 = vunpack.c.l.b16 %v436
      %v1012 = vunpack.c.l.b16 %v437
      %v1013 = vunpack.c.l.b16 %v438
      %v1014 = vunpack.c.l.b16 %v439
      %v1015 = vunpack.c.l.b16 %v440
      %v1016 = vunpack.c.l.b16 %v441
      %v1017 = vunpack.c.l.b16 %v442
      %v1018 = vunpack.c.l.b16 %v443
      %v1019 = vunpack.c.l.b16 %v444
      %v1020 = vunpack.c.l.b16 %v445
      %v1021 = vunpack.c.l.b16 %v446
      %v1022 = vunpack.c.l.b16 %v447
      %v1023 = vunpack.c.l.b16 %v448
      %v1024 = vunpack.c.l.b16 %v449
      %v1025 = vunpack.c.l.b16 %v450
      %v1026 = vunpack.c.l.b16 %v451
      %v1027 = vunpack.c.l.b16 %v452
      %v1028 = vunpack.c.l.b16 %v453
      %v1029 = vunpack.c.l.b16 %v454
      %v1030 = vunpack.c.l.b16 %v455
      %v1031 = vunpack.c.l.b16 %v456
      %v1032 = vunpack.c.l.b16 %v457
      %v1033 = vunpack.c.l.b16 %v458
      %v1034 = vunpack.c.l.b16 %v459
      %v1035 = vunpack.c.l.b16 %v460
      %v1036 = vunpack.c.l.b16 %v461
      %v1037 = vunpack.c.l.b16 %v462
      %v1038 = vunpack.c.l.b16 %v463
      %v1039 = vunpack.c.l.b16 %v464
      %v1040 = vunpack.c.l.b16 %v465
      %v1041 = vunpack.c.l.b16 %v466
      %v1042 = vunpack.c.l.b16 %v467
      %v1043 = vunpack.c.l.b16 %v468
      %v1044 = vunpack.c.l.b16 %v469
      %v1045 = vunpack.c.l.b16 %v470
      %v1046 = vunpack.c.l.b16 %v471
      %v1047 = vunpack.c.l.b16 %v472
      %v1048 = vunpack.c.l.b16 %v473
      %v1049 = vunpack.c.l.b16 %v474
      %v1050 = vunpack.c.l.b16 %v475
      %v1051 = vunpack.c.l.b16 %v476
      %v1052 = vunpack.c.l.b16 %v477
      %v1053 = vunpack.c.l.b16 %v478
      %v1054 = vunpack.c.l.b16 %v479
      %v1055 = vunpack.c.l.b16 %v480
      %v1056 = vunpack.c.l.b16 %v481
      %v1057 = vunpack.c.l.b16 %v482
      %v1058 = vunpack.c.l.b16 %v483
      %v1059 = vunpack.c.l.b16 %v484
      %v1060 = vunpack.c.l.b16 %v485
      %v1061 = vunpack.c.l.b16 %v486
      %v1062 = vunpack.c.l.b16 %v487
      %v1063 = vunpack.c.l.b16 %v488
      %v1064 = vunpack.c.l.b16 %v489
      %v1065 = vunpack.c.l.b16 %v490
      %v1066 = vunpack.c.l.b16 %v491
      %v1067 = vunpack.c.l.b16 %v492
      %v1068 = vunpack.c.l.b16 %v493
      %v1069 = vunpack.c.l.b16 %v494
      %v1070 = vunpack.c.l.b16 %v495
      %v1071 = vunpack.c.l.b16 %v496
      %v1072 = vunpack.c.l.b16 %v497
      %v1073 = vunpack.c.l.b16 %v498
      %v1074 = vunpack.c.l.b16 %v499
      %v1075 = vunpack.c.l.b16 %v500
      %v1076 = vunpack.c.l.b16 %v501
      %v1077 = vunpack.c.l.b16 %v502
      %v1078 = vunpack.c.l.b16 %v503
      %v1079 = vunpack.c.l.b16 %v504
      %v1080 = vunpack.c.l.b16 %v505
      %v1081 = vunpack.c.l.b16 %v506
      %v1082 = vunpack.c.l.b16 %v507
      %v1083 = vunpack.c.l.b16 %v508
      %v1084 = vunpack.c.l.b16 %v509
      %v1085 = vunpack.c.l.b16 %v510
      %v1086 = vunpack.c.l.b16 %v511
      %v1087 = vunpack.c.l.b16 %v512
      %v1088 = vunpack.c.l.b16 %v513
      %v1089 = vunpack.c.l.b16 %v514
      %v1090 = vunpack.c.l.b16 %v515
      %v1091 = vunpack.c.l.b16 %v516
      %v1092 = vunpack.c.l.b16 %v517
      %v1093 = vunpack.c.l.b16 %v518
      %v1094 = vunpack.c.l.b16 %v519
      %v1095 = vunpack.c.l.b16 %v520
      %v1096 = vunpack.c.l.b16 %v521
      %v1097 = vunpack.c.l.b16 %v522
      %v1098 = vunpack.c.l.b16 %v523
      %v1099 = vunpack.c.l.b16 %v524
      %v1100 = vunpack.c.l.b16 %v525
      %v1101 = vunpack.c.l.b16 %v526
      %v1102 = vunpack.c.l.b16 %v527
      %v1103 = vunpack.c.l.b16 %v528
      %v1104 = vunpack.c.l.b16 %v529
      %v1105 = vunpack.c.l.b16 %v530
      %v1106 = vunpack.c.l.b16 %v531
      %v1107 = vunpack.c.l.b16 %v532
      %v1108 = vunpack.c.l.b16 %v533
      %v1109 = vunpack.c.l.b16 %v534
      %v1110 = vunpack.c.l.b16 %v535
      %v1111 = vunpack.c.l.b16 %v536
      %v1112 = vunpack.c.l.b16 %v537
      %v1113 = vunpack.c.l.b16 %v538
      %v1114 = vunpack.c.l.b16 %v539
      %v1115 = vunpack.c.l.b16 %v540
      %v1116 = vunpack.c.l.b16 %v541
      %v1117 = vunpack.c.l.b16 %v542
      %v1118 = vunpack.c.l.b16 %v543
      %v1119 = vunpack.c.l.b16 %v544
      %v1120 = vunpack.c.l.b16 %v545
      %v1121 = vunpack.c.l.b16 %v546
      %v1122 = vunpack.c.l.b16 %v547
      %v1123 = vunpack.c.l.b16 %v548
      %v1124 = vunpack.c.l.b16 %v549
      %v1125 = vunpack.c.l.b16 %v550
      %v1126 = vunpack.c.l.b16 %v551
      %v1127 = vunpack.c.l.b16 %v552
      %v1128 = vunpack.c.l.b16 %v553
      %v1129 = vunpack.c.l.b16 %v554
      %v1130 = vunpack.c.l.b16 %v555
      %v1131 = vunpack.c.l.b16 %v556
      %v1132 = vunpack.c.l.b16 %v557
      %v1133 = vunpack.c.l.b16 %v558
      %v1134 = vunpack.c.l.b16 %v559
      %v1135 = vunpack.c.l.b16 %v560
      %v1136 = vunpack.c.l.b16 %v561
      %v1137 = vunpack.c.l.b16 %v562
      %v1138 = vunpack.c.l.b16 %v563
      %v1139 = vunpack.c.l.b16 %v564
      %v1140 = vunpack.c.l.b16 %v565
      %v1141 = vunpack.c.l.b16 %v566
      %v1142 = vunpack.c.l.b16 %v567
      %v1143 = vunpack.c.l.b16 %v568
      %v1144 = vunpack.c.l.b16 %v569
      %v1145 = vunpack.c.l.b16 %v570
      %v1146 = vunpack.c.l.b16 %v571
      %v1147 = vunpack.c.l.b16 %v572
      %v1148 = vunpack.c.l.b16 %v573
      %v1149 = vunpack.c.l.b16 %v574
      %v1150 = vunpack.c.l.b16 %v575
      %v1151 = vpack.c.b16 %v896, %v895
      %v1152 = vpack.c.b16 %v898, %v897
      %v1153 = vpack.c.b16 %v900, %v899
      %v1154 = vpack.c.b16 %v902, %v901
      %v1155 = vpack.c.b16 %v904, %v903
      %v1156 = vpack.c.b16 %v906, %v905
      %v1157 = vpack.c.b16 %v908, %v907
      %v1158 = vpack.c.b16 %v910, %v909
      %v1159 = vpack.c.b16 %v912, %v911
      %v1160 = vpack.c.b16 %v914, %v913
      %v1161 = vpack.c.b16 %v916, %v915
      %v1162 = vpack.c.b16 %v918, %v917
      %v1163 = vpack.c.b16 %v920, %v919
      %v1164 = vpack.c.b16 %v922, %v921
      %v1165 = vpack.c.b16 %v924, %v923
      %v1166 = vpack.c.b16 %v926, %v925
      %v1167 = vpack.c.b16 %v928, %v927
      %v1168 = vpack.c.b16 %v930, %v929
      %v1169 = vpack.c.b16 %v932, %v931
      %v1170 = vpack.c.b16 %v934, %v933
      %v1171 = vpack.c.b16 %v936, %v935
      %v1172 = vpack.c.b16 %v938, %v937
      %v1173 = vpack.c.b16 %v940, %v939
      %v1174 = vpack.c.b16 %v942, %v941
      %v1175 = vpack.c.b16 %v944, %v943
      %v1176 = vpack.c.b16 %v946, %v945
      %v1177 = vpack.c.b16 %v948, %v947
      %v1178 = vpack.c.b16 %v950, %v949
      %v1179 = vpack.c.b16 %v952, %v951
      %v1180 = vpack.c.b16 %v954, %v953
      %v1181 = vpack.c.b16 %v956, %v955
      %v1182 = vpack.c.b16 %v958, %v957
      %v1183 = vpack.c.b16 %v960, %v959
      %v1184 = vpack.c.b16 %v962, %v961
      %v1185 = vpack.c.b16 %v964, %v963
      %v1186 = vpack.c.b16 %v966, %v965
      %v1187 = vpack.c.b16 %v968, %v967
      %v1188 = vpack.c.b16 %v970, %v969
      %v1189 = vpack.c.b16 %v972, %v971
      %v1190 = vpack.c.b16 %v974, %v973
      %v1191 = vpack.c.b16 %v976, %v975
      %v1192 = vpack.c.b16 %v978, %v977
      %v1193 = vpack.c.b16 %v980, %v979
      %v1194 = vpack.c.b16 %v982, %v981
      %v1195 = vpack.c.b16 %v984, %v983
      %v1196 = vpack.c.b16 %v986, %v985
      %v1197 = vpack.c.b16 %v988, %v987
      %v1198 = vpack.c.b16 %v990, %v989
      %v1199 = vpack.c.b16 %v992, %v991
      %v1200 = vpack.c.b16 %v994, %v993
      %v1201 = vpack.c.b16 %v996, %v995
      %v1202 = vpack.c.b16 %v998, %v997
      %v1203 = vpack.c.b16 %v1000, %v999
      %v1204 = vpack.c.b16 %v1002, %v1001
      %v1205 = vpack.c.b16 %v1004, %v1003
      %v1206 = vpack.c.b16 %v1006, %v1005
      %v1207 = vpack.c.b16 %v1008, %v1007
      %v1208 = vpack.c.b16 %v1010, %v1009
      %v1209 = vpack.c.b16 %v1012, %v1011
      %v1210 = vpack.c.b16 %v1014, %v1013
      %v1211 = vpack.c.b16 %v1016, %v1015
      %v1212 = vpack.c.b16 %v1018, %v1017
      %v1213 = vpack.c.b16 %v1020, %v1019
      %v1214 = vpack.c.b16 %v1022, %v1021
      %v1215 = vpack.c.b16 %v1024, %v1023
      %v1216 = vpack.c.b16 %v1026, %v1025
      %v1217 = vpack.c.b16 %v1028, %v1027
      %v1218 = vpack.c.b16 %v1030, %v1029
      %v1219 = vpack.c.b16 %v1032, %v1031
      %v1220 = vpack.c.b16 %v1034, %v1033
      %v1221 = vpack.c.b16 %v1036, %v1035
      %v1222 = vpack.c.b16 %v1038, %v1037
      %v1223 = vpack.c.b16 %v1040, %v1039
      %v1224 = vpack.c.b16 %v1042, %v1041
      %v1225 = vpack.c.b16 %v1044, %v1043
      %v1226 = vpack.c.b16 %v1046, %v1045
      %v1227 = vpack.c.b16 %v1048, %v1047
      %v1228 = vpack.c.b16 %v1050, %v1049
      %v1229 = vpack.c.b16 %v1052, %v1051
      %v1230 = vpack.c.b16 %v1054, %v1053
      %v1231 = vpack.c.b16 %v1056, %v1055
      %v1232 = vpack.c.b16 %v1058, %v1057
      %v1233 = vpack.c.b16 %v1060, %v1059
      %v1234 = vpack.c.b16 %v1062, %v1061
      %v1235 = vpack.c.b16 %v1064, %v1063
      %v1236 = vpack.c.b16 %v1066, %v1065
      %v1237 = vpack.c.b16 %v1068, %v1067
      %v1238 = vpack.c.b16 %v1070, %v1069
      %v1239 = vpack.c.b16 %v1072, %v1071
      %v1240 = vpack.c.b16 %v1074, %v1073
      %v1241 = vpack.c.b16 %v1076, %v1075
      %v1242 = vpack.c.b16 %v1078, %v1077
      %v1243 = vpack.c.b16 %v1080, %v1079
      %v1244 = vpack.c.b16 %v1082, %v1081
      %v1245 = vpack.c.b16 %v1084, %v1083
      %v1246 = vpack.c.b16 %v1086, %v1085
      %v1247 = vpack.c.b16 %v1088, %v1087
      %v1248 = vpack.c.b16 %v1090, %v1089
      %v1249 = vpack.c.b16 %v1092, %v1091
      %v1250 = vpack.c.b16 %v1094, %v1093
      %v1251 = vpack.c.b16 %v1096, %v1095
      %v1252 = vpack.c.b16 %v1098, %v1097
      %v1253 = vpack.c.b16 %v1100, %v1099
      %v1254 = vpack.c.b16 %v1102, %v1101
      %v1255 = vpack.c.b16 %v1104, %v1103
      %v1256 = vpack.c.b16 %v1106, %v1105
      %v1257 = vpack.c.b16 %v1108, %v1107
      %v1258 = vpack.c.b16 %v1110, %v1109
      %v1259 = vpack.c.b16 %v1112, %v1111
      %v1260 = vpack.c.b16 %v1114, %v1113
      %v1261 = vpack.c.b16 %v1116, %v1115
      %v1262 = vpack.c.b16 %v1118, %v1117
      %v1263 = vpack.c.b16 %v1120, %v1119
      %v1264 = vpack.c.b16 %v1122, %v1121
      %v1265 = vpack.c.b16 %v1124, %v1123
      %v1266 = vpack.c.b16 %v1126, %v1125
      %v1267 = vpack.c.b16 %v1128, %v1127
      %v1268 = vpack.c.b16 %v1130, %v1129
      %v1269 = vpack.c.b16 %v1132, %v1131
      %v1270 = vpack.c.b16 %v1134, %v1133
      %v1271 = vpack.c.b16 %v1136, %v1135
      %v1272 = vpack.c.b16 %v1138, %v1137
      %v1273 = vpack.c.b16 %v1140, %v1139
      %v1274 = vpack.c.b16 %v1142, %v1141
      %v1275 = vpack.c.b16 %v1144, %v1143
      %v1276 = vpack.c.b16 %v1146, %v1145
      %v1277 = vpack.c.b16 %v1148, %v1147
      %v1278 = vpack.c.b16 %v1150, %v1149
      %1407 = vmatprep.subr.bf16.mxu0 0
      %1408 = vmatpush1.bf16.msra.mxu0 %v1151
      %1409 = vmatprep.subr.bf16.mxu0 0
      %1410 = vmatpush1.bf16.msra.mxu0 %v1152
      %1411 = vmatprep.subr.bf16.mxu0 0
      %1412 = vmatpush1.bf16.msra.mxu0 %v1153
      %1413 = vmatprep.subr.bf16.mxu0 0
      %1414 = vmatpush1.bf16.msra.mxu0 %v1154
      %1415 = vmatprep.subr.bf16.mxu0 0
      %1416 = vmatpush1.bf16.msra.mxu0 %v1155
      %1417 = vmatprep.subr.bf16.mxu0 0
      %1418 = vmatpush1.bf16.msra.mxu0 %v1156
      %1419 = vmatprep.subr.bf16.mxu0 0
      %1420 = vmatpush1.bf16.msra.mxu0 %v1157
      %1421 = vmatprep.subr.bf16.mxu0 0
      %1422 = vmatpush1.bf16.msra.mxu0 %v1158
      %1423 = vmatprep.subr.bf16.mxu0 0
      %1424 = vmatpush1.bf16.msra.mxu0 %v1159
      %1425 = vmatprep.subr.bf16.mxu0 0
      %1426 = vmatpush1.bf16.msra.mxu0 %v1160
      %1427 = vmatprep.subr.bf16.mxu0 0
      %1428 = vmatpush1.bf16.msra.mxu0 %v1161
      %1429 = vmatprep.subr.bf16.mxu0 0
      %1430 = vmatpush1.bf16.msra.mxu0 %v1162
      %1431 = vmatprep.subr.bf16.mxu0 0
      %1432 = vmatpush1.bf16.msra.mxu0 %v1163
      %1433 = vmatprep.subr.bf16.mxu0 0
      %1434 = vmatpush1.bf16.msra.mxu0 %v1164
      %1435 = vmatprep.subr.bf16.mxu0 0
      %1436 = vmatpush1.bf16.msra.mxu0 %v1165
      %1437 = vmatprep.subr.bf16.mxu0 0
      %1438 = vmatpush1.bf16.msra.mxu0 %v1166
      %1439 = vmatprep.mubr.bf16.mxu0 %v608
      %1440 = vmatmul.mubr.bf16.gmra.mrb[0].mxu0 %v607
      %v1441 = vpop.f32.mrb[0].mxu0
      %v1442 = vadd.f32 %v581, %v1441
      %v1443 = vpop.f32.mrb[0].mxu0
      %v1444 = vpop.f32.mrb[0].mxu0
      %v1445 = vpop.f32.mrb[0].mxu0
      %1446 = vdwg.mxu0
      %1447 = vmatprep.subr.bf16.mxu0 0
      %1448 = vmatpush1.bf16.msra.mxu0 %v1167
      %1449 = vmatprep.subr.bf16.mxu0 0
      %1450 = vmatpush1.bf16.msra.mxu0 %v1168
      %1451 = vmatprep.subr.bf16.mxu0 0
      %1452 = vmatpush1.bf16.msra.mxu0 %v1169
      %1453 = vmatprep.subr.bf16.mxu0 0
      %1454 = vmatpush1.bf16.msra.mxu0 %v1170
      %1455 = vmatprep.subr.bf16.mxu0 0
      %1456 = vmatpush1.bf16.msra.mxu0 %v1171
      %1457 = vmatprep.subr.bf16.mxu0 0
      %1458 = vmatpush1.bf16.msra.mxu0 %v1172
      %1459 = vmatprep.subr.bf16.mxu0 0
      %1460 = vmatpush1.bf16.msra.mxu0 %v1173
      %1461 = vmatprep.subr.bf16.mxu0 0
      %1462 = vmatpush1.bf16.msra.mxu0 %v1174
      %1463 = vmatprep.subr.bf16.mxu0 0
      %1464 = vmatpush1.bf16.msra.mxu0 %v1175
      %1465 = vmatprep.subr.bf16.mxu0 0
      %1466 = vmatpush1.bf16.msra.mxu0 %v1176
      %1467 = vmatprep.subr.bf16.mxu0 0
      %1468 = vmatpush1.bf16.msra.mxu0 %v1177
      %1469 = vmatprep.subr.bf16.mxu0 0
      %1470 = vmatpush1.bf16.msra.mxu0 %v1178
      %1471 = vmatprep.subr.bf16.mxu0 0
      %1472 = vmatpush1.bf16.msra.mxu0 %v1179
      %1473 = vmatprep.subr.bf16.mxu0 0
      %1474 = vmatpush1.bf16.msra.mxu0 %v1180
      %1475 = vmatprep.subr.bf16.mxu0 0
      %1476 = vmatpush1.bf16.msra.mxu0 %v1181
      %1477 = vmatprep.subr.bf16.mxu0 0
      %1478 = vmatpush1.bf16.msra.mxu0 %v1182
      %1479 = vmatprep.mubr.bf16.mxu0 %v610
      %1480 = vmatmul.mubr.bf16.gmra.mrb[0].mxu0 %v609
      %v1481 = vpop.f32.mrb[0].mxu0
      %v1482 = vadd.f32 %v1442, %v1481
      %v1483 = vpop.f32.mrb[0].mxu0
      %v1484 = vpop.f32.mrb[0].mxu0
      %v1485 = vpop.f32.mrb[0].mxu0
      %1486 = vdwg.mxu0
      %1487 = vmatprep.subr.bf16.mxu0 0
      %1488 = vmatpush1.bf16.msra.mxu0 %v1183
      %1489 = vmatprep.subr.bf16.mxu0 0
      %1490 = vmatpush1.bf16.msra.mxu0 %v1184
      %1491 = vmatprep.subr.bf16.mxu0 0
      %1492 = vmatpush1.bf16.msra.mxu0 %v1185
      %1493 = vmatprep.subr.bf16.mxu0 0
      %1494 = vmatpush1.bf16.msra.mxu0 %v1186
      %1495 = vmatprep.subr.bf16.mxu0 0
      %1496 = vmatpush1.bf16.msra.mxu0 %v1187
      %1497 = vmatprep.subr.bf16.mxu0 0
      %1498 = vmatpush1.bf16.msra.mxu0 %v1188
      %1499 = vmatprep.subr.bf16.mxu0 0
      %1500 = vmatpush1.bf16.msra.mxu0 %v1189
      %1501 = vmatprep.subr.bf16.mxu0 0
      %1502 = vmatpush1.bf16.msra.mxu0 %v1190
      %1503 = vmatprep.subr.bf16.mxu0 0
      %1504 = vmatpush1.bf16.msra.mxu0 %v1191
      %1505 = vmatprep.subr.bf16.mxu0 0
      %1506 = vmatpush1.bf16.msra.mxu0 %v1192
      %1507 = vmatprep.subr.bf16.mxu0 0
      %1508 = vmatpush1.bf16.msra.mxu0 %v1193
      %1509 = vmatprep.subr.bf16.mxu0 0
      %1510 = vmatpush1.bf16.msra.mxu0 %v1194
      %1511 = vmatprep.subr.bf16.mxu0 0
      %1512 = vmatpush1.bf16.msra.mxu0 %v1195
      %1513 = vmatprep.subr.bf16.mxu0 0
      %1514 = vmatpush1.bf16.msra.mxu0 %v1196
      %1515 = vmatprep.subr.bf16.mxu0 0
      %1516 = vmatpush1.bf16.msra.mxu0 %v1197
      %1517 = vmatprep.subr.bf16.mxu0 0
      %1518 = vmatpush1.bf16.msra.mxu0 %v1198
      %1519 = vmatprep.mubr.bf16.mxu0 %v612
      %1520 = vmatmul.mubr.bf16.gmra.mrb[0].mxu0 %v611
      %v1521 = vpop.f32.mrb[0].mxu0
      %v1522 = vadd.f32 %v1482, %v1521
      %v1523 = vpop.f32.mrb[0].mxu0
      %v1524 = vpop.f32.mrb[0].mxu0
      %v1525 = vpop.f32.mrb[0].mxu0
      %1526 = vdwg.mxu0
      %1527 = vmatprep.subr.bf16.mxu0 0
      %1528 = vmatpush1.bf16.msra.mxu0 %v1199
      %1529 = vmatprep.subr.bf16.mxu0 0
      %1530 = vmatpush1.bf16.msra.mxu0 %v1200
      %1531 = vmatprep.subr.bf16.mxu0 0
      %1532 = vmatpush1.bf16.msra.mxu0 %v1201
      %1533 = vmatprep.subr.bf16.mxu0 0
      %1534 = vmatpush1.bf16.msra.mxu0 %v1202
      %1535 = vmatprep.subr.bf16.mxu0 0
      %1536 = vmatpush1.bf16.msra.mxu0 %v1203
      %1537 = vmatprep.subr.bf16.mxu0 0
      %1538 = vmatpush1.bf16.msra.mxu0 %v1204
      %1539 = vmatprep.subr.bf16.mxu0 0
      %1540 = vmatpush1.bf16.msra.mxu0 %v1205
      %1541 = vmatprep.subr.bf16.mxu0 0
      %1542 = vmatpush1.bf16.msra.mxu0 %v1206
      %1543 = vmatprep.subr.bf16.mxu0 0
      %1544 = vmatpush1.bf16.msra.mxu0 %v1207
      %1545 = vmatprep.subr.bf16.mxu0 0
      %1546 = vmatpush1.bf16.msra.mxu0 %v1208
      %1547 = vmatprep.subr.bf16.mxu0 0
      %1548 = vmatpush1.bf16.msra.mxu0 %v1209
      %1549 = vmatprep.subr.bf16.mxu0 0
      %1550 = vmatpush1.bf16.msra.mxu0 %v1210
      %1551 = vmatprep.subr.bf16.mxu0 0
      %1552 = vmatpush1.bf16.msra.mxu0 %v1211
      %1553 = vmatprep.subr.bf16.mxu0 0
      %1554 = vmatpush1.bf16.msra.mxu0 %v1212
      %1555 = vmatprep.subr.bf16.mxu0 0
      %1556 = vmatpush1.bf16.msra.mxu0 %v1213
      %1557 = vmatprep.subr.bf16.mxu0 0
      %1558 = vmatpush1.bf16.msra.mxu0 %v1214
      %1559 = vmatprep.mubr.bf16.mxu0 %v614
      %1560 = vmatmul.mubr.bf16.gmra.mrb[0].mxu0 %v613
      %v1561 = vpop.f32.mrb[0].mxu0
      %v1562 = vadd.f32 %v1522, %v1561
      %v1563 = vpop.f32.mrb[0].mxu0
      %v1564 = vpop.f32.mrb[0].mxu0
      %v1565 = vpop.f32.mrb[0].mxu0
      %1566 = vdwg.mxu0
      %1567 = vmatprep.subr.bf16.mxu0 0
      %1568 = vmatpush1.bf16.msra.mxu0 %v1215
      %1569 = vmatprep.subr.bf16.mxu0 0
      %1570 = vmatpush1.bf16.msra.mxu0 %v1216
      %1571 = vmatprep.subr.bf16.mxu0 0
      %1572 = vmatpush1.bf16.msra.mxu0 %v1217
      %1573 = vmatprep.subr.bf16.mxu0 0
      %1574 = vmatpush1.bf16.msra.mxu0 %v1218
      %1575 = vmatprep.subr.bf16.mxu0 0
      %1576 = vmatpush1.bf16.msra.mxu0 %v1219
      %1577 = vmatprep.subr.bf16.mxu0 0
      %1578 = vmatpush1.bf16.msra.mxu0 %v1220
      %1579 = vmatprep.subr.bf16.mxu0 0
      %1580 = vmatpush1.bf16.msra.mxu0 %v1221
      %1581 = vmatprep.subr.bf16.mxu0 0
      %1582 = vmatpush1.bf16.msra.mxu0 %v1222
      %1583 = vmatprep.subr.bf16.mxu0 0
      %1584 = vmatpush1.bf16.msra.mxu0 %v1223
      %1585 = vmatprep.subr.bf16.mxu0 0
      %1586 = vmatpush1.bf16.msra.mxu0 %v1224
      %1587 = vmatprep.subr.bf16.mxu0 0
      %1588 = vmatpush1.bf16.msra.mxu0 %v1225
      %1589 = vmatprep.subr.bf16.mxu0 0
      %1590 = vmatpush1.bf16.msra.mxu0 %v1226
      %1591 = vmatprep.subr.bf16.mxu0 0
      %1592 = vmatpush1.bf16.msra.mxu0 %v1227
      %1593 = vmatprep.subr.bf16.mxu0 0
      %1594 = vmatpush1.bf16.msra.mxu0 %v1228
      %1595 = vmatprep.subr.bf16.mxu0 0
      %1596 = vmatpush1.bf16.msra.mxu0 %v1229
      %1597 = vmatprep.subr.bf16.mxu0 0
      %1598 = vmatpush1.bf16.msra.mxu0 %v1230
      %1599 = vmatprep.mubr.bf16.mxu0 %v616
      %1600 = vmatmul.mubr.bf16.gmra.mrb[0].mxu0 %v615
      %v1601 = vpop.f32.mrb[0].mxu0
      %v1602 = vadd.f32 %v1562, %v1601
      %v1603 = vpop.f32.mrb[0].mxu0
      %v1604 = vpop.f32.mrb[0].mxu0
      %v1605 = vpop.f32.mrb[0].mxu0
      %1606 = vdwg.mxu0
      %1607 = vmatprep.subr.bf16.mxu0 0
      %1608 = vmatpush1.bf16.msra.mxu0 %v1231
      %1609 = vmatprep.subr.bf16.mxu0 0
      %1610 = vmatpush1.bf16.msra.mxu0 %v1232
      %1611 = vmatprep.subr.bf16.mxu0 0
      %1612 = vmatpush1.bf16.msra.mxu0 %v1233
      %1613 = vmatprep.subr.bf16.mxu0 0
      %1614 = vmatpush1.bf16.msra.mxu0 %v1234
      %1615 = vmatprep.subr.bf16.mxu0 0
      %1616 = vmatpush1.bf16.msra.mxu0 %v1235
      %1617 = vmatprep.subr.bf16.mxu0 0
      %1618 = vmatpush1.bf16.msra.mxu0 %v1236
      %1619 = vmatprep.subr.bf16.mxu0 0
      %1620 = vmatpush1.bf16.msra.mxu0 %v1237
      %1621 = vmatprep.subr.bf16.mxu0 0
      %1622 = vmatpush1.bf16.msra.mxu0 %v1238
      %1623 = vmatprep.subr.bf16.mxu0 0
      %1624 = vmatpush1.bf16.msra.mxu0 %v1239
      %1625 = vmatprep.subr.bf16.mxu0 0
      %1626 = vmatpush1.bf16.msra.mxu0 %v1240
      %1627 = vmatprep.subr.bf16.mxu0 0
      %1628 = vmatpush1.bf16.msra.mxu0 %v1241
      %1629 = vmatprep.subr.bf16.mxu0 0
      %1630 = vmatpush1.bf16.msra.mxu0 %v1242
      %1631 = vmatprep.subr.bf16.mxu0 0
      %1632 = vmatpush1.bf16.msra.mxu0 %v1243
      %1633 = vmatprep.subr.bf16.mxu0 0
      %1634 = vmatpush1.bf16.msra.mxu0 %v1244
      %1635 = vmatprep.subr.bf16.mxu0 0
      %1636 = vmatpush1.bf16.msra.mxu0 %v1245
      %1637 = vmatprep.subr.bf16.mxu0 0
      %1638 = vmatpush1.bf16.msra.mxu0 %v1246
      %1639 = vmatprep.mubr.bf16.mxu0 %v618
      %1640 = vmatmul.mubr.bf16.gmra.mrb[0].mxu0 %v617
      %v1641 = vpop.f32.mrb[0].mxu0
      %v1642 = vadd.f32 %v1602, %v1641
      %v1643 = vpop.f32.mrb[0].mxu0
      %v1644 = vpop.f32.mrb[0].mxu0
      %v1645 = vpop.f32.mrb[0].mxu0
      %1646 = vdwg.mxu0
      %1647 = vmatprep.subr.bf16.mxu0 0
      %1648 = vmatpush1.bf16.msra.mxu0 %v1247
      %1649 = vmatprep.subr.bf16.mxu0 0
      %1650 = vmatpush1.bf16.msra.mxu0 %v1248
      %1651 = vmatprep.subr.bf16.mxu0 0
      %1652 = vmatpush1.bf16.msra.mxu0 %v1249
      %1653 = vmatprep.subr.bf16.mxu0 0
      %1654 = vmatpush1.bf16.msra.mxu0 %v1250
      %1655 = vmatprep.subr.bf16.mxu0 0
      %1656 = vmatpush1.bf16.msra.mxu0 %v1251
      %1657 = vmatprep.subr.bf16.mxu0 0
      %1658 = vmatpush1.bf16.msra.mxu0 %v1252
      %1659 = vmatprep.subr.bf16.mxu0 0
      %1660 = vmatpush1.bf16.msra.mxu0 %v1253
      %1661 = vmatprep.subr.bf16.mxu0 0
      %1662 = vmatpush1.bf16.msra.mxu0 %v1254
      %1663 = vmatprep.subr.bf16.mxu0 0
      %1664 = vmatpush1.bf16.msra.mxu0 %v1255
      %1665 = vmatprep.subr.bf16.mxu0 0
      %1666 = vmatpush1.bf16.msra.mxu0 %v1256
      %1667 = vmatprep.subr.bf16.mxu0 0
      %1668 = vmatpush1.bf16.msra.mxu0 %v1257
      %1669 = vmatprep.subr.bf16.mxu0 0
      %1670 = vmatpush1.bf16.msra.mxu0 %v1258
      %1671 = vmatprep.subr.bf16.mxu0 0
      %1672 = vmatpush1.bf16.msra.mxu0 %v1259
      %1673 = vmatprep.subr.bf16.mxu0 0
      %1674 = vmatpush1.bf16.msra.mxu0 %v1260
      %1675 = vmatprep.subr.bf16.mxu0 0
      %1676 = vmatpush1.bf16.msra.mxu0 %v1261
      %1677 = vmatprep.subr.bf16.mxu0 0
      %1678 = vmatpush1.bf16.msra.mxu0 %v1262
      %1679 = vmatprep.mubr.bf16.mxu0 %v620
      %1680 = vmatmul.mubr.bf16.gmra.mrb[0].mxu0 %v619
      %v1681 = vpop.f32.mrb[0].mxu0
      %v1682 = vadd.f32 %v1642, %v1681
      %v1683 = vpop.f32.mrb[0].mxu0
      %v1684 = vpop.f32.mrb[0].mxu0
      %v1685 = vpop.f32.mrb[0].mxu0
      %1686 = vdwg.mxu0
      %1687 = vmatprep.subr.bf16.mxu0 0
      %1688 = vmatpush1.bf16.msra.mxu0 %v1263
      %1689 = vmatprep.subr.bf16.mxu0 0
      %1690 = vmatpush1.bf16.msra.mxu0 %v1264
      %1691 = vmatprep.subr.bf16.mxu0 0
      %1692 = vmatpush1.bf16.msra.mxu0 %v1265
      %1693 = vmatprep.subr.bf16.mxu0 0
      %1694 = vmatpush1.bf16.msra.mxu0 %v1266
      %1695 = vmatprep.subr.bf16.mxu0 0
      %1696 = vmatpush1.bf16.msra.mxu0 %v1267
      %1697 = vmatprep.subr.bf16.mxu0 0
      %1698 = vmatpush1.bf16.msra.mxu0 %v1268
      %1699 = vmatprep.subr.bf16.mxu0 0
      %1700 = vmatpush1.bf16.msra.mxu0 %v1269
      %1701 = vmatprep.subr.bf16.mxu0 0
      %1702 = vmatpush1.bf16.msra.mxu0 %v1270
      %1703 = vmatprep.subr.bf16.mxu0 0
      %1704 = vmatpush1.bf16.msra.mxu0 %v1271
      %1705 = vmatprep.subr.bf16.mxu0 0
      %1706 = vmatpush1.bf16.msra.mxu0 %v1272
      %1707 = vmatprep.subr.bf16.mxu0 0
      %1708 = vmatpush1.bf16.msra.mxu0 %v1273
      %1709 = vmatprep.subr.bf16.mxu0 0
      %1710 = vmatpush1.bf16.msra.mxu0 %v1274
      %1711 = vmatprep.subr.bf16.mxu0 0
      %1712 = vmatpush1.bf16.msra.mxu0 %v1275
      %1713 = vmatprep.subr.bf16.mxu0 0
      %1714 = vmatpush1.bf16.msra.mxu0 %v1276
      %1715 = vmatprep.subr.bf16.mxu0 0
      %1716 = vmatpush1.bf16.msra.mxu0 %v1277
      %1717 = vmatprep.subr.bf16.mxu0 0
      %1718 = vmatpush1.bf16.msra.mxu0 %v1278
      %1719 = vmatprep.mubr.bf16.mxu0 %v622
      %1720 = vmatmul.mubr.bf16.gmra.mrb[0].mxu0 %v621
      %v1721 = vpop.f32.mrb[0].mxu0
      %v1722 = vadd.f32 %v1682, %v1721
      %v1723 = vpop.f32.mrb[0].mxu0
      %v1724 = vpop.f32.mrb[0].mxu0
      %v1725 = vpop.f32.mrb[0].mxu0
      %1726 = vdwg.mxu0
      %v1727 = vmax.f32 %v1722, 0.0
      %v1728 = vpack.c.bf16 %v1727, %v1727
      %v1729 = vld [vmem:[%s274] sm:$0xff]
      %v1730 = vld [vmem:[%s274 + $0x8] sm:$0xff]
      %v1731 = vld [vmem:[%s274 + $0x10] sm:$0xff]
      %v1732 = vld [vmem:[%s274 + $0x18] sm:$0xff]
      %v1733 = vld [vmem:[%s274 + $0x20] sm:$0xff]
      %v1734 = vld [vmem:[%s274 + $0x28] sm:$0xff]
      %v1735 = vld [vmem:[%s274 + $0x30] sm:$0xff]
      %v1736 = vld [vmem:[%s274 + $0x38] sm:$0xff]
      %v1737 = vld [vmem:[%s274 + $0x40] sm:$0xff]
      %v1738 = vld [vmem:[%s274 + $0x48] sm:$0xff]
      %v1739 = vld [vmem:[%s274 + $0x50] sm:$0xff]
      %v1740 = vld [vmem:[%s274 + $0x58] sm:$0xff]
      %v1741 = vld [vmem:[%s274 + $0x60] sm:$0xff]
      %v1742 = vld [vmem:[%s274 + $0x68] sm:$0xff]
      %v1743 = vld [vmem:[%s274 + $0x70] sm:$0xff]
      %v1744 = vld [vmem:[%s274 + $0x78] sm:$0xff]
      %v1745 = vld [vmem:[%s274 + $0x80] sm:$0xff]
      %v1746 = vld [vmem:[%s274 + $0x88] sm:$0xff]
      %v1747 = vld [vmem:[%s274 + $0x90] sm:$0xff]
      %v1748 = vld [vmem:[%s274 + $0x98] sm:$0xff]
      %v1749 = vld [vmem:[%s274 + $0xa0] sm:$0xff]
      %v1750 = vld [vmem:[%s274 + $0xa8] sm:$0xff]
      %v1751 = vld [vmem:[%s274 + $0xb0] sm:$0xff]
      %v1752 = vld [vmem:[%s274 + $0xb8] sm:$0xff]
      %v1753 = vld [vmem:[%s274 + $0xc0] sm:$0xff]
      %v1754 = vld [vmem:[%s274 + $0xc8] sm:$0xff]
      %v1755 = vld [vmem:[%s274 + $0xd0] sm:$0xff]
      %v1756 = vld [vmem:[%s274 + $0xd8] sm:$0xff]
      %v1757 = vld [vmem:[%s274 + $0xe0] sm:$0xff]
      %v1758 = vld [vmem:[%s274 + $0xe8] sm:$0xff]
      %v1759 = vld [vmem:[%s274 + $0xf0] sm:$0xff]
      %v1760 = vld [vmem:[%s274 + $0xf8] sm:$0xff]
      %s1761 = scalar_lea.vmem %s267, 64
      %v1762 = vld [vmem:[%s1761] sm:$0xff]
      %v1763 = vld [vmem:[%s1761 + $0x8] sm:$0xff]
      %v1764 = vld [vmem:[%s1761 + $0x10] sm:$0xff]
      %v1765 = vld [vmem:[%s1761 + $0x18] sm:$0xff]
      %v1766 = vld [vmem:[%s1761 + $0x20] sm:$0xff]
      %v1767 = vld [vmem:[%s1761 + $0x28] sm:$0xff]
      %v1768 = vld [vmem:[%s1761 + $0x30] sm:$0xff]
      %v1769 = vld [vmem:[%s1761 + $0x38] sm:$0xff]
      %v1778 = vunpack.c.l.b16 %v1762
      %v1779 = vunpack.c.h.b16 %v1762
      %v1780 = vunpack.c.l.b16 %v1763
      %v1781 = vunpack.c.h.b16 %v1763
      %v1782 = vunpack.c.l.b16 %v1764
      %v1783 = vunpack.c.h.b16 %v1764
      %v1784 = vunpack.c.l.b16 %v1765
      %v1785 = vunpack.c.h.b16 %v1765
      %v1786 = vunpack.c.l.b16 %v1766
      %v1787 = vunpack.c.h.b16 %v1766
      %v1788 = vunpack.c.l.b16 %v1767
      %v1789 = vunpack.c.h.b16 %v1767
      %v1790 = vunpack.c.l.b16 %v1768
      %v1791 = vunpack.c.h.b16 %v1768
      %v1792 = vunpack.c.l.b16 %v1769
      %v1793 = vunpack.c.h.b16 %v1769
      %v1794 = vpack.c.b16 %v1778, %v1778
      %v1795 = vpack.c.b16 %v1779, %v1779
      %v1796 = vpack.c.b16 %v1780, %v1780
      %v1797 = vpack.c.b16 %v1781, %v1781
      %v1798 = vpack.c.b16 %v1782, %v1782
      %v1799 = vpack.c.b16 %v1783, %v1783
      %v1800 = vpack.c.b16 %v1784, %v1784
      %v1801 = vpack.c.b16 %v1785, %v1785
      %v1802 = vpack.c.b16 %v1786, %v1786
      %v1803 = vpack.c.b16 %v1787, %v1787
      %v1804 = vpack.c.b16 %v1788, %v1788
      %v1805 = vpack.c.b16 %v1789, %v1789
      %v1806 = vpack.c.b16 %v1790, %v1790
      %v1807 = vpack.c.b16 %v1791, %v1791
      %v1808 = vpack.c.b16 %v1792, %v1792
      %v1809 = vpack.c.b16 %v1793, %v1793
      %1826 = vmatprep.subr.bf16.mxu0 0
      %1827 = vmatpush1.bf16.msra.mxu0 %v1151
      %1828 = vmatprep.subr.bf16.mxu0 0
      %1829 = vmatpush1.bf16.msra.mxu0 %v1152
      %1830 = vmatprep.subr.bf16.mxu0 0
      %1831 = vmatpush1.bf16.msra.mxu0 %v1153
      %1832 = vmatprep.subr.bf16.mxu0 0
      %1833 = vmatpush1.bf16.msra.mxu0 %v1154
      %1834 = vmatprep.subr.bf16.mxu0 0
      %1835 = vmatpush1.bf16.msra.mxu0 %v1155
      %1836 = vmatprep.subr.bf16.mxu0 0
      %1837 = vmatpush1.bf16.msra.mxu0 %v1156
      %1838 = vmatprep.subr.bf16.mxu0 0
      %1839 = vmatpush1.bf16.msra.mxu0 %v1157
      %1840 = vmatprep.subr.bf16.mxu0 0
      %1841 = vmatpush1.bf16.msra.mxu0 %v1158
      %1842 = vmatprep.subr.bf16.mxu0 0
      %1843 = vmatpush1.bf16.msra.mxu0 %v1159
      %1844 = vmatprep.subr.bf16.mxu0 0
      %1845 = vmatpush1.bf16.msra.mxu0 %v1160
      %1846 = vmatprep.subr.bf16.mxu0 0
      %1847 = vmatpush1.bf16.msra.mxu0 %v1161
      %1848 = vmatprep.subr.bf16.mxu0 0
      %1849 = vmatpush1.bf16.msra.mxu0 %v1162
      %1850 = vmatprep.subr.bf16.mxu0 0
      %1851 = vmatpush1.bf16.msra.mxu0 %v1163
      %1852 = vmatprep.subr.bf16.mxu0 0
      %1853 = vmatpush1.bf16.msra.mxu0 %v1164
      %1854 = vmatprep.subr.bf16.mxu0 0
      %1855 = vmatpush1.bf16.msra.mxu0 %v1165
      %1856 = vmatprep.subr.bf16.mxu0 0
      %1857 = vmatpush1.bf16.msra.mxu0 %v1166
      %1858 = vmatprep.mubr.bf16.mxu0 %v1795
      %1859 = vmatmul.mubr.bf16.gmra.mrb[0].mxu0 %v1794
      %v1860 = vpop.f32.mrb[0].mxu0
      %v1861 = vadd.f32 %v581, %v1860
      %v1862 = vpop.f32.mrb[0].mxu0
      %v1863 = vpop.f32.mrb[0].mxu0
      %v1864 = vpop.f32.mrb[0].mxu0
      %1865 = vdwg.mxu0
      %1866 = vmatprep.subr.bf16.mxu0 0
      %1867 = vmatpush1.bf16.msra.mxu0 %v1167
      %1868 = vmatprep.subr.bf16.mxu0 0
      %1869 = vmatpush1.bf16.msra.mxu0 %v1168
      %1870 = vmatprep.subr.bf16.mxu0 0
      %1871 = vmatpush1.bf16.msra.mxu0 %v1169
      %1872 = vmatprep.subr.bf16.mxu0 0
      %1873 = vmatpush1.bf16.msra.mxu0 %v1170
      %1874 = vmatprep.subr.bf16.mxu0 0
      %1875 = vmatpush1.bf16.msra.mxu0 %v1171
      %1876 = vmatprep.subr.bf16.mxu0 0
      %1877 = vmatpush1.bf16.msra.mxu0 %v1172
      %1878 = vmatprep.subr.bf16.mxu0 0
      %1879 = vmatpush1.bf16.msra.mxu0 %v1173
      %1880 = vmatprep.subr.bf16.mxu0 0
      %1881 = vmatpush1.bf16.msra.mxu0 %v1174
      %1882 = vmatprep.subr.bf16.mxu0 0
      %1883 = vmatpush1.bf16.msra.mxu0 %v1175
      %1884 = vmatprep.subr.bf16.mxu0 0
      %1885 = vmatpush1.bf16.msra.mxu0 %v1176
      %1886 = vmatprep.subr.bf16.mxu0 0
      %1887 = vmatpush1.bf16.msra.mxu0 %v1177
      %1888 = vmatprep.subr.bf16.mxu0 0
      %1889 = vmatpush1.bf16.msra.mxu0 %v1178
      %1890 = vmatprep.subr.bf16.mxu0 0
      %1891 = vmatpush1.bf16.msra.mxu0 %v1179
      %1892 = vmatprep.subr.bf16.mxu0 0
      %1893 = vmatpush1.bf16.msra.mxu0 %v1180
      %1894 = vmatprep.subr.bf16.mxu0 0
      %1895 = vmatpush1.bf16.msra.mxu0 %v1181
      %1896 = vmatprep.subr.bf16.mxu0 0
      %1897 = vmatpush1.bf16.msra.mxu0 %v1182
      %1898 = vmatprep.mubr.bf16.mxu0 %v1797
      %1899 = vmatmul.mubr.bf16.gmra.mrb[0].mxu0 %v1796
      %v1900 = vpop.f32.mrb[0].mxu0
      %v1901 = vadd.f32 %v1861, %v1900
      %v1902 = vpop.f32.mrb[0].mxu0
      %v1903 = vpop.f32.mrb[0].mxu0
      %v1904 = vpop.f32.mrb[0].mxu0
      %1905 = vdwg.mxu0
      %1906 = vmatprep.subr.bf16.mxu0 0
      %1907 = vmatpush1.bf16.msra.mxu0 %v1183
      %1908 = vmatprep.subr.bf16.mxu0 0
      %1909 = vmatpush1.bf16.msra.mxu0 %v1184
      %1910 = vmatprep.subr.bf16.mxu0 0
      %1911 = vmatpush1.bf16.msra.mxu0 %v1185
      %1912 = vmatprep.subr.bf16.mxu0 0
      %1913 = vmatpush1.bf16.msra.mxu0 %v1186
      %1914 = vmatprep.subr.bf16.mxu0 0
      %1915 = vmatpush1.bf16.msra.mxu0 %v1187
      %1916 = vmatprep.subr.bf16.mxu0 0
      %1917 = vmatpush1.bf16.msra.mxu0 %v1188
      %1918 = vmatprep.subr.bf16.mxu0 0
      %1919 = vmatpush1.bf16.msra.mxu0 %v1189
      %1920 = vmatprep.subr.bf16.mxu0 0
      %1921 = vmatpush1.bf16.msra.mxu0 %v1190
      %1922 = vmatprep.subr.bf16.mxu0 0
      %1923 = vmatpush1.bf16.msra.mxu0 %v1191
      %1924 = vmatprep.subr.bf16.mxu0 0
      %1925 = vmatpush1.bf16.msra.mxu0 %v1192
      %1926 = vmatprep.subr.bf16.mxu0 0
      %1927 = vmatpush1.bf16.msra.mxu0 %v1193
      %1928 = vmatprep.subr.bf16.mxu0 0
      %1929 = vmatpush1.bf16.msra.mxu0 %v1194
      %1930 = vmatprep.subr.bf16.mxu0 0
      %1931 = vmatpush1.bf16.msra.mxu0 %v1195
      %1932 = vmatprep.subr.bf16.mxu0 0
      %1933 = vmatpush1.bf16.msra.mxu0 %v1196
      %1934 = vmatprep.subr.bf16.mxu0 0
      %1935 = vmatpush1.bf16.msra.mxu0 %v1197
      %1936 = vmatprep.subr.bf16.mxu0 0
      %1937 = vmatpush1.bf16.msra.mxu0 %v1198
      %1938 = vmatprep.mubr.bf16.mxu0 %v1799
      %1939 = vmatmul.mubr.bf16.gmra.mrb[0].mxu0 %v1798
      %v1940 = vpop.f32.mrb[0].mxu0
      %v1941 = vadd.f32 %v1901, %v1940
      %v1942 = vpop.f32.mrb[0].mxu0
      %v1943 = vpop.f32.mrb[0].mxu0
      %v1944 = vpop.f32.mrb[0].mxu0
      %1945 = vdwg.mxu0
      %1946 = vmatprep.subr.bf16.mxu0 0
      %1947 = vmatpush1.bf16.msra.mxu0 %v1199
      %1948 = vmatprep.subr.bf16.mxu0 0
      %1949 = vmatpush1.bf16.msra.mxu0 %v1200
      %1950 = vmatprep.subr.bf16.mxu0 0
      %1951 = vmatpush1.bf16.msra.mxu0 %v1201
      %1952 = vmatprep.subr.bf16.mxu0 0
      %1953 = vmatpush1.bf16.msra.mxu0 %v1202
      %1954 = vmatprep.subr.bf16.mxu0 0
      %1955 = vmatpush1.bf16.msra.mxu0 %v1203
      %1956 = vmatprep.subr.bf16.mxu0 0
      %1957 = vmatpush1.bf16.msra.mxu0 %v1204
      %1958 = vmatprep.subr.bf16.mxu0 0
      %1959 = vmatpush1.bf16.msra.mxu0 %v1205
      %1960 = vmatprep.subr.bf16.mxu0 0
      %1961 = vmatpush1.bf16.msra.mxu0 %v1206
      %1962 = vmatprep.subr.bf16.mxu0 0
      %1963 = vmatpush1.bf16.msra.mxu0 %v1207
      %1964 = vmatprep.subr.bf16.mxu0 0
      %1965 = vmatpush1.bf16.msra.mxu0 %v1208
      %1966 = vmatprep.subr.bf16.mxu0 0
      %1967 = vmatpush1.bf16.msra.mxu0 %v1209
      %1968 = vmatprep.subr.bf16.mxu0 0
      %1969 = vmatpush1.bf16.msra.mxu0 %v1210
      %1970 = vmatprep.subr.bf16.mxu0 0
      %1971 = vmatpush1.bf16.msra.mxu0 %v1211
      %1972 = vmatprep.subr.bf16.mxu0 0
      %1973 = vmatpush1.bf16.msra.mxu0 %v1212
      %1974 = vmatprep.subr.bf16.mxu0 0
      %1975 = vmatpush1.bf16.msra.mxu0 %v1213
      %1976 = vmatprep.subr.bf16.mxu0 0
      %1977 = vmatpush1.bf16.msra.mxu0 %v1214
      %1978 = vmatprep.mubr.bf16.mxu0 %v1801
      %1979 = vmatmul.mubr.bf16.gmra.mrb[0].mxu0 %v1800
      %v1980 = vpop.f32.mrb[0].mxu0
      %v1981 = vadd.f32 %v1941, %v1980
      %v1982 = vpop.f32.mrb[0].mxu0
      %v1983 = vpop.f32.mrb[0].mxu0
      %v1984 = vpop.f32.mrb[0].mxu0
      %1985 = vdwg.mxu0
      %1986 = vmatprep.subr.bf16.mxu0 0
      %1987 = vmatpush1.bf16.msra.mxu0 %v1215
      %1988 = vmatprep.subr.bf16.mxu0 0
      %1989 = vmatpush1.bf16.msra.mxu0 %v1216
      %1990 = vmatprep.subr.bf16.mxu0 0
      %1991 = vmatpush1.bf16.msra.mxu0 %v1217
      %1992 = vmatprep.subr.bf16.mxu0 0
      %1993 = vmatpush1.bf16.msra.mxu0 %v1218
      %1994 = vmatprep.subr.bf16.mxu0 0
      %1995 = vmatpush1.bf16.msra.mxu0 %v1219
      %1996 = vmatprep.subr.bf16.mxu0 0
      %1997 = vmatpush1.bf16.msra.mxu0 %v1220
      %1998 = vmatprep.subr.bf16.mxu0 0
      %1999 = vmatpush1.bf16.msra.mxu0 %v1221
      %2000 = vmatprep.subr.bf16.mxu0 0
      %2001 = vmatpush1.bf16.msra.mxu0 %v1222
      %2002 = vmatprep.subr.bf16.mxu0 0
      %2003 = vmatpush1.bf16.msra.mxu0 %v1223
      %2004 = vmatprep.subr.bf16.mxu0 0
      %2005 = vmatpush1.bf16.msra.mxu0 %v1224
      %2006 = vmatprep.subr.bf16.mxu0 0
      %2007 = vmatpush1.bf16.msra.mxu0 %v1225
      %2008 = vmatprep.subr.bf16.mxu0 0
      %2009 = vmatpush1.bf16.msra.mxu0 %v1226
      %2010 = vmatprep.subr.bf16.mxu0 0
      %2011 = vmatpush1.bf16.msra.mxu0 %v1227
      %2012 = vmatprep.subr.bf16.mxu0 0
      %2013 = vmatpush1.bf16.msra.mxu0 %v1228
      %2014 = vmatprep.subr.bf16.mxu0 0
      %2015 = vmatpush1.bf16.msra.mxu0 %v1229
      %2016 = vmatprep.subr.bf16.mxu0 0
      %2017 = vmatpush1.bf16.msra.mxu0 %v1230
      %2018 = vmatprep.mubr.bf16.mxu0 %v1803
      %2019 = vmatmul.mubr.bf16.gmra.mrb[0].mxu0 %v1802
      %v2020 = vpop.f32.mrb[0].mxu0
      %v2021 = vadd.f32 %v1981, %v2020
      %v2022 = vpop.f32.mrb[0].mxu0
      %v2023 = vpop.f32.mrb[0].mxu0
      %v2024 = vpop.f32.mrb[0].mxu0
      %2025 = vdwg.mxu0
      %2026 = vmatprep.subr.bf16.mxu0 0
      %2027 = vmatpush1.bf16.msra.mxu0 %v1231
      %2028 = vmatprep.subr.bf16.mxu0 0
      %2029 = vmatpush1.bf16.msra.mxu0 %v1232
      %2030 = vmatprep.subr.bf16.mxu0 0
      %2031 = vmatpush1.bf16.msra.mxu0 %v1233
      %2032 = vmatprep.subr.bf16.mxu0 0
      %2033 = vmatpush1.bf16.msra.mxu0 %v1234
      %2034 = vmatprep.subr.bf16.mxu0 0
      %2035 = vmatpush1.bf16.msra.mxu0 %v1235
      %2036 = vmatprep.subr.bf16.mxu0 0
      %2037 = vmatpush1.bf16.msra.mxu0 %v1236
      %2038 = vmatprep.subr.bf16.mxu0 0
      %2039 = vmatpush1.bf16.msra.mxu0 %v1237
      %2040 = vmatprep.subr.bf16.mxu0 0
      %2041 = vmatpush1.bf16.msra.mxu0 %v1238
      %2042 = vmatprep.subr.bf16.mxu0 0
      %2043 = vmatpush1.bf16.msra.mxu0 %v1239
      %2044 = vmatprep.subr.bf16.mxu0 0
      %2045 = vmatpush1.bf16.msra.mxu0 %v1240
      %2046 = vmatprep.subr.bf16.mxu0 0
      %2047 = vmatpush1.bf16.msra.mxu0 %v1241
      %2048 = vmatprep.subr.bf16.mxu0 0
      %2049 = vmatpush1.bf16.msra.mxu0 %v1242
      %2050 = vmatprep.subr.bf16.mxu0 0
      %2051 = vmatpush1.bf16.msra.mxu0 %v1243
      %2052 = vmatprep.subr.bf16.mxu0 0
      %2053 = vmatpush1.bf16.msra.mxu0 %v1244
      %2054 = vmatprep.subr.bf16.mxu0 0
      %2055 = vmatpush1.bf16.msra.mxu0 %v1245
      %2056 = vmatprep.subr.bf16.mxu0 0
      %2057 = vmatpush1.bf16.msra.mxu0 %v1246
      %2058 = vmatprep.mubr.bf16.mxu0 %v1805
      %2059 = vmatmul.mubr.bf16.gmra.mrb[0].mxu0 %v1804
      %v2060 = vpop.f32.mrb[0].mxu0
      %v2061 = vadd.f32 %v2021, %v2060
      %v2062 = vpop.f32.mrb[0].mxu0
      %v2063 = vpop.f32.mrb[0].mxu0
      %v2064 = vpop.f32.mrb[0].mxu0
      %2065 = vdwg.mxu0
      %2066 = vmatprep.subr.bf16.mxu0 0
      %2067 = vmatpush1.bf16.msra.mxu0 %v1247
      %2068 = vmatprep.subr.bf16.mxu0 0
      %2069 = vmatpush1.bf16.msra.mxu0 %v1248
      %2070 = vmatprep.subr.bf16.mxu0 0
      %2071 = vmatpush1.bf16.msra.mxu0 %v1249
      %2072 = vmatprep.subr.bf16.mxu0 0
      %2073 = vmatpush1.bf16.msra.mxu0 %v1250
      %2074 = vmatprep.subr.bf16.mxu0 0
      %2075 = vmatpush1.bf16.msra.mxu0 %v1251
      %2076 = vmatprep.subr.bf16.mxu0 0
      %2077 = vmatpush1.bf16.msra.mxu0 %v1252
      %2078 = vmatprep.subr.bf16.mxu0 0
      %2079 = vmatpush1.bf16.msra.mxu0 %v1253
      %2080 = vmatprep.subr.bf16.mxu0 0
      %2081 = vmatpush1.bf16.msra.mxu0 %v1254
      %2082 = vmatprep.subr.bf16.mxu0 0
      %2083 = vmatpush1.bf16.msra.mxu0 %v1255
      %2084 = vmatprep.subr.bf16.mxu0 0
      %2085 = vmatpush1.bf16.msra.mxu0 %v1256
      %2086 = vmatprep.subr.bf16.mxu0 0
      %2087 = vmatpush1.bf16.msra.mxu0 %v1257
      %2088 = vmatprep.subr.bf16.mxu0 0
      %2089 = vmatpush1.bf16.msra.mxu0 %v1258
      %2090 = vmatprep.subr.bf16.mxu0 0
      %2091 = vmatpush1.bf16.msra.mxu0 %v1259
      %2092 = vmatprep.subr.bf16.mxu0 0
      %2093 = vmatpush1.bf16.msra.mxu0 %v1260
      %2094 = vmatprep.subr.bf16.mxu0 0
      %2095 = vmatpush1.bf16.msra.mxu0 %v1261
      %2096 = vmatprep.subr.bf16.mxu0 0
      %2097 = vmatpush1.bf16.msra.mxu0 %v1262
      %2098 = vmatprep.mubr.bf16.mxu0 %v1807
      %2099 = vmatmul.mubr.bf16.gmra.mrb[0].mxu0 %v1806
      %v2100 = vpop.f32.mrb[0].mxu0
      %v2101 = vadd.f32 %v2061, %v2100
      %v2102 = vpop.f32.mrb[0].mxu0
      %v2103 = vpop.f32.mrb[0].mxu0
      %v2104 = vpop.f32.mrb[0].mxu0
      %2105 = vdwg.mxu0
      %2106 = vmatprep.subr.bf16.mxu0 0
      %2107 = vmatpush1.bf16.msra.mxu0 %v1263
      %2108 = vmatprep.subr.bf16.mxu0 0
      %2109 = vmatpush1.bf16.msra.mxu0 %v1264
      %2110 = vmatprep.subr.bf16.mxu0 0
      %2111 = vmatpush1.bf16.msra.mxu0 %v1265
      %2112 = vmatprep.subr.bf16.mxu0 0
      %2113 = vmatpush1.bf16.msra.mxu0 %v1266
      %2114 = vmatprep.subr.bf16.mxu0 0
      %2115 = vmatpush1.bf16.msra.mxu0 %v1267
      %2116 = vmatprep.subr.bf16.mxu0 0
      %2117 = vmatpush1.bf16.msra.mxu0 %v1268
      %2118 = vmatprep.subr.bf16.mxu0 0
      %2119 = vmatpush1.bf16.msra.mxu0 %v1269
      %2120 = vmatprep.subr.bf16.mxu0 0
      %2121 = vmatpush1.bf16.msra.mxu0 %v1270
      %2122 = vmatprep.subr.bf16.mxu0 0
      %2123 = vmatpush1.bf16.msra.mxu0 %v1271
      %2124 = vmatprep.subr.bf16.mxu0 0
      %2125 = vmatpush1.bf16.msra.mxu0 %v1272
      %2126 = vmatprep.subr.bf16.mxu0 0
      %2127 = vmatpush1.bf16.msra.mxu0 %v1273
      %2128 = vmatprep.subr.bf16.mxu0 0
      %2129 = vmatpush1.bf16.msra.mxu0 %v1274
      %2130 = vmatprep.subr.bf16.mxu0 0
      %2131 = vmatpush1.bf16.msra.mxu0 %v1275
      %2132 = vmatprep.subr.bf16.mxu0 0
      %2133 = vmatpush1.bf16.msra.mxu0 %v1276
      %2134 = vmatprep.subr.bf16.mxu0 0
      %2135 = vmatpush1.bf16.msra.mxu0 %v1277
      %2136 = vmatprep.subr.bf16.mxu0 0
      %2137 = vmatpush1.bf16.msra.mxu0 %v1278
      %2138 = vmatprep.mubr.bf16.mxu0 %v1809
      %2139 = vmatmul.mubr.bf16.gmra.mrb[0].mxu0 %v1808
      %v2140 = vpop.f32.mrb[0].mxu0
      %v2141 = vadd.f32 %v2101, %v2140
      %v2142 = vpop.f32.mrb[0].mxu0
      %v2143 = vpop.f32.mrb[0].mxu0
      %v2144 = vpop.f32.mrb[0].mxu0
      %2145 = vdwg.mxu0
      %v2146 = vmax.f32 %v2141, 0.0
      %v2147 = vpack.c.bf16 %v2146, %v2146
      %s2148 = scalar_lea.vmem %s274, 256
      %v2149 = vld [vmem:[%s2148] sm:$0xff]
      %v2150 = vld [vmem:[%s2148 + $0x8] sm:$0xff]
      %v2151 = vld [vmem:[%s2148 + $0x10] sm:$0xff]
      %v2152 = vld [vmem:[%s2148 + $0x18] sm:$0xff]
      %v2153 = vld [vmem:[%s2148 + $0x20] sm:$0xff]
      %v2154 = vld [vmem:[%s2148 + $0x28] sm:$0xff]
      %v2155 = vld [vmem:[%s2148 + $0x30] sm:$0xff]
      %v2156 = vld [vmem:[%s2148 + $0x38] sm:$0xff]
      %v2157 = vld [vmem:[%s2148 + $0x40] sm:$0xff]
      %v2158 = vld [vmem:[%s2148 + $0x48] sm:$0xff]
      %v2159 = vld [vmem:[%s2148 + $0x50] sm:$0xff]
      %v2160 = vld [vmem:[%s2148 + $0x58] sm:$0xff]
      %v2161 = vld [vmem:[%s2148 + $0x60] sm:$0xff]
      %v2162 = vld [vmem:[%s2148 + $0x68] sm:$0xff]
      %v2163 = vld [vmem:[%s2148 + $0x70] sm:$0xff]
      %v2164 = vld [vmem:[%s2148 + $0x78] sm:$0xff]
      %v2165 = vld [vmem:[%s2148 + $0x80] sm:$0xff]
      %v2166 = vld [vmem:[%s2148 + $0x88] sm:$0xff]
      %v2167 = vld [vmem:[%s2148 + $0x90] sm:$0xff]
      %v2168 = vld [vmem:[%s2148 + $0x98] sm:$0xff]
      %v2169 = vld [vmem:[%s2148 + $0xa0] sm:$0xff]
      %v2170 = vld [vmem:[%s2148 + $0xa8] sm:$0xff]
      %v2171 = vld [vmem:[%s2148 + $0xb0] sm:$0xff]
      %v2172 = vld [vmem:[%s2148 + $0xb8] sm:$0xff]
      %v2173 = vld [vmem:[%s2148 + $0xc0] sm:$0xff]
      %v2174 = vld [vmem:[%s2148 + $0xc8] sm:$0xff]
      %v2175 = vld [vmem:[%s2148 + $0xd0] sm:$0xff]
      %v2176 = vld [vmem:[%s2148 + $0xd8] sm:$0xff]
      %v2177 = vld [vmem:[%s2148 + $0xe0] sm:$0xff]
      %v2178 = vld [vmem:[%s2148 + $0xe8] sm:$0xff]
      %v2179 = vld [vmem:[%s2148 + $0xf0] sm:$0xff]
      %v2180 = vld [vmem:[%s2148 + $0xf8] sm:$0xff]
      %v2213 = vunpack.c.l.b16 %v2149
      %v2214 = vunpack.c.h.b16 %v2149
      %v2215 = vunpack.c.l.b16 %v2150
      %v2216 = vunpack.c.h.b16 %v2150
      %v2217 = vunpack.c.l.b16 %v2151
      %v2218 = vunpack.c.h.b16 %v2151
      %v2219 = vunpack.c.l.b16 %v2152
      %v2220 = vunpack.c.h.b16 %v2152
      %v2221 = vunpack.c.l.b16 %v2153
      %v2222 = vunpack.c.h.b16 %v2153
      %v2223 = vunpack.c.l.b16 %v2154
      %v2224 = vunpack.c.h.b16 %v2154
      %v2225 = vunpack.c.l.b16 %v2155
      %v2226 = vunpack.c.h.b16 %v2155
      %v2227 = vunpack.c.l.b16 %v2156
      %v2228 = vunpack.c.h.b16 %v2156
      %v2229 = vunpack.c.l.b16 %v2157
      %v2230 = vunpack.c.h.b16 %v2157
      %v2231 = vunpack.c.l.b16 %v2158
      %v2232 = vunpack.c.h.b16 %v2158
      %v2233 = vunpack.c.l.b16 %v2159
      %v2234 = vunpack.c.h.b16 %v2159
      %v2235 = vunpack.c.l.b16 %v2160
      %v2236 = vunpack.c.h.b16 %v2160
      %v2237 = vunpack.c.l.b16 %v2161
      %v2238 = vunpack.c.h.b16 %v2161
      %v2239 = vunpack.c.l.b16 %v2162
      %v2240 = vunpack.c.h.b16 %v2162
      %v2241 = vunpack.c.l.b16 %v2163
      %v2242 = vunpack.c.h.b16 %v2163
      %v2243 = vunpack.c.l.b16 %v2164
      %v2244 = vunpack.c.h.b16 %v2164
      %v2245 = vunpack.c.l.b16 %v2165
      %v2246 = vunpack.c.h.b16 %v2165
      %v2247 = vunpack.c.l.b16 %v2166
      %v2248 = vunpack.c.h.b16 %v2166
      %v2249 = vunpack.c.l.b16 %v2167
      %v2250 = vunpack.c.h.b16 %v2167
      %v2251 = vunpack.c.l.b16 %v2168
      %v2252 = vunpack.c.h.b16 %v2168
      %v2253 = vunpack.c.l.b16 %v2169
      %v2254 = vunpack.c.h.b16 %v2169
      %v2255 = vunpack.c.l.b16 %v2170
      %v2256 = vunpack.c.h.b16 %v2170
      %v2257 = vunpack.c.l.b16 %v2171
      %v2258 = vunpack.c.h.b16 %v2171
      %v2259 = vunpack.c.l.b16 %v2172
      %v2260 = vunpack.c.h.b16 %v2172
      %v2261 = vunpack.c.l.b16 %v2173
      %v2262 = vunpack.c.h.b16 %v2173
      %v2263 = vunpack.c.l.b16 %v2174
      %v2264 = vunpack.c.h.b16 %v2174
      %v2265 = vunpack.c.l.b16 %v2175
      %v2266 = vunpack.c.h.b16 %v2175
      %v2267 = vunpack.c.l.b16 %v2176
      %v2268 = vunpack.c.h.b16 %v2176
      %v2269 = vunpack.c.l.b16 %v2177
      %v2270 = vunpack.c.h.b16 %v2177
      %v2271 = vunpack.c.l.b16 %v2178
      %v2272 = vunpack.c.h.b16 %v2178
      %v2273 = vunpack.c.l.b16 %v2179
      %v2274 = vunpack.c.h.b16 %v2179
      %v2275 = vunpack.c.l.b16 %v2180
      %v2276 = vunpack.c.h.b16 %v2180
      %v2277 = vpack.c.b16 %v2217, %v2213
      %v2278 = vpack.c.b16 %v2218, %v2214
      %v2279 = vpack.c.b16 %v2219, %v2215
      %v2280 = vpack.c.b16 %v2220, %v2216
      %v2281 = vpack.c.b16 %v2225, %v2221
      %v2282 = vpack.c.b16 %v2226, %v2222
      %v2283 = vpack.c.b16 %v2227, %v2223
      %v2284 = vpack.c.b16 %v2228, %v2224
      %v2285 = vpack.c.b16 %v2233, %v2229
      %v2286 = vpack.c.b16 %v2234, %v2230
      %v2287 = vpack.c.b16 %v2235, %v2231
      %v2288 = vpack.c.b16 %v2236, %v2232
      %v2289 = vpack.c.b16 %v2241, %v2237
      %v2290 = vpack.c.b16 %v2242, %v2238
      %v2291 = vpack.c.b16 %v2243, %v2239
      %v2292 = vpack.c.b16 %v2244, %v2240
      %v2293 = vpack.c.b16 %v2249, %v2245
      %v2294 = vpack.c.b16 %v2250, %v2246
      %v2295 = vpack.c.b16 %v2251, %v2247
      %v2296 = vpack.c.b16 %v2252, %v2248
      %v2297 = vpack.c.b16 %v2257, %v2253
      %v2298 = vpack.c.b16 %v2258, %v2254
      %v2299 = vpack.c.b16 %v2259, %v2255
      %v2300 = vpack.c.b16 %v2260, %v2256
      %v2301 = vpack.c.b16 %v2265, %v2261
      %v2302 = vpack.c.b16 %v2266, %v2262
      %v2303 = vpack.c.b16 %v2267, %v2263
      %v2304 = vpack.c.b16 %v2268, %v2264
      %v2305 = vpack.c.b16 %v2273, %v2269
      %v2306 = vpack.c.b16 %v2274, %v2270
      %v2307 = vpack.c.b16 %v2275, %v2271
      %v2308 = vpack.c.b16 %v2276, %v2272
      %2341 = vmatprep.subr.bf16.mxu0 %v2278
      %2342 = vmatpush1.bf16.msra.mxu0 %v2277
      %2343 = vmatprep.subr.bf16.mxu0 %v2282
      %2344 = vmatpush1.bf16.msra.mxu0 %v2281
      %2345 = vmatprep.subr.bf16.mxu0 %v2286
      %2346 = vmatpush1.bf16.msra.mxu0 %v2285
      %2347 = vmatprep.subr.bf16.mxu0 %v2290
      %2348 = vmatpush1.bf16.msra.mxu0 %v2289
      %2349 = vmatprep.subr.bf16.mxu0 %v2294
      %2350 = vmatpush1.bf16.msra.mxu0 %v2293
      %2351 = vmatprep.subr.bf16.mxu0 %v2298
      %2352 = vmatpush1.bf16.msra.mxu0 %v2297
      %2353 = vmatprep.subr.bf16.mxu0 %v2302
      %2354 = vmatpush1.bf16.msra.mxu0 %v2301
      %2355 = vmatprep.subr.bf16.mxu0 %v2306
      %2356 = vmatpush1.bf16.msra.mxu0 %v2305
      %2357 = vmatprep.subr.bf16.mxu0 0
      %2358 = vmatpush1.bf16.msra.mxu0 0
      %2359 = vmatprep.subr.bf16.mxu0 0
      %2360 = vmatpush1.bf16.msra.mxu0 0
      %2361 = vmatprep.subr.bf16.mxu0 0
      %2362 = vmatpush1.bf16.msra.mxu0 0
      %2363 = vmatprep.subr.bf16.mxu0 0
      %2364 = vmatpush1.bf16.msra.mxu0 0
      %2365 = vmatprep.subr.bf16.mxu0 0
      %2366 = vmatpush1.bf16.msra.mxu0 0
      %2367 = vmatprep.subr.bf16.mxu0 0
      %2368 = vmatpush1.bf16.msra.mxu0 0
      %2369 = vmatprep.subr.bf16.mxu0 0
      %2370 = vmatpush1.bf16.msra.mxu0 0
      %2371 = vmatprep.subr.bf16.mxu0 0
      %2372 = vmatpush1.bf16.msra.mxu0 0
      %2373 = vmatprep.mubr.bf16.mxu0 0
      %2374 = vmatmul.mubr.bf16.gmra.mrb[0].mxu0 %v2147
      %v2375 = vpop.f32.mrb[0].mxu0
      %v2376 = vadd.f32 0.0, %v2375
      %v2377 = vpop.f32.mrb[0].mxu0
      %v2378 = vadd.f32 0.0, %v2377
      %v2379 = vpop.f32.mrb[0].mxu0
      %v2380 = vpop.f32.mrb[0].mxu0
      %2381 = vdwg.mxu0
      %2382 = vmatprep.subr.bf16.mxu0 %v2280
      %2383 = vmatpush1.bf16.msra.mxu0 %v2279
      %2384 = vmatprep.subr.bf16.mxu0 %v2284
      %2385 = vmatpush1.bf16.msra.mxu0 %v2283
      %2386 = vmatprep.subr.bf16.mxu0 %v2288
      %2387 = vmatpush1.bf16.msra.mxu0 %v2287
      %2388 = vmatprep.subr.bf16.mxu0 %v2292
      %2389 = vmatpush1.bf16.msra.mxu0 %v2291
      %2390 = vmatprep.subr.bf16.mxu0 %v2296
      %2391 = vmatpush1.bf16.msra.mxu0 %v2295
      %2392 = vmatprep.subr.bf16.mxu0 %v2300
      %2393 = vmatpush1.bf16.msra.mxu0 %v2299
      %2394 = vmatprep.subr.bf16.mxu0 %v2304
      %2395 = vmatpush1.bf16.msra.mxu0 %v2303
      %2396 = vmatprep.subr.bf16.mxu0 %v2308
      %2397 = vmatpush1.bf16.msra.mxu0 %v2307
      %2398 = vmatprep.subr.bf16.mxu0 0
      %2399 = vmatpush1.bf16.msra.mxu0 0
      %2400 = vmatprep.subr.bf16.mxu0 0
      %2401 = vmatpush1.bf16.msra.mxu0 0
      %2402 = vmatprep.subr.bf16.mxu0 0
      %2403 = vmatpush1.bf16.msra.mxu0 0
      %2404 = vmatprep.subr.bf16.mxu0 0
      %2405 = vmatpush1.bf16.msra.mxu0 0
      %2406 = vmatprep.subr.bf16.mxu0 0
      %2407 = vmatpush1.bf16.msra.mxu0 0
      %2408 = vmatprep.subr.bf16.mxu0 0
      %2409 = vmatpush1.bf16.msra.mxu0 0
      %2410 = vmatprep.subr.bf16.mxu0 0
      %2411 = vmatpush1.bf16.msra.mxu0 0
      %2412 = vmatprep.subr.bf16.mxu0 0
      %2413 = vmatpush1.bf16.msra.mxu0 0
      %2414 = vmatprep.mubr.bf16.mxu0 0
      %2415 = vmatmul.mubr.bf16.gmra.mrb[0].mxu0 %v2147
      %v2416 = vpop.f32.mrb[0].mxu0
      %v2417 = vadd.f32 0.0, %v2416
      %v2418 = vpop.f32.mrb[0].mxu0
      %v2419 = vadd.f32 0.0, %v2418
      %v2420 = vpop.f32.mrb[0].mxu0
      %v2421 = vpop.f32.mrb[0].mxu0
      %2422 = vdwg.mxu0
      %v2455 = vunpack.c.l.b16 %v1729
      %v2456 = vunpack.c.h.b16 %v1729
      %v2457 = vunpack.c.l.b16 %v1730
      %v2458 = vunpack.c.h.b16 %v1730
      %v2459 = vunpack.c.l.b16 %v1731
      %v2460 = vunpack.c.h.b16 %v1731
      %v2461 = vunpack.c.l.b16 %v1732
      %v2462 = vunpack.c.h.b16 %v1732
      %v2463 = vunpack.c.l.b16 %v1733
      %v2464 = vunpack.c.h.b16 %v1733
      %v2465 = vunpack.c.l.b16 %v1734
      %v2466 = vunpack.c.h.b16 %v1734
      %v2467 = vunpack.c.l.b16 %v1735
      %v2468 = vunpack.c.h.b16 %v1735
      %v2469 = vunpack.c.l.b16 %v1736
      %v2470 = vunpack.c.h.b16 %v1736
      %v2471 = vunpack.c.l.b16 %v1737
      %v2472 = vunpack.c.h.b16 %v1737
      %v2473 = vunpack.c.l.b16 %v1738
      %v2474 = vunpack.c.h.b16 %v1738
      %v2475 = vunpack.c.l.b16 %v1739
      %v2476 = vunpack.c.h.b16 %v1739
      %v2477 = vunpack.c.l.b16 %v1740
      %v2478 = vunpack.c.h.b16 %v1740
      %v2479 = vunpack.c.l.b16 %v1741
      %v2480 = vunpack.c.h.b16 %v1741
      %v2481 = vunpack.c.l.b16 %v1742
      %v2482 = vunpack.c.h.b16 %v1742
      %v2483 = vunpack.c.l.b16 %v1743
      %v2484 = vunpack.c.h.b16 %v1743
      %v2485 = vunpack.c.l.b16 %v1744
      %v2486 = vunpack.c.h.b16 %v1744
      %v2487 = vunpack.c.l.b16 %v1745
      %v2488 = vunpack.c.h.b16 %v1745
      %v2489 = vunpack.c.l.b16 %v1746
      %v2490 = vunpack.c.h.b16 %v1746
      %v2491 = vunpack.c.l.b16 %v1747
      %v2492 = vunpack.c.h.b16 %v1747
      %v2493 = vunpack.c.l.b16 %v1748
      %v2494 = vunpack.c.h.b16 %v1748
      %v2495 = vunpack.c.l.b16 %v1749
      %v2496 = vunpack.c.h.b16 %v1749
      %v2497 = vunpack.c.l.b16 %v1750
      %v2498 = vunpack.c.h.b16 %v1750
      %v2499 = vunpack.c.l.b16 %v1751
      %v2500 = vunpack.c.h.b16 %v1751
      %v2501 = vunpack.c.l.b16 %v1752
      %v2502 = vunpack.c.h.b16 %v1752
      %v2503 = vunpack.c.l.b16 %v1753
      %v2504 = vunpack.c.h.b16 %v1753
      %v2505 = vunpack.c.l.b16 %v1754
      %v2506 = vunpack.c.h.b16 %v1754
      %v2507 = vunpack.c.l.b16 %v1755
      %v2508 = vunpack.c.h.b16 %v1755
      %v2509 = vunpack.c.l.b16 %v1756
      %v2510 = vunpack.c.h.b16 %v1756
      %v2511 = vunpack.c.l.b16 %v1757
      %v2512 = vunpack.c.h.b16 %v1757
      %v2513 = vunpack.c.l.b16 %v1758
      %v2514 = vunpack.c.h.b16 %v1758
      %v2515 = vunpack.c.l.b16 %v1759
      %v2516 = vunpack.c.h.b16 %v1759
      %v2517 = vunpack.c.l.b16 %v1760
      %v2518 = vunpack.c.h.b16 %v1760
      %v2519 = vpack.c.b16 %v2459, %v2455
      %v2520 = vpack.c.b16 %v2460, %v2456
      %v2521 = vpack.c.b16 %v2461, %v2457
      %v2522 = vpack.c.b16 %v2462, %v2458
      %v2523 = vpack.c.b16 %v2467, %v2463
      %v2524 = vpack.c.b16 %v2468, %v2464
      %v2525 = vpack.c.b16 %v2469, %v2465
      %v2526 = vpack.c.b16 %v2470, %v2466
      %v2527 = vpack.c.b16 %v2475, %v2471
      %v2528 = vpack.c.b16 %v2476, %v2472
      %v2529 = vpack.c.b16 %v2477, %v2473
      %v2530 = vpack.c.b16 %v2478, %v2474
      %v2531 = vpack.c.b16 %v2483, %v2479
      %v2532 = vpack.c.b16 %v2484, %v2480
      %v2533 = vpack.c.b16 %v2485, %v2481
      %v2534 = vpack.c.b16 %v2486, %v2482
      %v2535 = vpack.c.b16 %v2491, %v2487
      %v2536 = vpack.c.b16 %v2492, %v2488
      %v2537 = vpack.c.b16 %v2493, %v2489
      %v2538 = vpack.c.b16 %v2494, %v2490
      %v2539 = vpack.c.b16 %v2499, %v2495
      %v2540 = vpack.c.b16 %v2500, %v2496
      %v2541 = vpack.c.b16 %v2501, %v2497
      %v2542 = vpack.c.b16 %v2502, %v2498
      %v2543 = vpack.c.b16 %v2507, %v2503
      %v2544 = vpack.c.b16 %v2508, %v2504
      %v2545 = vpack.c.b16 %v2509, %v2505
      %v2546 = vpack.c.b16 %v2510, %v2506
      %v2547 = vpack.c.b16 %v2515, %v2511
      %v2548 = vpack.c.b16 %v2516, %v2512
      %v2549 = vpack.c.b16 %v2517, %v2513
      %v2550 = vpack.c.b16 %v2518, %v2514
      %2583 = vmatprep.subr.bf16.mxu0 %v2520
      %2584 = vmatpush1.bf16.msra.mxu0 %v2519
      %2585 = vmatprep.subr.bf16.mxu0 %v2524
      %2586 = vmatpush1.bf16.msra.mxu0 %v2523
      %2587 = vmatprep.subr.bf16.mxu0 %v2528
      %2588 = vmatpush1.bf16.msra.mxu0 %v2527
      %2589 = vmatprep.subr.bf16.mxu0 %v2532
      %2590 = vmatpush1.bf16.msra.mxu0 %v2531
      %2591 = vmatprep.subr.bf16.mxu0 %v2536
      %2592 = vmatpush1.bf16.msra.mxu0 %v2535
      %2593 = vmatprep.subr.bf16.mxu0 %v2540
      %2594 = vmatpush1.bf16.msra.mxu0 %v2539
      %2595 = vmatprep.subr.bf16.mxu0 %v2544
      %2596 = vmatpush1.bf16.msra.mxu0 %v2543
      %2597 = vmatprep.subr.bf16.mxu0 %v2548
      %2598 = vmatpush1.bf16.msra.mxu0 %v2547
      %2599 = vmatprep.subr.bf16.mxu0 0
      %2600 = vmatpush1.bf16.msra.mxu0 0
      %2601 = vmatprep.subr.bf16.mxu0 0
      %2602 = vmatpush1.bf16.msra.mxu0 0
      %2603 = vmatprep.subr.bf16.mxu0 0
      %2604 = vmatpush1.bf16.msra.mxu0 0
      %2605 = vmatprep.subr.bf16.mxu0 0
      %2606 = vmatpush1.bf16.msra.mxu0 0
      %2607 = vmatprep.subr.bf16.mxu0 0
      %2608 = vmatpush1.bf16.msra.mxu0 0
      %2609 = vmatprep.subr.bf16.mxu0 0
      %2610 = vmatpush1.bf16.msra.mxu0 0
      %2611 = vmatprep.subr.bf16.mxu0 0
      %2612 = vmatpush1.bf16.msra.mxu0 0
      %2613 = vmatprep.subr.bf16.mxu0 0
      %2614 = vmatpush1.bf16.msra.mxu0 0
      %2615 = vmatprep.mubr.bf16.mxu0 0
      %2616 = vmatmul.mubr.bf16.gmra.mrb[0].mxu0 %v1728
      %v2617 = vpop.f32.mrb[0].mxu0
      %v2618 = vadd.f32 %v2376, %v2617
      %v2619 = vpop.f32.mrb[0].mxu0
      %v2620 = vadd.f32 %v2378, %v2619
      %v2621 = vpop.f32.mrb[0].mxu0
      %v2622 = vpop.f32.mrb[0].mxu0
      %2623 = vdwg.mxu0
      %2624 = vmatprep.subr.bf16.mxu0 %v2522
      %2625 = vmatpush1.bf16.msra.mxu0 %v2521
      %2626 = vmatprep.subr.bf16.mxu0 %v2526
      %2627 = vmatpush1.bf16.msra.mxu0 %v2525
      %2628 = vmatprep.subr.bf16.mxu0 %v2530
      %2629 = vmatpush1.bf16.msra.mxu0 %v2529
      %2630 = vmatprep.subr.bf16.mxu0 %v2534
      %2631 = vmatpush1.bf16.msra.mxu0 %v2533
      %2632 = vmatprep.subr.bf16.mxu0 %v2538
      %2633 = vmatpush1.bf16.msra.mxu0 %v2537
      %2634 = vmatprep.subr.bf16.mxu0 %v2542
      %2635 = vmatpush1.bf16.msra.mxu0 %v2541
      %2636 = vmatprep.subr.bf16.mxu0 %v2546
      %2637 = vmatpush1.bf16.msra.mxu0 %v2545
      %2638 = vmatprep.subr.bf16.mxu0 %v2550
      %2639 = vmatpush1.bf16.msra.mxu0 %v2549
      %2640 = vmatprep.subr.bf16.mxu0 0
      %2641 = vmatpush1.bf16.msra.mxu0 0
      %2642 = vmatprep.subr.bf16.mxu0 0
      %2643 = vmatpush1.bf16.msra.mxu0 0
      %2644 = vmatprep.subr.bf16.mxu0 0
      %2645 = vmatpush1.bf16.msra.mxu0 0
      %2646 = vmatprep.subr.bf16.mxu0 0
      %2647 = vmatpush1.bf16.msra.mxu0 0
      %2648 = vmatprep.subr.bf16.mxu0 0
      %2649 = vmatpush1.bf16.msra.mxu0 0
      %2650 = vmatprep.subr.bf16.mxu0 0
      %2651 = vmatpush1.bf16.msra.mxu0 0
      %2652 = vmatprep.subr.bf16.mxu0 0
      %2653 = vmatpush1.bf16.msra.mxu0 0
      %2654 = vmatprep.subr.bf16.mxu0 0
      %2655 = vmatpush1.bf16.msra.mxu0 0
      %2656 = vmatprep.mubr.bf16.mxu0 0
      %2657 = vmatmul.mubr.bf16.gmra.mrb[0].mxu0 %v1728
      %v2658 = vpop.f32.mrb[0].mxu0
      %v2659 = vadd.f32 %v2417, %v2658
      %v2660 = vpop.f32.mrb[0].mxu0
      %v2661 = vadd.f32 %v2419, %v2660
      %v2662 = vpop.f32.mrb[0].mxu0
      %v2663 = vpop.f32.mrb[0].mxu0
      %2664 = vdwg.mxu0
      %s2665 = scalar_lea.vmem %s267, 128
      %v2666 = vld [vmem:[%s2665] sm:$0xff]
      %v2667 = vld [vmem:[%s2665 + $0x8] sm:$0xff]
      %v2668 = vld [vmem:[%s2665 + $0x10] sm:$0xff]
      %v2669 = vld [vmem:[%s2665 + $0x18] sm:$0xff]
      %v2670 = vld [vmem:[%s2665 + $0x20] sm:$0xff]
      %v2671 = vld [vmem:[%s2665 + $0x28] sm:$0xff]
      %v2672 = vld [vmem:[%s2665 + $0x30] sm:$0xff]
      %v2673 = vld [vmem:[%s2665 + $0x38] sm:$0xff]
      %v2682 = vunpack.c.l.b16 %v2666
      %v2683 = vunpack.c.h.b16 %v2666
      %v2684 = vunpack.c.l.b16 %v2667
      %v2685 = vunpack.c.h.b16 %v2667
      %v2686 = vunpack.c.l.b16 %v2668
      %v2687 = vunpack.c.h.b16 %v2668
      %v2688 = vunpack.c.l.b16 %v2669
      %v2689 = vunpack.c.h.b16 %v2669
      %v2690 = vunpack.c.l.b16 %v2670
      %v2691 = vunpack.c.h.b16 %v2670
      %v2692 = vunpack.c.l.b16 %v2671
      %v2693 = vunpack.c.h.b16 %v2671
      %v2694 = vunpack.c.l.b16 %v2672
      %v2695 = vunpack.c.h.b16 %v2672
      %v2696 = vunpack.c.l.b16 %v2673
      %v2697 = vunpack.c.h.b16 %v2673
      %v2698 = vpack.c.b16 %v2682, %v2682
      %v2699 = vpack.c.b16 %v2683, %v2683
      %v2700 = vpack.c.b16 %v2684, %v2684
      %v2701 = vpack.c.b16 %v2685, %v2685
      %v2702 = vpack.c.b16 %v2686, %v2686
      %v2703 = vpack.c.b16 %v2687, %v2687
      %v2704 = vpack.c.b16 %v2688, %v2688
      %v2705 = vpack.c.b16 %v2689, %v2689
      %v2706 = vpack.c.b16 %v2690, %v2690
      %v2707 = vpack.c.b16 %v2691, %v2691
      %v2708 = vpack.c.b16 %v2692, %v2692
      %v2709 = vpack.c.b16 %v2693, %v2693
      %v2710 = vpack.c.b16 %v2694, %v2694
      %v2711 = vpack.c.b16 %v2695, %v2695
      %v2712 = vpack.c.b16 %v2696, %v2696
      %v2713 = vpack.c.b16 %v2697, %v2697
      %2730 = vmatprep.subr.bf16.mxu0 0
      %2731 = vmatpush1.bf16.msra.mxu0 %v1151
      %2732 = vmatprep.subr.bf16.mxu0 0
      %2733 = vmatpush1.bf16.msra.mxu0 %v1152
      %2734 = vmatprep.subr.bf16.mxu0 0
      %2735 = vmatpush1.bf16.msra.mxu0 %v1153
      %2736 = vmatprep.subr.bf16.mxu0 0
      %2737 = vmatpush1.bf16.msra.mxu0 %v1154
      %2738 = vmatprep.subr.bf16.mxu0 0
      %2739 = vmatpush1.bf16.msra.mxu0 %v1155
      %2740 = vmatprep.subr.bf16.mxu0 0
      %2741 = vmatpush1.bf16.msra.mxu0 %v1156
      %2742 = vmatprep.subr.bf16.mxu0 0
      %2743 = vmatpush1.bf16.msra.mxu0 %v1157
      %2744 = vmatprep.subr.bf16.mxu0 0
      %2745 = vmatpush1.bf16.msra.mxu0 %v1158
      %2746 = vmatprep.subr.bf16.mxu0 0
      %2747 = vmatpush1.bf16.msra.mxu0 %v1159
      %2748 = vmatprep.subr.bf16.mxu0 0
      %2749 = vmatpush1.bf16.msra.mxu0 %v1160
      %2750 = vmatprep.subr.bf16.mxu0 0
      %2751 = vmatpush1.bf16.msra.mxu0 %v1161
      %2752 = vmatprep.subr.bf16.mxu0 0
      %2753 = vmatpush1.bf16.msra.mxu0 %v1162
      %2754 = vmatprep.subr.bf16.mxu0 0
      %2755 = vmatpush1.bf16.msra.mxu0 %v1163
      %2756 = vmatprep.subr.bf16.mxu0 0
      %2757 = vmatpush1.bf16.msra.mxu0 %v1164
      %2758 = vmatprep.subr.bf16.mxu0 0
      %2759 = vmatpush1.bf16.msra.mxu0 %v1165
      %2760 = vmatprep.subr.bf16.mxu0 0
      %2761 = vmatpush1.bf16.msra.mxu0 %v1166
      %2762 = vmatprep.mubr.bf16.mxu0 %v2699
      %2763 = vmatmul.mubr.bf16.gmra.mrb[0].mxu0 %v2698
      %v2764 = vpop.f32.mrb[0].mxu0
      %v2765 = vadd.f32 %v581, %v2764
      %v2766 = vpop.f32.mrb[0].mxu0
      %v2767 = vpop.f32.mrb[0].mxu0
      %v2768 = vpop.f32.mrb[0].mxu0
      %2769 = vdwg.mxu0
      %2770 = vmatprep.subr.bf16.mxu0 0
      %2771 = vmatpush1.bf16.msra.mxu0 %v1167
      %2772 = vmatprep.subr.bf16.mxu0 0
      %2773 = vmatpush1.bf16.msra.mxu0 %v1168
      %2774 = vmatprep.subr.bf16.mxu0 0
      %2775 = vmatpush1.bf16.msra.mxu0 %v1169
      %2776 = vmatprep.subr.bf16.mxu0 0
      %2777 = vmatpush1.bf16.msra.mxu0 %v1170
      %2778 = vmatprep.subr.bf16.mxu0 0
      %2779 = vmatpush1.bf16.msra.mxu0 %v1171
      %2780 = vmatprep.subr.bf16.mxu0 0
      %2781 = vmatpush1.bf16.msra.mxu0 %v1172
      %2782 = vmatprep.subr.bf16.mxu0 0
      %2783 = vmatpush1.bf16.msra.mxu0 %v1173
      %2784 = vmatprep.subr.bf16.mxu0 0
      %2785 = vmatpush1.bf16.msra.mxu0 %v1174
      %2786 = vmatprep.subr.bf16.mxu0 0
      %2787 = vmatpush1.bf16.msra.mxu0 %v1175
      %2788 = vmatprep.subr.bf16.mxu0 0
      %2789 = vmatpush1.bf16.msra.mxu0 %v1176
      %2790 = vmatprep.subr.bf16.mxu0 0
      %2791 = vmatpush1.bf16.msra.mxu0 %v1177
      %2792 = vmatprep.subr.bf16.mxu0 0
      %2793 = vmatpush1.bf16.msra.mxu0 %v1178
      %2794 = vmatprep.subr.bf16.mxu0 0
      %2795 = vmatpush1.bf16.msra.mxu0 %v1179
      %2796 = vmatprep.subr.bf16.mxu0 0
      %2797 = vmatpush1.bf16.msra.mxu0 %v1180
      %2798 = vmatprep.subr.bf16.mxu0 0
      %2799 = vmatpush1.bf16.msra.mxu0 %v1181
      %2800 = vmatprep.subr.bf16.mxu0 0
      %2801 = vmatpush1.bf16.msra.mxu0 %v1182
      %2802 = vmatprep.mubr.bf16.mxu0 %v2701
      %2803 = vmatmul.mubr.bf16.gmra.mrb[0].mxu0 %v2700
      %v2804 = vpop.f32.mrb[0].mxu0
      %v2805 = vadd.f32 %v2765, %v2804
      %v2806 = vpop.f32.mrb[0].mxu0
      %v2807 = vpop.f32.mrb[0].mxu0
      %v2808 = vpop.f32.mrb[0].mxu0
      %2809 = vdwg.mxu0
      %2810 = vmatprep.subr.bf16.mxu0 0
      %2811 = vmatpush1.bf16.msra.mxu0 %v1183
      %2812 = vmatprep.subr.bf16.mxu0 0
      %2813 = vmatpush1.bf16.msra.mxu0 %v1184
      %2814 = vmatprep.subr.bf16.mxu0 0
      %2815 = vmatpush1.bf16.msra.mxu0 %v1185
      %2816 = vmatprep.subr.bf16.mxu0 0
      %2817 = vmatpush1.bf16.msra.mxu0 %v1186
      %2818 = vmatprep.subr.bf16.mxu0 0
      %2819 = vmatpush1.bf16.msra.mxu0 %v1187
      %2820 = vmatprep.subr.bf16.mxu0 0
      %2821 = vmatpush1.bf16.msra.mxu0 %v1188
      %2822 = vmatprep.subr.bf16.mxu0 0
      %2823 = vmatpush1.bf16.msra.mxu0 %v1189
      %2824 = vmatprep.subr.bf16.mxu0 0
      %2825 = vmatpush1.bf16.msra.mxu0 %v1190
      %2826 = vmatprep.subr.bf16.mxu0 0
      %2827 = vmatpush1.bf16.msra.mxu0 %v1191
      %2828 = vmatprep.subr.bf16.mxu0 0
      %2829 = vmatpush1.bf16.msra.mxu0 %v1192
      %2830 = vmatprep.subr.bf16.mxu0 0
      %2831 = vmatpush1.bf16.msra.mxu0 %v1193
      %2832 = vmatprep.subr.bf16.mxu0 0
      %2833 = vmatpush1.bf16.msra.mxu0 %v1194
      %2834 = vmatprep.subr.bf16.mxu0 0
      %2835 = vmatpush1.bf16.msra.mxu0 %v1195
      %2836 = vmatprep.subr.bf16.mxu0 0
      %2837 = vmatpush1.bf16.msra.mxu0 %v1196
      %2838 = vmatprep.subr.bf16.mxu0 0
      %2839 = vmatpush1.bf16.msra.mxu0 %v1197
      %2840 = vmatprep.subr.bf16.mxu0 0
      %2841 = vmatpush1.bf16.msra.mxu0 %v1198
      %2842 = vmatprep.mubr.bf16.mxu0 %v2703
      %2843 = vmatmul.mubr.bf16.gmra.mrb[0].mxu0 %v2702
      %v2844 = vpop.f32.mrb[0].mxu0
      %v2845 = vadd.f32 %v2805, %v2844
      %v2846 = vpop.f32.mrb[0].mxu0
      %v2847 = vpop.f32.mrb[0].mxu0
      %v2848 = vpop.f32.mrb[0].mxu0
      %2849 = vdwg.mxu0
      %2850 = vmatprep.subr.bf16.mxu0 0
      %2851 = vmatpush1.bf16.msra.mxu0 %v1199
      %2852 = vmatprep.subr.bf16.mxu0 0
      %2853 = vmatpush1.bf16.msra.mxu0 %v1200
      %2854 = vmatprep.subr.bf16.mxu0 0
      %2855 = vmatpush1.bf16.msra.mxu0 %v1201
      %2856 = vmatprep.subr.bf16.mxu0 0
      %2857 = vmatpush1.bf16.msra.mxu0 %v1202
      %2858 = vmatprep.subr.bf16.mxu0 0
      %2859 = vmatpush1.bf16.msra.mxu0 %v1203
      %2860 = vmatprep.subr.bf16.mxu0 0
      %2861 = vmatpush1.bf16.msra.mxu0 %v1204
      %2862 = vmatprep.subr.bf16.mxu0 0
      %2863 = vmatpush1.bf16.msra.mxu0 %v1205
      %2864 = vmatprep.subr.bf16.mxu0 0
      %2865 = vmatpush1.bf16.msra.mxu0 %v1206
      %2866 = vmatprep.subr.bf16.mxu0 0
      %2867 = vmatpush1.bf16.msra.mxu0 %v1207
      %2868 = vmatprep.subr.bf16.mxu0 0
      %2869 = vmatpush1.bf16.msra.mxu0 %v1208
      %2870 = vmatprep.subr.bf16.mxu0 0
      %2871 = vmatpush1.bf16.msra.mxu0 %v1209
      %2872 = vmatprep.subr.bf16.mxu0 0
      %2873 = vmatpush1.bf16.msra.mxu0 %v1210
      %2874 = vmatprep.subr.bf16.mxu0 0
      %2875 = vmatpush1.bf16.msra.mxu0 %v1211
      %2876 = vmatprep.subr.bf16.mxu0 0
      %2877 = vmatpush1.bf16.msra.mxu0 %v1212
      %2878 = vmatprep.subr.bf16.mxu0 0
      %2879 = vmatpush1.bf16.msra.mxu0 %v1213
      %2880 = vmatprep.subr.bf16.mxu0 0
      %2881 = vmatpush1.bf16.msra.mxu0 %v1214
      %2882 = vmatprep.mubr.bf16.mxu0 %v2705
      %2883 = vmatmul.mubr.bf16.gmra.mrb[0].mxu0 %v2704
      %v2884 = vpop.f32.mrb[0].mxu0
      %v2885 = vadd.f32 %v2845, %v2884
      %v2886 = vpop.f32.mrb[0].mxu0
      %v2887 = vpop.f32.mrb[0].mxu0
      %v2888 = vpop.f32.mrb[0].mxu0
      %2889 = vdwg.mxu0
      %2890 = vmatprep.subr.bf16.mxu0 0
      %2891 = vmatpush1.bf16.msra.mxu0 %v1215
      %2892 = vmatprep.subr.bf16.mxu0 0
      %2893 = vmatpush1.bf16.msra.mxu0 %v1216
      %2894 = vmatprep.subr.bf16.mxu0 0
      %2895 = vmatpush1.bf16.msra.mxu0 %v1217
      %2896 = vmatprep.subr.bf16.mxu0 0
      %2897 = vmatpush1.bf16.msra.mxu0 %v1218
      %2898 = vmatprep.subr.bf16.mxu0 0
      %2899 = vmatpush1.bf16.msra.mxu0 %v1219
      %2900 = vmatprep.subr.bf16.mxu0 0
      %2901 = vmatpush1.bf16.msra.mxu0 %v1220
      %2902 = vmatprep.subr.bf16.mxu0 0
      %2903 = vmatpush1.bf16.msra.mxu0 %v1221
      %2904 = vmatprep.subr.bf16.mxu0 0
      %2905 = vmatpush1.bf16.msra.mxu0 %v1222
      %2906 = vmatprep.subr.bf16.mxu0 0
      %2907 = vmatpush1.bf16.msra.mxu0 %v1223
      %2908 = vmatprep.subr.bf16.mxu0 0
      %2909 = vmatpush1.bf16.msra.mxu0 %v1224
      %2910 = vmatprep.subr.bf16.mxu0 0
      %2911 = vmatpush1.bf16.msra.mxu0 %v1225
      %2912 = vmatprep.subr.bf16.mxu0 0
      %2913 = vmatpush1.bf16.msra.mxu0 %v1226
      %2914 = vmatprep.subr.bf16.mxu0 0
      %2915 = vmatpush1.bf16.msra.mxu0 %v1227
      %2916 = vmatprep.subr.bf16.mxu0 0
      %2917 = vmatpush1.bf16.msra.mxu0 %v1228
      %2918 = vmatprep.subr.bf16.mxu0 0
      %2919 = vmatpush1.bf16.msra.mxu0 %v1229
      %2920 = vmatprep.subr.bf16.mxu0 0
      %2921 = vmatpush1.bf16.msra.mxu0 %v1230
      %2922 = vmatprep.mubr.bf16.mxu0 %v2707
      %2923 = vmatmul.mubr.bf16.gmra.mrb[0].mxu0 %v2706
      %v2924 = vpop.f32.mrb[0].mxu0
      %v2925 = vadd.f32 %v2885, %v2924
      %v2926 = vpop.f32.mrb[0].mxu0
      %v2927 = vpop.f32.mrb[0].mxu0
      %v2928 = vpop.f32.mrb[0].mxu0
      %2929 = vdwg.mxu0
      %2930 = vmatprep.subr.bf16.mxu0 0
      %2931 = vmatpush1.bf16.msra.mxu0 %v1231
      %2932 = vmatprep.subr.bf16.mxu0 0
      %2933 = vmatpush1.bf16.msra.mxu0 %v1232
      %2934 = vmatprep.subr.bf16.mxu0 0
      %2935 = vmatpush1.bf16.msra.mxu0 %v1233
      %2936 = vmatprep.subr.bf16.mxu0 0
      %2937 = vmatpush1.bf16.msra.mxu0 %v1234
      %2938 = vmatprep.subr.bf16.mxu0 0
      %2939 = vmatpush1.bf16.msra.mxu0 %v1235
      %2940 = vmatprep.subr.bf16.mxu0 0
      %2941 = vmatpush1.bf16.msra.mxu0 %v1236
      %2942 = vmatprep.subr.bf16.mxu0 0
      %2943 = vmatpush1.bf16.msra.mxu0 %v1237
      %2944 = vmatprep.subr.bf16.mxu0 0
      %2945 = vmatpush1.bf16.msra.mxu0 %v1238
      %2946 = vmatprep.subr.bf16.mxu0 0
      %2947 = vmatpush1.bf16.msra.mxu0 %v1239
      %2948 = vmatprep.subr.bf16.mxu0 0
      %2949 = vmatpush1.bf16.msra.mxu0 %v1240
      %2950 = vmatprep.subr.bf16.mxu0 0
      %2951 = vmatpush1.bf16.msra.mxu0 %v1241
      %2952 = vmatprep.subr.bf16.mxu0 0
      %2953 = vmatpush1.bf16.msra.mxu0 %v1242
      %2954 = vmatprep.subr.bf16.mxu0 0
      %2955 = vmatpush1.bf16.msra.mxu0 %v1243
      %2956 = vmatprep.subr.bf16.mxu0 0
      %2957 = vmatpush1.bf16.msra.mxu0 %v1244
      %2958 = vmatprep.subr.bf16.mxu0 0
      %2959 = vmatpush1.bf16.msra.mxu0 %v1245
      %2960 = vmatprep.subr.bf16.mxu0 0
      %2961 = vmatpush1.bf16.msra.mxu0 %v1246
      %2962 = vmatprep.mubr.bf16.mxu0 %v2709
      %2963 = vmatmul.mubr.bf16.gmra.mrb[0].mxu0 %v2708
      %v2964 = vpop.f32.mrb[0].mxu0
      %v2965 = vadd.f32 %v2925, %v2964
      %v2966 = vpop.f32.mrb[0].mxu0
      %v2967 = vpop.f32.mrb[0].mxu0
      %v2968 = vpop.f32.mrb[0].mxu0
      %2969 = vdwg.mxu0
      %2970 = vmatprep.subr.bf16.mxu0 0
      %2971 = vmatpush1.bf16.msra.mxu0 %v1247
      %2972 = vmatprep.subr.bf16.mxu0 0
      %2973 = vmatpush1.bf16.msra.mxu0 %v1248
      %2974 = vmatprep.subr.bf16.mxu0 0
      %2975 = vmatpush1.bf16.msra.mxu0 %v1249
      %2976 = vmatprep.subr.bf16.mxu0 0
      %2977 = vmatpush1.bf16.msra.mxu0 %v1250
      %2978 = vmatprep.subr.bf16.mxu0 0
      %2979 = vmatpush1.bf16.msra.mxu0 %v1251
      %2980 = vmatprep.subr.bf16.mxu0 0
      %2981 = vmatpush1.bf16.msra.mxu0 %v1252
      %2982 = vmatprep.subr.bf16.mxu0 0
      %2983 = vmatpush1.bf16.msra.mxu0 %v1253
      %2984 = vmatprep.subr.bf16.mxu0 0
      %2985 = vmatpush1.bf16.msra.mxu0 %v1254
      %2986 = vmatprep.subr.bf16.mxu0 0
      %2987 = vmatpush1.bf16.msra.mxu0 %v1255
      %2988 = vmatprep.subr.bf16.mxu0 0
      %2989 = vmatpush1.bf16.msra.mxu0 %v1256
      %2990 = vmatprep.subr.bf16.mxu0 0
      %2991 = vmatpush1.bf16.msra.mxu0 %v1257
      %2992 = vmatprep.subr.bf16.mxu0 0
      %2993 = vmatpush1.bf16.msra.mxu0 %v1258
      %2994 = vmatprep.subr.bf16.mxu0 0
      %2995 = vmatpush1.bf16.msra.mxu0 %v1259
      %2996 = vmatprep.subr.bf16.mxu0 0
      %2997 = vmatpush1.bf16.msra.mxu0 %v1260
      %2998 = vmatprep.subr.bf16.mxu0 0
      %2999 = vmatpush1.bf16.msra.mxu0 %v1261
      %3000 = vmatprep.subr.bf16.mxu0 0
      %3001 = vmatpush1.bf16.msra.mxu0 %v1262
      %3002 = vmatprep.mubr.bf16.mxu0 %v2711
      %3003 = vmatmul.mubr.bf16.gmra.mrb[0].mxu0 %v2710
      %v3004 = vpop.f32.mrb[0].mxu0
      %v3005 = vadd.f32 %v2965, %v3004
      %v3006 = vpop.f32.mrb[0].mxu0
      %v3007 = vpop.f32.mrb[0].mxu0
      %v3008 = vpop.f32.mrb[0].mxu0
      %3009 = vdwg.mxu0
      %3010 = vmatprep.subr.bf16.mxu0 0
      %3011 = vmatpush1.bf16.msra.mxu0 %v1263
      %3012 = vmatprep.subr.bf16.mxu0 0
      %3013 = vmatpush1.bf16.msra.mxu0 %v1264
      %3014 = vmatprep.subr.bf16.mxu0 0
      %3015 = vmatpush1.bf16.msra.mxu0 %v1265
      %3016 = vmatprep.subr.bf16.mxu0 0
      %3017 = vmatpush1.bf16.msra.mxu0 %v1266
      %3018 = vmatprep.subr.bf16.mxu0 0
      %3019 = vmatpush1.bf16.msra.mxu0 %v1267
      %3020 = vmatprep.subr.bf16.mxu0 0
      %3021 = vmatpush1.bf16.msra.mxu0 %v1268
      %3022 = vmatprep.subr.bf16.mxu0 0
      %3023 = vmatpush1.bf16.msra.mxu0 %v1269
      %3024 = vmatprep.subr.bf16.mxu0 0
      %3025 = vmatpush1.bf16.msra.mxu0 %v1270
      %3026 = vmatprep.subr.bf16.mxu0 0
      %3027 = vmatpush1.bf16.msra.mxu0 %v1271
      %3028 = vmatprep.subr.bf16.mxu0 0
      %3029 = vmatpush1.bf16.msra.mxu0 %v1272
      %3030 = vmatprep.subr.bf16.mxu0 0
      %3031 = vmatpush1.bf16.msra.mxu0 %v1273
      %3032 = vmatprep.subr.bf16.mxu0 0
      %3033 = vmatpush1.bf16.msra.mxu0 %v1274
      %3034 = vmatprep.subr.bf16.mxu0 0
      %3035 = vmatpush1.bf16.msra.mxu0 %v1275
      %3036 = vmatprep.subr.bf16.mxu0 0
      %3037 = vmatpush1.bf16.msra.mxu0 %v1276
      %3038 = vmatprep.subr.bf16.mxu0 0
      %3039 = vmatpush1.bf16.msra.mxu0 %v1277
      %3040 = vmatprep.subr.bf16.mxu0 0
      %3041 = vmatpush1.bf16.msra.mxu0 %v1278
      %3042 = vmatprep.mubr.bf16.mxu0 %v2713
      %3043 = vmatmul.mubr.bf16.gmra.mrb[0].mxu0 %v2712
      %v3044 = vpop.f32.mrb[0].mxu0
      %v3045 = vadd.f32 %v3005, %v3044
      %v3046 = vpop.f32.mrb[0].mxu0
      %v3047 = vpop.f32.mrb[0].mxu0
      %v3048 = vpop.f32.mrb[0].mxu0
      %3049 = vdwg.mxu0
      %v3050 = vmax.f32 %v3045, 0.0
      %v3051 = vpack.c.bf16 %v3050, %v3050
      %s3052 = scalar_lea.vmem %s274, 512
      %v3053 = vld [vmem:[%s3052] sm:$0xff]
      %v3054 = vld [vmem:[%s3052 + $0x8] sm:$0xff]
      %v3055 = vld [vmem:[%s3052 + $0x10] sm:$0xff]
      %v3056 = vld [vmem:[%s3052 + $0x18] sm:$0xff]
      %v3057 = vld [vmem:[%s3052 + $0x20] sm:$0xff]
      %v3058 = vld [vmem:[%s3052 + $0x28] sm:$0xff]
      %v3059 = vld [vmem:[%s3052 + $0x30] sm:$0xff]
      %v3060 = vld [vmem:[%s3052 + $0x38] sm:$0xff]
      %v3061 = vld [vmem:[%s3052 + $0x40] sm:$0xff]
      %v3062 = vld [vmem:[%s3052 + $0x48] sm:$0xff]
      %v3063 = vld [vmem:[%s3052 + $0x50] sm:$0xff]
      %v3064 = vld [vmem:[%s3052 + $0x58] sm:$0xff]
      %v3065 = vld [vmem:[%s3052 + $0x60] sm:$0xff]
      %v3066 = vld [vmem:[%s3052 + $0x68] sm:$0xff]
      %v3067 = vld [vmem:[%s3052 + $0x70] sm:$0xff]
      %v3068 = vld [vmem:[%s3052 + $0x78] sm:$0xff]
      %v3069 = vld [vmem:[%s3052 + $0x80] sm:$0xff]
      %v3070 = vld [vmem:[%s3052 + $0x88] sm:$0xff]
      %v3071 = vld [vmem:[%s3052 + $0x90] sm:$0xff]
      %v3072 = vld [vmem:[%s3052 + $0x98] sm:$0xff]
      %v3073 = vld [vmem:[%s3052 + $0xa0] sm:$0xff]
      %v3074 = vld [vmem:[%s3052 + $0xa8] sm:$0xff]
      %v3075 = vld [vmem:[%s3052 + $0xb0] sm:$0xff]
      %v3076 = vld [vmem:[%s3052 + $0xb8] sm:$0xff]
      %v3077 = vld [vmem:[%s3052 + $0xc0] sm:$0xff]
      %v3078 = vld [vmem:[%s3052 + $0xc8] sm:$0xff]
      %v3079 = vld [vmem:[%s3052 + $0xd0] sm:$0xff]
      %v3080 = vld [vmem:[%s3052 + $0xd8] sm:$0xff]
      %v3081 = vld [vmem:[%s3052 + $0xe0] sm:$0xff]
      %v3082 = vld [vmem:[%s3052 + $0xe8] sm:$0xff]
      %v3083 = vld [vmem:[%s3052 + $0xf0] sm:$0xff]
      %v3084 = vld [vmem:[%s3052 + $0xf8] sm:$0xff]
      %v3117 = vunpack.c.l.b16 %v3053
      %v3118 = vunpack.c.h.b16 %v3053
      %v3119 = vunpack.c.l.b16 %v3054
      %v3120 = vunpack.c.h.b16 %v3054
      %v3121 = vunpack.c.l.b16 %v3055
      %v3122 = vunpack.c.h.b16 %v3055
      %v3123 = vunpack.c.l.b16 %v3056
      %v3124 = vunpack.c.h.b16 %v3056
      %v3125 = vunpack.c.l.b16 %v3057
      %v3126 = vunpack.c.h.b16 %v3057
      %v3127 = vunpack.c.l.b16 %v3058
      %v3128 = vunpack.c.h.b16 %v3058
      %v3129 = vunpack.c.l.b16 %v3059
      %v3130 = vunpack.c.h.b16 %v3059
      %v3131 = vunpack.c.l.b16 %v3060
      %v3132 = vunpack.c.h.b16 %v3060
      %v3133 = vunpack.c.l.b16 %v3061
      %v3134 = vunpack.c.h.b16 %v3061
      %v3135 = vunpack.c.l.b16 %v3062
      %v3136 = vunpack.c.h.b16 %v3062
      %v3137 = vunpack.c.l.b16 %v3063
      %v3138 = vunpack.c.h.b16 %v3063
      %v3139 = vunpack.c.l.b16 %v3064
      %v3140 = vunpack.c.h.b16 %v3064
      %v3141 = vunpack.c.l.b16 %v3065
      %v3142 = vunpack.c.h.b16 %v3065
      %v3143 = vunpack.c.l.b16 %v3066
      %v3144 = vunpack.c.h.b16 %v3066
      %v3145 = vunpack.c.l.b16 %v3067
      %v3146 = vunpack.c.h.b16 %v3067
      %v3147 = vunpack.c.l.b16 %v3068
      %v3148 = vunpack.c.h.b16 %v3068
      %v3149 = vunpack.c.l.b16 %v3069
      %v3150 = vunpack.c.h.b16 %v3069
      %v3151 = vunpack.c.l.b16 %v3070
      %v3152 = vunpack.c.h.b16 %v3070
      %v3153 = vunpack.c.l.b16 %v3071
      %v3154 = vunpack.c.h.b16 %v3071
      %v3155 = vunpack.c.l.b16 %v3072
      %v3156 = vunpack.c.h.b16 %v3072
      %v3157 = vunpack.c.l.b16 %v3073
      %v3158 = vunpack.c.h.b16 %v3073
      %v3159 = vunpack.c.l.b16 %v3074
      %v3160 = vunpack.c.h.b16 %v3074
      %v3161 = vunpack.c.l.b16 %v3075
      %v3162 = vunpack.c.h.b16 %v3075
      %v3163 = vunpack.c.l.b16 %v3076
      %v3164 = vunpack.c.h.b16 %v3076
      %v3165 = vunpack.c.l.b16 %v3077
      %v3166 = vunpack.c.h.b16 %v3077
      %v3167 = vunpack.c.l.b16 %v3078
      %v3168 = vunpack.c.h.b16 %v3078
      %v3169 = vunpack.c.l.b16 %v3079
      %v3170 = vunpack.c.h.b16 %v3079
      %v3171 = vunpack.c.l.b16 %v3080
      %v3172 = vunpack.c.h.b16 %v3080
      %v3173 = vunpack.c.l.b16 %v3081
      %v3174 = vunpack.c.h.b16 %v3081
      %v3175 = vunpack.c.l.b16 %v3082
      %v3176 = vunpack.c.h.b16 %v3082
      %v3177 = vunpack.c.l.b16 %v3083
      %v3178 = vunpack.c.h.b16 %v3083
      %v3179 = vunpack.c.l.b16 %v3084
      %v3180 = vunpack.c.h.b16 %v3084
      %v3181 = vpack.c.b16 %v3121, %v3117
      %v3182 = vpack.c.b16 %v3122, %v3118
      %v3183 = vpack.c.b16 %v3123, %v3119
      %v3184 = vpack.c.b16 %v3124, %v3120
      %v3185 = vpack.c.b16 %v3129, %v3125
      %v3186 = vpack.c.b16 %v3130, %v3126
      %v3187 = vpack.c.b16 %v3131, %v3127
      %v3188 = vpack.c.b16 %v3132, %v3128
      %v3189 = vpack.c.b16 %v3137, %v3133
      %v3190 = vpack.c.b16 %v3138, %v3134
      %v3191 = vpack.c.b16 %v3139, %v3135
      %v3192 = vpack.c.b16 %v3140, %v3136
      %v3193 = vpack.c.b16 %v3145, %v3141
      %v3194 = vpack.c.b16 %v3146, %v3142
      %v3195 = vpack.c.b16 %v3147, %v3143
      %v3196 = vpack.c.b16 %v3148, %v3144
      %v3197 = vpack.c.b16 %v3153, %v3149
      %v3198 = vpack.c.b16 %v3154, %v3150
      %v3199 = vpack.c.b16 %v3155, %v3151
      %v3200 = vpack.c.b16 %v3156, %v3152
      %v3201 = vpack.c.b16 %v3161, %v3157
      %v3202 = vpack.c.b16 %v3162, %v3158
      %v3203 = vpack.c.b16 %v3163, %v3159
      %v3204 = vpack.c.b16 %v3164, %v3160
      %v3205 = vpack.c.b16 %v3169, %v3165
      %v3206 = vpack.c.b16 %v3170, %v3166
      %v3207 = vpack.c.b16 %v3171, %v3167
      %v3208 = vpack.c.b16 %v3172, %v3168
      %v3209 = vpack.c.b16 %v3177, %v3173
      %v3210 = vpack.c.b16 %v3178, %v3174
      %v3211 = vpack.c.b16 %v3179, %v3175
      %v3212 = vpack.c.b16 %v3180, %v3176
      %3245 = vmatprep.subr.bf16.mxu0 %v3182
      %3246 = vmatpush1.bf16.msra.mxu0 %v3181
      %3247 = vmatprep.subr.bf16.mxu0 %v3186
      %3248 = vmatpush1.bf16.msra.mxu0 %v3185
      %3249 = vmatprep.subr.bf16.mxu0 %v3190
      %3250 = vmatpush1.bf16.msra.mxu0 %v3189
      %3251 = vmatprep.subr.bf16.mxu0 %v3194
      %3252 = vmatpush1.bf16.msra.mxu0 %v3193
      %3253 = vmatprep.subr.bf16.mxu0 %v3198
      %3254 = vmatpush1.bf16.msra.mxu0 %v3197
      %3255 = vmatprep.subr.bf16.mxu0 %v3202
      %3256 = vmatpush1.bf16.msra.mxu0 %v3201
      %3257 = vmatprep.subr.bf16.mxu0 %v3206
      %3258 = vmatpush1.bf16.msra.mxu0 %v3205
      %3259 = vmatprep.subr.bf16.mxu0 %v3210
      %3260 = vmatpush1.bf16.msra.mxu0 %v3209
      %3261 = vmatprep.subr.bf16.mxu0 0
      %3262 = vmatpush1.bf16.msra.mxu0 0
      %3263 = vmatprep.subr.bf16.mxu0 0
      %3264 = vmatpush1.bf16.msra.mxu0 0
      %3265 = vmatprep.subr.bf16.mxu0 0
      %3266 = vmatpush1.bf16.msra.mxu0 0
      %3267 = vmatprep.subr.bf16.mxu0 0
      %3268 = vmatpush1.bf16.msra.mxu0 0
      %3269 = vmatprep.subr.bf16.mxu0 0
      %3270 = vmatpush1.bf16.msra.mxu0 0
      %3271 = vmatprep.subr.bf16.mxu0 0
      %3272 = vmatpush1.bf16.msra.mxu0 0
      %3273 = vmatprep.subr.bf16.mxu0 0
      %3274 = vmatpush1.bf16.msra.mxu0 0
      %3275 = vmatprep.subr.bf16.mxu0 0
      %3276 = vmatpush1.bf16.msra.mxu0 0
      %3277 = vmatprep.mubr.bf16.mxu0 0
      %3278 = vmatmul.mubr.bf16.gmra.mrb[0].mxu0 %v3051
      %v3279 = vpop.f32.mrb[0].mxu0
      %v3280 = vadd.f32 0.0, %v3279
      %v3281 = vpop.f32.mrb[0].mxu0
      %v3282 = vadd.f32 0.0, %v3281
      %v3283 = vpop.f32.mrb[0].mxu0
      %v3284 = vpop.f32.mrb[0].mxu0
      %3285 = vdwg.mxu0
      %3286 = vmatprep.subr.bf16.mxu0 %v3184
      %3287 = vmatpush1.bf16.msra.mxu0 %v3183
      %3288 = vmatprep.subr.bf16.mxu0 %v3188
      %3289 = vmatpush1.bf16.msra.mxu0 %v3187
      %3290 = vmatprep.subr.bf16.mxu0 %v3192
      %3291 = vmatpush1.bf16.msra.mxu0 %v3191
      %3292 = vmatprep.subr.bf16.mxu0 %v3196
      %3293 = vmatpush1.bf16.msra.mxu0 %v3195
      %3294 = vmatprep.subr.bf16.mxu0 %v3200
      %3295 = vmatpush1.bf16.msra.mxu0 %v3199
      %3296 = vmatprep.subr.bf16.mxu0 %v3204
      %3297 = vmatpush1.bf16.msra.mxu0 %v3203
      %3298 = vmatprep.subr.bf16.mxu0 %v3208
      %3299 = vmatpush1.bf16.msra.mxu0 %v3207
      %3300 = vmatprep.subr.bf16.mxu0 %v3212
      %3301 = vmatpush1.bf16.msra.mxu0 %v3211
      %3302 = vmatprep.subr.bf16.mxu0 0
      %3303 = vmatpush1.bf16.msra.mxu0 0
      %3304 = vmatprep.subr.bf16.mxu0 0
      %3305 = vmatpush1.bf16.msra.mxu0 0
      %3306 = vmatprep.subr.bf16.mxu0 0
      %3307 = vmatpush1.bf16.msra.mxu0 0
      %3308 = vmatprep.subr.bf16.mxu0 0
      %3309 = vmatpush1.bf16.msra.mxu0 0
      %3310 = vmatprep.subr.bf16.mxu0 0
      %3311 = vmatpush1.bf16.msra.mxu0 0
      %3312 = vmatprep.subr.bf16.mxu0 0
      %3313 = vmatpush1.bf16.msra.mxu0 0
      %3314 = vmatprep.subr.bf16.mxu0 0
      %3315 = vmatpush1.bf16.msra.mxu0 0
      %3316 = vmatprep.subr.bf16.mxu0 0
      %3317 = vmatpush1.bf16.msra.mxu0 0
      %3318 = vmatprep.mubr.bf16.mxu0 0
      %3319 = vmatmul.mubr.bf16.gmra.mrb[0].mxu0 %v3051
      %v3320 = vpop.f32.mrb[0].mxu0
      %v3321 = vadd.f32 0.0, %v3320
      %v3322 = vpop.f32.mrb[0].mxu0
      %v3323 = vadd.f32 0.0, %v3322
      %v3324 = vpop.f32.mrb[0].mxu0
      %v3325 = vpop.f32.mrb[0].mxu0
      %3326 = vdwg.mxu0
      %v3327 = vadd.f32 %v2618, %v3280
      %v3328 = vadd.f32 %v2620, %v3282
      %v3329 = vadd.f32 %v2659, %v3321
      %v3330 = vadd.f32 %v2661, %v3323
      %s3331 = scalar_lea.vmem %s267, 192
      %v3332 = vld [vmem:[%s3331] sm:$0xff]
      %v3333 = vld [vmem:[%s3331 + $0x8] sm:$0xff]
      %v3334 = vld [vmem:[%s3331 + $0x10] sm:$0xff]
      %v3335 = vld [vmem:[%s3331 + $0x18] sm:$0xff]
      %v3336 = vld [vmem:[%s3331 + $0x20] sm:$0xff]
      %v3337 = vld [vmem:[%s3331 + $0x28] sm:$0xff]
      %v3338 = vld [vmem:[%s3331 + $0x30] sm:$0xff]
      %v3339 = vld [vmem:[%s3331 + $0x38] sm:$0xff]
      %v3348 = vunpack.c.l.b16 %v3332
      %v3349 = vunpack.c.h.b16 %v3332
      %v3350 = vunpack.c.l.b16 %v3333
      %v3351 = vunpack.c.h.b16 %v3333
      %v3352 = vunpack.c.l.b16 %v3334
      %v3353 = vunpack.c.h.b16 %v3334
      %v3354 = vunpack.c.l.b16 %v3335
      %v3355 = vunpack.c.h.b16 %v3335
      %v3356 = vunpack.c.l.b16 %v3336
      %v3357 = vunpack.c.h.b16 %v3336
      %v3358 = vunpack.c.l.b16 %v3337
      %v3359 = vunpack.c.h.b16 %v3337
      %v3360 = vunpack.c.l.b16 %v3338
      %v3361 = vunpack.c.h.b16 %v3338
      %v3362 = vunpack.c.l.b16 %v3339
      %v3363 = vunpack.c.h.b16 %v3339
      %v3364 = vpack.c.b16 %v3348, %v3348
      %v3365 = vpack.c.b16 %v3349, %v3349
      %v3366 = vpack.c.b16 %v3350, %v3350
      %v3367 = vpack.c.b16 %v3351, %v3351
      %v3368 = vpack.c.b16 %v3352, %v3352
      %v3369 = vpack.c.b16 %v3353, %v3353
      %v3370 = vpack.c.b16 %v3354, %v3354
      %v3371 = vpack.c.b16 %v3355, %v3355
      %v3372 = vpack.c.b16 %v3356, %v3356
      %v3373 = vpack.c.b16 %v3357, %v3357
      %v3374 = vpack.c.b16 %v3358, %v3358
      %v3375 = vpack.c.b16 %v3359, %v3359
      %v3376 = vpack.c.b16 %v3360, %v3360
      %v3377 = vpack.c.b16 %v3361, %v3361
      %v3378 = vpack.c.b16 %v3362, %v3362
      %v3379 = vpack.c.b16 %v3363, %v3363
      %3396 = vmatprep.subr.bf16.mxu0 0
      %3397 = vmatpush1.bf16.msra.mxu0 %v1151
      %3398 = vmatprep.subr.bf16.mxu0 0
      %3399 = vmatpush1.bf16.msra.mxu0 %v1152
      %3400 = vmatprep.subr.bf16.mxu0 0
      %3401 = vmatpush1.bf16.msra.mxu0 %v1153
      %3402 = vmatprep.subr.bf16.mxu0 0
      %3403 = vmatpush1.bf16.msra.mxu0 %v1154
      %3404 = vmatprep.subr.bf16.mxu0 0
      %3405 = vmatpush1.bf16.msra.mxu0 %v1155
      %3406 = vmatprep.subr.bf16.mxu0 0
      %3407 = vmatpush1.bf16.msra.mxu0 %v1156
      %3408 = vmatprep.subr.bf16.mxu0 0
      %3409 = vmatpush1.bf16.msra.mxu0 %v1157
      %3410 = vmatprep.subr.bf16.mxu0 0
      %3411 = vmatpush1.bf16.msra.mxu0 %v1158
      %3412 = vmatprep.subr.bf16.mxu0 0
      %3413 = vmatpush1.bf16.msra.mxu0 %v1159
      %3414 = vmatprep.subr.bf16.mxu0 0
      %3415 = vmatpush1.bf16.msra.mxu0 %v1160
      %3416 = vmatprep.subr.bf16.mxu0 0
      %3417 = vmatpush1.bf16.msra.mxu0 %v1161
      %3418 = vmatprep.subr.bf16.mxu0 0
      %3419 = vmatpush1.bf16.msra.mxu0 %v1162
      %3420 = vmatprep.subr.bf16.mxu0 0
      %3421 = vmatpush1.bf16.msra.mxu0 %v1163
      %3422 = vmatprep.subr.bf16.mxu0 0
      %3423 = vmatpush1.bf16.msra.mxu0 %v1164
      %3424 = vmatprep.subr.bf16.mxu0 0
      %3425 = vmatpush1.bf16.msra.mxu0 %v1165
      %3426 = vmatprep.subr.bf16.mxu0 0
      %3427 = vmatpush1.bf16.msra.mxu0 %v1166
      %3428 = vmatprep.mubr.bf16.mxu0 %v3365
      %3429 = vmatmul.mubr.bf16.gmra.mrb[0].mxu0 %v3364
      %v3430 = vpop.f32.mrb[0].mxu0
      %v3431 = vadd.f32 %v581, %v3430
      %v3432 = vpop.f32.mrb[0].mxu0
      %v3433 = vpop.f32.mrb[0].mxu0
      %v3434 = vpop.f32.mrb[0].mxu0
      %3435 = vdwg.mxu0
      %3436 = vmatprep.subr.bf16.mxu0 0
      %3437 = vmatpush1.bf16.msra.mxu0 %v1167
      %3438 = vmatprep.subr.bf16.mxu0 0
      %3439 = vmatpush1.bf16.msra.mxu0 %v1168
      %3440 = vmatprep.subr.bf16.mxu0 0
      %3441 = vmatpush1.bf16.msra.mxu0 %v1169
      %3442 = vmatprep.subr.bf16.mxu0 0
      %3443 = vmatpush1.bf16.msra.mxu0 %v1170
      %3444 = vmatprep.subr.bf16.mxu0 0
      %3445 = vmatpush1.bf16.msra.mxu0 %v1171
      %3446 = vmatprep.subr.bf16.mxu0 0
      %3447 = vmatpush1.bf16.msra.mxu0 %v1172
      %3448 = vmatprep.subr.bf16.mxu0 0
      %3449 = vmatpush1.bf16.msra.mxu0 %v1173
      %3450 = vmatprep.subr.bf16.mxu0 0
      %3451 = vmatpush1.bf16.msra.mxu0 %v1174
      %3452 = vmatprep.subr.bf16.mxu0 0
      %3453 = vmatpush1.bf16.msra.mxu0 %v1175
      %3454 = vmatprep.subr.bf16.mxu0 0
      %3455 = vmatpush1.bf16.msra.mxu0 %v1176
      %3456 = vmatprep.subr.bf16.mxu0 0
      %3457 = vmatpush1.bf16.msra.mxu0 %v1177
      %3458 = vmatprep.subr.bf16.mxu0 0
      %3459 = vmatpush1.bf16.msra.mxu0 %v1178
      %3460 = vmatprep.subr.bf16.mxu0 0
      %3461 = vmatpush1.bf16.msra.mxu0 %v1179
      %3462 = vmatprep.subr.bf16.mxu0 0
      %3463 = vmatpush1.bf16.msra.mxu0 %v1180
      %3464 = vmatprep.subr.bf16.mxu0 0
      %3465 = vmatpush1.bf16.msra.mxu0 %v1181
      %3466 = vmatprep.subr.bf16.mxu0 0
      %3467 = vmatpush1.bf16.msra.mxu0 %v1182
      %3468 = vmatprep.mubr.bf16.mxu0 %v3367
      %3469 = vmatmul.mubr.bf16.gmra.mrb[0].mxu0 %v3366
      %v3470 = vpop.f32.mrb[0].mxu0
      %v3471 = vadd.f32 %v3431, %v3470
      %v3472 = vpop.f32.mrb[0].mxu0
      %v3473 = vpop.f32.mrb[0].mxu0
      %v3474 = vpop.f32.mrb[0].mxu0
      %3475 = vdwg.mxu0
      %3476 = vmatprep.subr.bf16.mxu0 0
      %3477 = vmatpush1.bf16.msra.mxu0 %v1183
      %3478 = vmatprep.subr.bf16.mxu0 0
      %3479 = vmatpush1.bf16.msra.mxu0 %v1184
      %3480 = vmatprep.subr.bf16.mxu0 0
      %3481 = vmatpush1.bf16.msra.mxu0 %v1185
      %3482 = vmatprep.subr.bf16.mxu0 0
      %3483 = vmatpush1.bf16.msra.mxu0 %v1186
      %3484 = vmatprep.subr.bf16.mxu0 0
      %3485 = vmatpush1.bf16.msra.mxu0 %v1187
      %3486 = vmatprep.subr.bf16.mxu0 0
      %3487 = vmatpush1.bf16.msra.mxu0 %v1188
      %3488 = vmatprep.subr.bf16.mxu0 0
      %3489 = vmatpush1.bf16.msra.mxu0 %v1189
      %3490 = vmatprep.subr.bf16.mxu0 0
      %3491 = vmatpush1.bf16.msra.mxu0 %v1190
      %3492 = vmatprep.subr.bf16.mxu0 0
      %3493 = vmatpush1.bf16.msra.mxu0 %v1191
      %3494 = vmatprep.subr.bf16.mxu0 0
      %3495 = vmatpush1.bf16.msra.mxu0 %v1192
      %3496 = vmatprep.subr.bf16.mxu0 0
      %3497 = vmatpush1.bf16.msra.mxu0 %v1193
      %3498 = vmatprep.subr.bf16.mxu0 0
      %3499 = vmatpush1.bf16.msra.mxu0 %v1194
      %3500 = vmatprep.subr.bf16.mxu0 0
      %3501 = vmatpush1.bf16.msra.mxu0 %v1195
      %3502 = vmatprep.subr.bf16.mxu0 0
      %3503 = vmatpush1.bf16.msra.mxu0 %v1196
      %3504 = vmatprep.subr.bf16.mxu0 0
      %3505 = vmatpush1.bf16.msra.mxu0 %v1197
      %3506 = vmatprep.subr.bf16.mxu0 0
      %3507 = vmatpush1.bf16.msra.mxu0 %v1198
      %3508 = vmatprep.mubr.bf16.mxu0 %v3369
      %3509 = vmatmul.mubr.bf16.gmra.mrb[0].mxu0 %v3368
      %v3510 = vpop.f32.mrb[0].mxu0
      %v3511 = vadd.f32 %v3471, %v3510
      %v3512 = vpop.f32.mrb[0].mxu0
      %v3513 = vpop.f32.mrb[0].mxu0
      %v3514 = vpop.f32.mrb[0].mxu0
      %3515 = vdwg.mxu0
      %3516 = vmatprep.subr.bf16.mxu0 0
      %3517 = vmatpush1.bf16.msra.mxu0 %v1199
      %3518 = vmatprep.subr.bf16.mxu0 0
      %3519 = vmatpush1.bf16.msra.mxu0 %v1200
      %3520 = vmatprep.subr.bf16.mxu0 0
      %3521 = vmatpush1.bf16.msra.mxu0 %v1201
      %3522 = vmatprep.subr.bf16.mxu0 0
      %3523 = vmatpush1.bf16.msra.mxu0 %v1202
      %3524 = vmatprep.subr.bf16.mxu0 0
      %3525 = vmatpush1.bf16.msra.mxu0 %v1203
      %3526 = vmatprep.subr.bf16.mxu0 0
      %3527 = vmatpush1.bf16.msra.mxu0 %v1204
      %3528 = vmatprep.subr.bf16.mxu0 0
      %3529 = vmatpush1.bf16.msra.mxu0 %v1205
      %3530 = vmatprep.subr.bf16.mxu0 0
      %3531 = vmatpush1.bf16.msra.mxu0 %v1206
      %3532 = vmatprep.subr.bf16.mxu0 0
      %3533 = vmatpush1.bf16.msra.mxu0 %v1207
      %3534 = vmatprep.subr.bf16.mxu0 0
      %3535 = vmatpush1.bf16.msra.mxu0 %v1208
      %3536 = vmatprep.subr.bf16.mxu0 0
      %3537 = vmatpush1.bf16.msra.mxu0 %v1209
      %3538 = vmatprep.subr.bf16.mxu0 0
      %3539 = vmatpush1.bf16.msra.mxu0 %v1210
      %3540 = vmatprep.subr.bf16.mxu0 0
      %3541 = vmatpush1.bf16.msra.mxu0 %v1211
      %3542 = vmatprep.subr.bf16.mxu0 0
      %3543 = vmatpush1.bf16.msra.mxu0 %v1212
      %3544 = vmatprep.subr.bf16.mxu0 0
      %3545 = vmatpush1.bf16.msra.mxu0 %v1213
      %3546 = vmatprep.subr.bf16.mxu0 0
      %3547 = vmatpush1.bf16.msra.mxu0 %v1214
      %3548 = vmatprep.mubr.bf16.mxu0 %v3371
      %3549 = vmatmul.mubr.bf16.gmra.mrb[0].mxu0 %v3370
      %v3550 = vpop.f32.mrb[0].mxu0
      %v3551 = vadd.f32 %v3511, %v3550
      %v3552 = vpop.f32.mrb[0].mxu0
      %v3553 = vpop.f32.mrb[0].mxu0
      %v3554 = vpop.f32.mrb[0].mxu0
      %3555 = vdwg.mxu0
      %3556 = vmatprep.subr.bf16.mxu0 0
      %3557 = vmatpush1.bf16.msra.mxu0 %v1215
      %3558 = vmatprep.subr.bf16.mxu0 0
      %3559 = vmatpush1.bf16.msra.mxu0 %v1216
      %3560 = vmatprep.subr.bf16.mxu0 0
      %3561 = vmatpush1.bf16.msra.mxu0 %v1217
      %3562 = vmatprep.subr.bf16.mxu0 0
      %3563 = vmatpush1.bf16.msra.mxu0 %v1218
      %3564 = vmatprep.subr.bf16.mxu0 0
      %3565 = vmatpush1.bf16.msra.mxu0 %v1219
      %3566 = vmatprep.subr.bf16.mxu0 0
      %3567 = vmatpush1.bf16.msra.mxu0 %v1220
      %3568 = vmatprep.subr.bf16.mxu0 0
      %3569 = vmatpush1.bf16.msra.mxu0 %v1221
      %3570 = vmatprep.subr.bf16.mxu0 0
      %3571 = vmatpush1.bf16.msra.mxu0 %v1222
      %3572 = vmatprep.subr.bf16.mxu0 0
      %3573 = vmatpush1.bf16.msra.mxu0 %v1223
      %3574 = vmatprep.subr.bf16.mxu0 0
      %3575 = vmatpush1.bf16.msra.mxu0 %v1224
      %3576 = vmatprep.subr.bf16.mxu0 0
      %3577 = vmatpush1.bf16.msra.mxu0 %v1225
      %3578 = vmatprep.subr.bf16.mxu0 0
      %3579 = vmatpush1.bf16.msra.mxu0 %v1226
      %3580 = vmatprep.subr.bf16.mxu0 0
      %3581 = vmatpush1.bf16.msra.mxu0 %v1227
      %3582 = vmatprep.subr.bf16.mxu0 0
      %3583 = vmatpush1.bf16.msra.mxu0 %v1228
      %3584 = vmatprep.subr.bf16.mxu0 0
      %3585 = vmatpush1.bf16.msra.mxu0 %v1229
      %3586 = vmatprep.subr.bf16.mxu0 0
      %3587 = vmatpush1.bf16.msra.mxu0 %v1230
      %3588 = vmatprep.mubr.bf16.mxu0 %v3373
      %3589 = vmatmul.mubr.bf16.gmra.mrb[0].mxu0 %v3372
      %v3590 = vpop.f32.mrb[0].mxu0
      %v3591 = vadd.f32 %v3551, %v3590
      %v3592 = vpop.f32.mrb[0].mxu0
      %v3593 = vpop.f32.mrb[0].mxu0
      %v3594 = vpop.f32.mrb[0].mxu0
      %3595 = vdwg.mxu0
      %3596 = vmatprep.subr.bf16.mxu0 0
      %3597 = vmatpush1.bf16.msra.mxu0 %v1231
      %3598 = vmatprep.subr.bf16.mxu0 0
      %3599 = vmatpush1.bf16.msra.mxu0 %v1232
      %3600 = vmatprep.subr.bf16.mxu0 0
      %3601 = vmatpush1.bf16.msra.mxu0 %v1233
      %3602 = vmatprep.subr.bf16.mxu0 0
      %3603 = vmatpush1.bf16.msra.mxu0 %v1234
      %3604 = vmatprep.subr.bf16.mxu0 0
      %3605 = vmatpush1.bf16.msra.mxu0 %v1235
      %3606 = vmatprep.subr.bf16.mxu0 0
      %3607 = vmatpush1.bf16.msra.mxu0 %v1236
      %3608 = vmatprep.subr.bf16.mxu0 0
      %3609 = vmatpush1.bf16.msra.mxu0 %v1237
      %3610 = vmatprep.subr.bf16.mxu0 0
      %3611 = vmatpush1.bf16.msra.mxu0 %v1238
      %3612 = vmatprep.subr.bf16.mxu0 0
      %3613 = vmatpush1.bf16.msra.mxu0 %v1239
      %3614 = vmatprep.subr.bf16.mxu0 0
      %3615 = vmatpush1.bf16.msra.mxu0 %v1240
      %3616 = vmatprep.subr.bf16.mxu0 0
      %3617 = vmatpush1.bf16.msra.mxu0 %v1241
      %3618 = vmatprep.subr.bf16.mxu0 0
      %3619 = vmatpush1.bf16.msra.mxu0 %v1242
      %3620 = vmatprep.subr.bf16.mxu0 0
      %3621 = vmatpush1.bf16.msra.mxu0 %v1243
      %3622 = vmatprep.subr.bf16.mxu0 0
      %3623 = vmatpush1.bf16.msra.mxu0 %v1244
      %3624 = vmatprep.subr.bf16.mxu0 0
      %3625 = vmatpush1.bf16.msra.mxu0 %v1245
      %3626 = vmatprep.subr.bf16.mxu0 0
      %3627 = vmatpush1.bf16.msra.mxu0 %v1246
      %3628 = vmatprep.mubr.bf16.mxu0 %v3375
      %3629 = vmatmul.mubr.bf16.gmra.mrb[0].mxu0 %v3374
      %v3630 = vpop.f32.mrb[0].mxu0
      %v3631 = vadd.f32 %v3591, %v3630
      %v3632 = vpop.f32.mrb[0].mxu0
      %v3633 = vpop.f32.mrb[0].mxu0
      %v3634 = vpop.f32.mrb[0].mxu0
      %3635 = vdwg.mxu0
      %3636 = vmatprep.subr.bf16.mxu0 0
      %3637 = vmatpush1.bf16.msra.mxu0 %v1247
      %3638 = vmatprep.subr.bf16.mxu0 0
      %3639 = vmatpush1.bf16.msra.mxu0 %v1248
      %3640 = vmatprep.subr.bf16.mxu0 0
      %3641 = vmatpush1.bf16.msra.mxu0 %v1249
      %3642 = vmatprep.subr.bf16.mxu0 0
      %3643 = vmatpush1.bf16.msra.mxu0 %v1250
      %3644 = vmatprep.subr.bf16.mxu0 0
      %3645 = vmatpush1.bf16.msra.mxu0 %v1251
      %3646 = vmatprep.subr.bf16.mxu0 0
      %3647 = vmatpush1.bf16.msra.mxu0 %v1252
      %3648 = vmatprep.subr.bf16.mxu0 0
      %3649 = vmatpush1.bf16.msra.mxu0 %v1253
      %3650 = vmatprep.subr.bf16.mxu0 0
      %3651 = vmatpush1.bf16.msra.mxu0 %v1254
      %3652 = vmatprep.subr.bf16.mxu0 0
      %3653 = vmatpush1.bf16.msra.mxu0 %v1255
      %3654 = vmatprep.subr.bf16.mxu0 0
      %3655 = vmatpush1.bf16.msra.mxu0 %v1256
      %3656 = vmatprep.subr.bf16.mxu0 0
      %3657 = vmatpush1.bf16.msra.mxu0 %v1257
      %3658 = vmatprep.subr.bf16.mxu0 0
      %3659 = vmatpush1.bf16.msra.mxu0 %v1258
      %3660 = vmatprep.subr.bf16.mxu0 0
      %3661 = vmatpush1.bf16.msra.mxu0 %v1259
      %3662 = vmatprep.subr.bf16.mxu0 0
      %3663 = vmatpush1.bf16.msra.mxu0 %v1260
      %3664 = vmatprep.subr.bf16.mxu0 0
      %3665 = vmatpush1.bf16.msra.mxu0 %v1261
      %3666 = vmatprep.subr.bf16.mxu0 0
      %3667 = vmatpush1.bf16.msra.mxu0 %v1262
      %3668 = vmatprep.mubr.bf16.mxu0 %v3377
      %3669 = vmatmul.mubr.bf16.gmra.mrb[0].mxu0 %v3376
      %v3670 = vpop.f32.mrb[0].mxu0
      %v3671 = vadd.f32 %v3631, %v3670
      %v3672 = vpop.f32.mrb[0].mxu0
      %v3673 = vpop.f32.mrb[0].mxu0
      %v3674 = vpop.f32.mrb[0].mxu0
      %3675 = vdwg.mxu0
      %3676 = vmatprep.subr.bf16.mxu0 0
      %3677 = vmatpush1.bf16.msra.mxu0 %v1263
      %3678 = vmatprep.subr.bf16.mxu0 0
      %3679 = vmatpush1.bf16.msra.mxu0 %v1264
      %3680 = vmatprep.subr.bf16.mxu0 0
      %3681 = vmatpush1.bf16.msra.mxu0 %v1265
      %3682 = vmatprep.subr.bf16.mxu0 0
      %3683 = vmatpush1.bf16.msra.mxu0 %v1266
      %3684 = vmatprep.subr.bf16.mxu0 0
      %3685 = vmatpush1.bf16.msra.mxu0 %v1267
      %3686 = vmatprep.subr.bf16.mxu0 0
      %3687 = vmatpush1.bf16.msra.mxu0 %v1268
      %3688 = vmatprep.subr.bf16.mxu0 0
      %3689 = vmatpush1.bf16.msra.mxu0 %v1269
      %3690 = vmatprep.subr.bf16.mxu0 0
      %3691 = vmatpush1.bf16.msra.mxu0 %v1270
      %3692 = vmatprep.subr.bf16.mxu0 0
      %3693 = vmatpush1.bf16.msra.mxu0 %v1271
      %3694 = vmatprep.subr.bf16.mxu0 0
      %3695 = vmatpush1.bf16.msra.mxu0 %v1272
      %3696 = vmatprep.subr.bf16.mxu0 0
      %3697 = vmatpush1.bf16.msra.mxu0 %v1273
      %3698 = vmatprep.subr.bf16.mxu0 0
      %3699 = vmatpush1.bf16.msra.mxu0 %v1274
      %3700 = vmatprep.subr.bf16.mxu0 0
      %3701 = vmatpush1.bf16.msra.mxu0 %v1275
      %3702 = vmatprep.subr.bf16.mxu0 0
      %3703 = vmatpush1.bf16.msra.mxu0 %v1276
      %3704 = vmatprep.subr.bf16.mxu0 0
      %3705 = vmatpush1.bf16.msra.mxu0 %v1277
      %3706 = vmatprep.subr.bf16.mxu0 0
      %3707 = vmatpush1.bf16.msra.mxu0 %v1278
      %3708 = vmatprep.mubr.bf16.mxu0 %v3379
      %3709 = vmatmul.mubr.bf16.gmra.mrb[0].mxu0 %v3378
      %v3710 = vpop.f32.mrb[0].mxu0
      %v3711 = vadd.f32 %v3671, %v3710
      %v3712 = vpop.f32.mrb[0].mxu0
      %v3713 = vpop.f32.mrb[0].mxu0
      %v3714 = vpop.f32.mrb[0].mxu0
      %3715 = vdwg.mxu0
      %v3716 = vmax.f32 %v3711, 0.0
      %v3717 = vpack.c.bf16 %v3716, %v3716
      %s3718 = scalar_lea.vmem %s274, 768
      %v3719 = vld [vmem:[%s3718] sm:$0xff]
      %v3720 = vld [vmem:[%s3718 + $0x8] sm:$0xff]
      %v3721 = vld [vmem:[%s3718 + $0x10] sm:$0xff]
      %v3722 = vld [vmem:[%s3718 + $0x18] sm:$0xff]
      %v3723 = vld [vmem:[%s3718 + $0x20] sm:$0xff]
      %v3724 = vld [vmem:[%s3718 + $0x28] sm:$0xff]
      %v3725 = vld [vmem:[%s3718 + $0x30] sm:$0xff]
      %v3726 = vld [vmem:[%s3718 + $0x38] sm:$0xff]
      %v3727 = vld [vmem:[%s3718 + $0x40] sm:$0xff]
      %v3728 = vld [vmem:[%s3718 + $0x48] sm:$0xff]
      %v3729 = vld [vmem:[%s3718 + $0x50] sm:$0xff]
      %v3730 = vld [vmem:[%s3718 + $0x58] sm:$0xff]
      %v3731 = vld [vmem:[%s3718 + $0x60] sm:$0xff]
      %v3732 = vld [vmem:[%s3718 + $0x68] sm:$0xff]
      %v3733 = vld [vmem:[%s3718 + $0x70] sm:$0xff]
      %v3734 = vld [vmem:[%s3718 + $0x78] sm:$0xff]
      %v3735 = vld [vmem:[%s3718 + $0x80] sm:$0xff]
      %v3736 = vld [vmem:[%s3718 + $0x88] sm:$0xff]
      %v3737 = vld [vmem:[%s3718 + $0x90] sm:$0xff]
      %v3738 = vld [vmem:[%s3718 + $0x98] sm:$0xff]
      %v3739 = vld [vmem:[%s3718 + $0xa0] sm:$0xff]
      %v3740 = vld [vmem:[%s3718 + $0xa8] sm:$0xff]
      %v3741 = vld [vmem:[%s3718 + $0xb0] sm:$0xff]
      %v3742 = vld [vmem:[%s3718 + $0xb8] sm:$0xff]
      %v3743 = vld [vmem:[%s3718 + $0xc0] sm:$0xff]
      %v3744 = vld [vmem:[%s3718 + $0xc8] sm:$0xff]
      %v3745 = vld [vmem:[%s3718 + $0xd0] sm:$0xff]
      %v3746 = vld [vmem:[%s3718 + $0xd8] sm:$0xff]
      %v3747 = vld [vmem:[%s3718 + $0xe0] sm:$0xff]
      %v3748 = vld [vmem:[%s3718 + $0xe8] sm:$0xff]
      %v3749 = vld [vmem:[%s3718 + $0xf0] sm:$0xff]
      %v3750 = vld [vmem:[%s3718 + $0xf8] sm:$0xff]
      %v3783 = vunpack.c.l.b16 %v3719
      %v3784 = vunpack.c.h.b16 %v3719
      %v3785 = vunpack.c.l.b16 %v3720
      %v3786 = vunpack.c.h.b16 %v3720
      %v3787 = vunpack.c.l.b16 %v3721
      %v3788 = vunpack.c.h.b16 %v3721
      %v3789 = vunpack.c.l.b16 %v3722
      %v3790 = vunpack.c.h.b16 %v3722
      %v3791 = vunpack.c.l.b16 %v3723
      %v3792 = vunpack.c.h.b16 %v3723
      %v3793 = vunpack.c.l.b16 %v3724
      %v3794 = vunpack.c.h.b16 %v3724
      %v3795 = vunpack.c.l.b16 %v3725
      %v3796 = vunpack.c.h.b16 %v3725
      %v3797 = vunpack.c.l.b16 %v3726
      %v3798 = vunpack.c.h.b16 %v3726
      %v3799 = vunpack.c.l.b16 %v3727
      %v3800 = vunpack.c.h.b16 %v3727
      %v3801 = vunpack.c.l.b16 %v3728
      %v3802 = vunpack.c.h.b16 %v3728
      %v3803 = vunpack.c.l.b16 %v3729
      %v3804 = vunpack.c.h.b16 %v3729
      %v3805 = vunpack.c.l.b16 %v3730
      %v3806 = vunpack.c.h.b16 %v3730
      %v3807 = vunpack.c.l.b16 %v3731
      %v3808 = vunpack.c.h.b16 %v3731
      %v3809 = vunpack.c.l.b16 %v3732
      %v3810 = vunpack.c.h.b16 %v3732
      %v3811 = vunpack.c.l.b16 %v3733
      %v3812 = vunpack.c.h.b16 %v3733
      %v3813 = vunpack.c.l.b16 %v3734
      %v3814 = vunpack.c.h.b16 %v3734
      %v3815 = vunpack.c.l.b16 %v3735
      %v3816 = vunpack.c.h.b16 %v3735
      %v3817 = vunpack.c.l.b16 %v3736
      %v3818 = vunpack.c.h.b16 %v3736
      %v3819 = vunpack.c.l.b16 %v3737
      %v3820 = vunpack.c.h.b16 %v3737
      %v3821 = vunpack.c.l.b16 %v3738
      %v3822 = vunpack.c.h.b16 %v3738
      %v3823 = vunpack.c.l.b16 %v3739
      %v3824 = vunpack.c.h.b16 %v3739
      %v3825 = vunpack.c.l.b16 %v3740
      %v3826 = vunpack.c.h.b16 %v3740
      %v3827 = vunpack.c.l.b16 %v3741
      %v3828 = vunpack.c.h.b16 %v3741
      %v3829 = vunpack.c.l.b16 %v3742
      %v3830 = vunpack.c.h.b16 %v3742
      %v3831 = vunpack.c.l.b16 %v3743
      %v3832 = vunpack.c.h.b16 %v3743
      %v3833 = vunpack.c.l.b16 %v3744
      %v3834 = vunpack.c.h.b16 %v3744
      %v3835 = vunpack.c.l.b16 %v3745
      %v3836 = vunpack.c.h.b16 %v3745
      %v3837 = vunpack.c.l.b16 %v3746
      %v3838 = vunpack.c.h.b16 %v3746
      %v3839 = vunpack.c.l.b16 %v3747
      %v3840 = vunpack.c.h.b16 %v3747
      %v3841 = vunpack.c.l.b16 %v3748
      %v3842 = vunpack.c.h.b16 %v3748
      %v3843 = vunpack.c.l.b16 %v3749
      %v3844 = vunpack.c.h.b16 %v3749
      %v3845 = vunpack.c.l.b16 %v3750
      %v3846 = vunpack.c.h.b16 %v3750
      %v3847 = vpack.c.b16 %v3787, %v3783
      %v3848 = vpack.c.b16 %v3788, %v3784
      %v3849 = vpack.c.b16 %v3789, %v3785
      %v3850 = vpack.c.b16 %v3790, %v3786
      %v3851 = vpack.c.b16 %v3795, %v3791
      %v3852 = vpack.c.b16 %v3796, %v3792
      %v3853 = vpack.c.b16 %v3797, %v3793
      %v3854 = vpack.c.b16 %v3798, %v3794
      %v3855 = vpack.c.b16 %v3803, %v3799
      %v3856 = vpack.c.b16 %v3804, %v3800
      %v3857 = vpack.c.b16 %v3805, %v3801
      %v3858 = vpack.c.b16 %v3806, %v3802
      %v3859 = vpack.c.b16 %v3811, %v3807
      %v3860 = vpack.c.b16 %v3812, %v3808
      %v3861 = vpack.c.b16 %v3813, %v3809
      %v3862 = vpack.c.b16 %v3814, %v3810
      %v3863 = vpack.c.b16 %v3819, %v3815
      %v3864 = vpack.c.b16 %v3820, %v3816
      %v3865 = vpack.c.b16 %v3821, %v3817
      %v3866 = vpack.c.b16 %v3822, %v3818
      %v3867 = vpack.c.b16 %v3827, %v3823
      %v3868 = vpack.c.b16 %v3828, %v3824
      %v3869 = vpack.c.b16 %v3829, %v3825
      %v3870 = vpack.c.b16 %v3830, %v3826
      %v3871 = vpack.c.b16 %v3835, %v3831
      %v3872 = vpack.c.b16 %v3836, %v3832
      %v3873 = vpack.c.b16 %v3837, %v3833
      %v3874 = vpack.c.b16 %v3838, %v3834
      %v3875 = vpack.c.b16 %v3843, %v3839
      %v3876 = vpack.c.b16 %v3844, %v3840
      %v3877 = vpack.c.b16 %v3845, %v3841
      %v3878 = vpack.c.b16 %v3846, %v3842
      %3911 = vmatprep.subr.bf16.mxu0 %v3848
      %3912 = vmatpush1.bf16.msra.mxu0 %v3847
      %3913 = vmatprep.subr.bf16.mxu0 %v3852
      %3914 = vmatpush1.bf16.msra.mxu0 %v3851
      %3915 = vmatprep.subr.bf16.mxu0 %v3856
      %3916 = vmatpush1.bf16.msra.mxu0 %v3855
      %3917 = vmatprep.subr.bf16.mxu0 %v3860
      %3918 = vmatpush1.bf16.msra.mxu0 %v3859
      %3919 = vmatprep.subr.bf16.mxu0 %v3864
      %3920 = vmatpush1.bf16.msra.mxu0 %v3863
      %3921 = vmatprep.subr.bf16.mxu0 %v3868
      %3922 = vmatpush1.bf16.msra.mxu0 %v3867
      %3923 = vmatprep.subr.bf16.mxu0 %v3872
      %3924 = vmatpush1.bf16.msra.mxu0 %v3871
      %3925 = vmatprep.subr.bf16.mxu0 %v3876
      %3926 = vmatpush1.bf16.msra.mxu0 %v3875
      %3927 = vmatprep.subr.bf16.mxu0 0
      %3928 = vmatpush1.bf16.msra.mxu0 0
      %3929 = vmatprep.subr.bf16.mxu0 0
      %3930 = vmatpush1.bf16.msra.mxu0 0
      %3931 = vmatprep.subr.bf16.mxu0 0
      %3932 = vmatpush1.bf16.msra.mxu0 0
      %3933 = vmatprep.subr.bf16.mxu0 0
      %3934 = vmatpush1.bf16.msra.mxu0 0
      %3935 = vmatprep.subr.bf16.mxu0 0
      %3936 = vmatpush1.bf16.msra.mxu0 0
      %3937 = vmatprep.subr.bf16.mxu0 0
      %3938 = vmatpush1.bf16.msra.mxu0 0
      %3939 = vmatprep.subr.bf16.mxu0 0
      %3940 = vmatpush1.bf16.msra.mxu0 0
      %3941 = vmatprep.subr.bf16.mxu0 0
      %3942 = vmatpush1.bf16.msra.mxu0 0
      %3943 = vmatprep.mubr.bf16.mxu0 0
      %3944 = vmatmul.mubr.bf16.gmra.mrb[0].mxu0 %v3717
      %v3945 = vpop.f32.mrb[0].mxu0
      %v3946 = vadd.f32 0.0, %v3945
      %v3947 = vpop.f32.mrb[0].mxu0
      %v3948 = vadd.f32 0.0, %v3947
      %v3949 = vpop.f32.mrb[0].mxu0
      %v3950 = vpop.f32.mrb[0].mxu0
      %3951 = vdwg.mxu0
      %3952 = vmatprep.subr.bf16.mxu0 %v3850
      %3953 = vmatpush1.bf16.msra.mxu0 %v3849
      %3954 = vmatprep.subr.bf16.mxu0 %v3854
      %3955 = vmatpush1.bf16.msra.mxu0 %v3853
      %3956 = vmatprep.subr.bf16.mxu0 %v3858
      %3957 = vmatpush1.bf16.msra.mxu0 %v3857
      %3958 = vmatprep.subr.bf16.mxu0 %v3862
      %3959 = vmatpush1.bf16.msra.mxu0 %v3861
      %3960 = vmatprep.subr.bf16.mxu0 %v3866
      %3961 = vmatpush1.bf16.msra.mxu0 %v3865
      %3962 = vmatprep.subr.bf16.mxu0 %v3870
      %3963 = vmatpush1.bf16.msra.mxu0 %v3869
      %3964 = vmatprep.subr.bf16.mxu0 %v3874
      %3965 = vmatpush1.bf16.msra.mxu0 %v3873
      %3966 = vmatprep.subr.bf16.mxu0 %v3878
      %3967 = vmatpush1.bf16.msra.mxu0 %v3877
      %3968 = vmatprep.subr.bf16.mxu0 0
      %3969 = vmatpush1.bf16.msra.mxu0 0
      %3970 = vmatprep.subr.bf16.mxu0 0
      %3971 = vmatpush1.bf16.msra.mxu0 0
      %3972 = vmatprep.subr.bf16.mxu0 0
      %3973 = vmatpush1.bf16.msra.mxu0 0
      %3974 = vmatprep.subr.bf16.mxu0 0
      %3975 = vmatpush1.bf16.msra.mxu0 0
      %3976 = vmatprep.subr.bf16.mxu0 0
      %3977 = vmatpush1.bf16.msra.mxu0 0
      %3978 = vmatprep.subr.bf16.mxu0 0
      %3979 = vmatpush1.bf16.msra.mxu0 0
      %3980 = vmatprep.subr.bf16.mxu0 0
      %3981 = vmatpush1.bf16.msra.mxu0 0
      %3982 = vmatprep.subr.bf16.mxu0 0
      %3983 = vmatpush1.bf16.msra.mxu0 0
      %3984 = vmatprep.mubr.bf16.mxu0 0
      %3985 = vmatmul.mubr.bf16.gmra.mrb[0].mxu0 %v3717
      %v3986 = vpop.f32.mrb[0].mxu0
      %v3987 = vadd.f32 0.0, %v3986
      %v3988 = vpop.f32.mrb[0].mxu0
      %v3989 = vadd.f32 0.0, %v3988
      %v3990 = vpop.f32.mrb[0].mxu0
      %v3991 = vpop.f32.mrb[0].mxu0
      %3992 = vdwg.mxu0
      %v3993 = vadd.f32 %v3327, %v3946
      %v3994 = vadd.f32 %v3328, %v3948
      %v3995 = vadd.f32 %v3329, %v3987
      %v3996 = vadd.f32 %v3330, %v3989
      %s3997 = scalar_lea.vmem %s267, 256
      %v3998 = vld [vmem:[%s3997] sm:$0xff]
      %v3999 = vld [vmem:[%s3997 + $0x8] sm:$0xff]
      %v4000 = vld [vmem:[%s3997 + $0x10] sm:$0xff]
      %v4001 = vld [vmem:[%s3997 + $0x18] sm:$0xff]
      %v4002 = vld [vmem:[%s3997 + $0x20] sm:$0xff]
      %v4003 = vld [vmem:[%s3997 + $0x28] sm:$0xff]
      %v4004 = vld [vmem:[%s3997 + $0x30] sm:$0xff]
      %v4005 = vld [vmem:[%s3997 + $0x38] sm:$0xff]
      %v4014 = vunpack.c.l.b16 %v3998
      %v4015 = vunpack.c.h.b16 %v3998
      %v4016 = vunpack.c.l.b16 %v3999
      %v4017 = vunpack.c.h.b16 %v3999
      %v4018 = vunpack.c.l.b16 %v4000
      %v4019 = vunpack.c.h.b16 %v4000
      %v4020 = vunpack.c.l.b16 %v4001
      %v4021 = vunpack.c.h.b16 %v4001
      %v4022 = vunpack.c.l.b16 %v4002
      %v4023 = vunpack.c.h.b16 %v4002
      %v4024 = vunpack.c.l.b16 %v4003
      %v4025 = vunpack.c.h.b16 %v4003
      %v4026 = vunpack.c.l.b16 %v4004
      %v4027 = vunpack.c.h.b16 %v4004
      %v4028 = vunpack.c.l.b16 %v4005
      %v4029 = vunpack.c.h.b16 %v4005
      %v4030 = vpack.c.b16 %v4014, %v4014
      %v4031 = vpack.c.b16 %v4015, %v4015
      %v4032 = vpack.c.b16 %v4016, %v4016
      %v4033 = vpack.c.b16 %v4017, %v4017
      %v4034 = vpack.c.b16 %v4018, %v4018
      %v4035 = vpack.c.b16 %v4019, %v4019
      %v4036 = vpack.c.b16 %v4020, %v4020
      %v4037 = vpack.c.b16 %v4021, %v4021
      %v4038 = vpack.c.b16 %v4022, %v4022
      %v4039 = vpack.c.b16 %v4023, %v4023
      %v4040 = vpack.c.b16 %v4024, %v4024
      %v4041 = vpack.c.b16 %v4025, %v4025
      %v4042 = vpack.c.b16 %v4026, %v4026
      %v4043 = vpack.c.b16 %v4027, %v4027
      %v4044 = vpack.c.b16 %v4028, %v4028
      %v4045 = vpack.c.b16 %v4029, %v4029
      %4062 = vmatprep.subr.bf16.mxu0 0
      %4063 = vmatpush1.bf16.msra.mxu0 %v1151
      %4064 = vmatprep.subr.bf16.mxu0 0
      %4065 = vmatpush1.bf16.msra.mxu0 %v1152
      %4066 = vmatprep.subr.bf16.mxu0 0
      %4067 = vmatpush1.bf16.msra.mxu0 %v1153
      %4068 = vmatprep.subr.bf16.mxu0 0
      %4069 = vmatpush1.bf16.msra.mxu0 %v1154
      %4070 = vmatprep.subr.bf16.mxu0 0
      %4071 = vmatpush1.bf16.msra.mxu0 %v1155
      %4072 = vmatprep.subr.bf16.mxu0 0
      %4073 = vmatpush1.bf16.msra.mxu0 %v1156
      %4074 = vmatprep.subr.bf16.mxu0 0
      %4075 = vmatpush1.bf16.msra.mxu0 %v1157
      %4076 = vmatprep.subr.bf16.mxu0 0
      %4077 = vmatpush1.bf16.msra.mxu0 %v1158
      %4078 = vmatprep.subr.bf16.mxu0 0
      %4079 = vmatpush1.bf16.msra.mxu0 %v1159
      %4080 = vmatprep.subr.bf16.mxu0 0
      %4081 = vmatpush1.bf16.msra.mxu0 %v1160
      %4082 = vmatprep.subr.bf16.mxu0 0
      %4083 = vmatpush1.bf16.msra.mxu0 %v1161
      %4084 = vmatprep.subr.bf16.mxu0 0
      %4085 = vmatpush1.bf16.msra.mxu0 %v1162
      %4086 = vmatprep.subr.bf16.mxu0 0
      %4087 = vmatpush1.bf16.msra.mxu0 %v1163
      %4088 = vmatprep.subr.bf16.mxu0 0
      %4089 = vmatpush1.bf16.msra.mxu0 %v1164
      %4090 = vmatprep.subr.bf16.mxu0 0
      %4091 = vmatpush1.bf16.msra.mxu0 %v1165
      %4092 = vmatprep.subr.bf16.mxu0 0
      %4093 = vmatpush1.bf16.msra.mxu0 %v1166
      %4094 = vmatprep.mubr.bf16.mxu0 %v4031
      %4095 = vmatmul.mubr.bf16.gmra.mrb[0].mxu0 %v4030
      %v4096 = vpop.f32.mrb[0].mxu0
      %v4097 = vadd.f32 %v581, %v4096
      %v4098 = vpop.f32.mrb[0].mxu0
      %v4099 = vpop.f32.mrb[0].mxu0
      %v4100 = vpop.f32.mrb[0].mxu0
      %4101 = vdwg.mxu0
      %4102 = vmatprep.subr.bf16.mxu0 0
      %4103 = vmatpush1.bf16.msra.mxu0 %v1167
      %4104 = vmatprep.subr.bf16.mxu0 0
      %4105 = vmatpush1.bf16.msra.mxu0 %v1168
      %4106 = vmatprep.subr.bf16.mxu0 0
      %4107 = vmatpush1.bf16.msra.mxu0 %v1169
      %4108 = vmatprep.subr.bf16.mxu0 0
      %4109 = vmatpush1.bf16.msra.mxu0 %v1170
      %4110 = vmatprep.subr.bf16.mxu0 0
      %4111 = vmatpush1.bf16.msra.mxu0 %v1171
      %4112 = vmatprep.subr.bf16.mxu0 0
      %4113 = vmatpush1.bf16.msra.mxu0 %v1172
      %4114 = vmatprep.subr.bf16.mxu0 0
      %4115 = vmatpush1.bf16.msra.mxu0 %v1173
      %4116 = vmatprep.subr.bf16.mxu0 0
      %4117 = vmatpush1.bf16.msra.mxu0 %v1174
      %4118 = vmatprep.subr.bf16.mxu0 0
      %4119 = vmatpush1.bf16.msra.mxu0 %v1175
      %4120 = vmatprep.subr.bf16.mxu0 0
      %4121 = vmatpush1.bf16.msra.mxu0 %v1176
      %4122 = vmatprep.subr.bf16.mxu0 0
      %4123 = vmatpush1.bf16.msra.mxu0 %v1177
      %4124 = vmatprep.subr.bf16.mxu0 0
      %4125 = vmatpush1.bf16.msra.mxu0 %v1178
      %4126 = vmatprep.subr.bf16.mxu0 0
      %4127 = vmatpush1.bf16.msra.mxu0 %v1179
      %4128 = vmatprep.subr.bf16.mxu0 0
      %4129 = vmatpush1.bf16.msra.mxu0 %v1180
      %4130 = vmatprep.subr.bf16.mxu0 0
      %4131 = vmatpush1.bf16.msra.mxu0 %v1181
      %4132 = vmatprep.subr.bf16.mxu0 0
      %4133 = vmatpush1.bf16.msra.mxu0 %v1182
      %4134 = vmatprep.mubr.bf16.mxu0 %v4033
      %4135 = vmatmul.mubr.bf16.gmra.mrb[0].mxu0 %v4032
      %v4136 = vpop.f32.mrb[0].mxu0
      %v4137 = vadd.f32 %v4097, %v4136
      %v4138 = vpop.f32.mrb[0].mxu0
      %v4139 = vpop.f32.mrb[0].mxu0
      %v4140 = vpop.f32.mrb[0].mxu0
      %4141 = vdwg.mxu0
      %4142 = vmatprep.subr.bf16.mxu0 0
      %4143 = vmatpush1.bf16.msra.mxu0 %v1183
      %4144 = vmatprep.subr.bf16.mxu0 0
      %4145 = vmatpush1.bf16.msra.mxu0 %v1184
      %4146 = vmatprep.subr.bf16.mxu0 0
      %4147 = vmatpush1.bf16.msra.mxu0 %v1185
      %4148 = vmatprep.subr.bf16.mxu0 0
      %4149 = vmatpush1.bf16.msra.mxu0 %v1186
      %4150 = vmatprep.subr.bf16.mxu0 0
      %4151 = vmatpush1.bf16.msra.mxu0 %v1187
      %4152 = vmatprep.subr.bf16.mxu0 0
      %4153 = vmatpush1.bf16.msra.mxu0 %v1188
      %4154 = vmatprep.subr.bf16.mxu0 0
      %4155 = vmatpush1.bf16.msra.mxu0 %v1189
      %4156 = vmatprep.subr.bf16.mxu0 0
      %4157 = vmatpush1.bf16.msra.mxu0 %v1190
      %4158 = vmatprep.subr.bf16.mxu0 0
      %4159 = vmatpush1.bf16.msra.mxu0 %v1191
      %4160 = vmatprep.subr.bf16.mxu0 0
      %4161 = vmatpush1.bf16.msra.mxu0 %v1192
      %4162 = vmatprep.subr.bf16.mxu0 0
      %4163 = vmatpush1.bf16.msra.mxu0 %v1193
      %4164 = vmatprep.subr.bf16.mxu0 0
      %4165 = vmatpush1.bf16.msra.mxu0 %v1194
      %4166 = vmatprep.subr.bf16.mxu0 0
      %4167 = vmatpush1.bf16.msra.mxu0 %v1195
      %4168 = vmatprep.subr.bf16.mxu0 0
      %4169 = vmatpush1.bf16.msra.mxu0 %v1196
      %4170 = vmatprep.subr.bf16.mxu0 0
      %4171 = vmatpush1.bf16.msra.mxu0 %v1197
      %4172 = vmatprep.subr.bf16.mxu0 0
      %4173 = vmatpush1.bf16.msra.mxu0 %v1198
      %4174 = vmatprep.mubr.bf16.mxu0 %v4035
      %4175 = vmatmul.mubr.bf16.gmra.mrb[0].mxu0 %v4034
      %v4176 = vpop.f32.mrb[0].mxu0
      %v4177 = vadd.f32 %v4137, %v4176
      %v4178 = vpop.f32.mrb[0].mxu0
      %v4179 = vpop.f32.mrb[0].mxu0
      %v4180 = vpop.f32.mrb[0].mxu0
      %4181 = vdwg.mxu0
      %4182 = vmatprep.subr.bf16.mxu0 0
      %4183 = vmatpush1.bf16.msra.mxu0 %v1199
      %4184 = vmatprep.subr.bf16.mxu0 0
      %4185 = vmatpush1.bf16.msra.mxu0 %v1200
      %4186 = vmatprep.subr.bf16.mxu0 0
      %4187 = vmatpush1.bf16.msra.mxu0 %v1201
      %4188 = vmatprep.subr.bf16.mxu0 0
      %4189 = vmatpush1.bf16.msra.mxu0 %v1202
      %4190 = vmatprep.subr.bf16.mxu0 0
      %4191 = vmatpush1.bf16.msra.mxu0 %v1203
      %4192 = vmatprep.subr.bf16.mxu0 0
      %4193 = vmatpush1.bf16.msra.mxu0 %v1204
      %4194 = vmatprep.subr.bf16.mxu0 0
      %4195 = vmatpush1.bf16.msra.mxu0 %v1205
      %4196 = vmatprep.subr.bf16.mxu0 0
      %4197 = vmatpush1.bf16.msra.mxu0 %v1206
      %4198 = vmatprep.subr.bf16.mxu0 0
      %4199 = vmatpush1.bf16.msra.mxu0 %v1207
      %4200 = vmatprep.subr.bf16.mxu0 0
      %4201 = vmatpush1.bf16.msra.mxu0 %v1208
      %4202 = vmatprep.subr.bf16.mxu0 0
      %4203 = vmatpush1.bf16.msra.mxu0 %v1209
      %4204 = vmatprep.subr.bf16.mxu0 0
      %4205 = vmatpush1.bf16.msra.mxu0 %v1210
      %4206 = vmatprep.subr.bf16.mxu0 0
      %4207 = vmatpush1.bf16.msra.mxu0 %v1211
      %4208 = vmatprep.subr.bf16.mxu0 0
      %4209 = vmatpush1.bf16.msra.mxu0 %v1212
      %4210 = vmatprep.subr.bf16.mxu0 0
      %4211 = vmatpush1.bf16.msra.mxu0 %v1213
      %4212 = vmatprep.subr.bf16.mxu0 0
      %4213 = vmatpush1.bf16.msra.mxu0 %v1214
      %4214 = vmatprep.mubr.bf16.mxu0 %v4037
      %4215 = vmatmul.mubr.bf16.gmra.mrb[0].mxu0 %v4036
      %v4216 = vpop.f32.mrb[0].mxu0
      %v4217 = vadd.f32 %v4177, %v4216
      %v4218 = vpop.f32.mrb[0].mxu0
      %v4219 = vpop.f32.mrb[0].mxu0
      %v4220 = vpop.f32.mrb[0].mxu0
      %4221 = vdwg.mxu0
      %4222 = vmatprep.subr.bf16.mxu0 0
      %4223 = vmatpush1.bf16.msra.mxu0 %v1215
      %4224 = vmatprep.subr.bf16.mxu0 0
      %4225 = vmatpush1.bf16.msra.mxu0 %v1216
      %4226 = vmatprep.subr.bf16.mxu0 0
      %4227 = vmatpush1.bf16.msra.mxu0 %v1217
      %4228 = vmatprep.subr.bf16.mxu0 0
      %4229 = vmatpush1.bf16.msra.mxu0 %v1218
      %4230 = vmatprep.subr.bf16.mxu0 0
      %4231 = vmatpush1.bf16.msra.mxu0 %v1219
      %4232 = vmatprep.subr.bf16.mxu0 0
      %4233 = vmatpush1.bf16.msra.mxu0 %v1220
      %4234 = vmatprep.subr.bf16.mxu0 0
      %4235 = vmatpush1.bf16.msra.mxu0 %v1221
      %4236 = vmatprep.subr.bf16.mxu0 0
      %4237 = vmatpush1.bf16.msra.mxu0 %v1222
      %4238 = vmatprep.subr.bf16.mxu0 0
      %4239 = vmatpush1.bf16.msra.mxu0 %v1223
      %4240 = vmatprep.subr.bf16.mxu0 0
      %4241 = vmatpush1.bf16.msra.mxu0 %v1224
      %4242 = vmatprep.subr.bf16.mxu0 0
      %4243 = vmatpush1.bf16.msra.mxu0 %v1225
      %4244 = vmatprep.subr.bf16.mxu0 0
      %4245 = vmatpush1.bf16.msra.mxu0 %v1226
      %4246 = vmatprep.subr.bf16.mxu0 0
      %4247 = vmatpush1.bf16.msra.mxu0 %v1227
      %4248 = vmatprep.subr.bf16.mxu0 0
      %4249 = vmatpush1.bf16.msra.mxu0 %v1228
      %4250 = vmatprep.subr.bf16.mxu0 0
      %4251 = vmatpush1.bf16.msra.mxu0 %v1229
      %4252 = vmatprep.subr.bf16.mxu0 0
      %4253 = vmatpush1.bf16.msra.mxu0 %v1230
      %4254 = vmatprep.mubr.bf16.mxu0 %v4039
      %4255 = vmatmul.mubr.bf16.gmra.mrb[0].mxu0 %v4038
      %v4256 = vpop.f32.mrb[0].mxu0
      %v4257 = vadd.f32 %v4217, %v4256
      %v4258 = vpop.f32.mrb[0].mxu0
      %v4259 = vpop.f32.mrb[0].mxu0
      %v4260 = vpop.f32.mrb[0].mxu0
      %4261 = vdwg.mxu0
      %4262 = vmatprep.subr.bf16.mxu0 0
      %4263 = vmatpush1.bf16.msra.mxu0 %v1231
      %4264 = vmatprep.subr.bf16.mxu0 0
      %4265 = vmatpush1.bf16.msra.mxu0 %v1232
      %4266 = vmatprep.subr.bf16.mxu0 0
      %4267 = vmatpush1.bf16.msra.mxu0 %v1233
      %4268 = vmatprep.subr.bf16.mxu0 0
      %4269 = vmatpush1.bf16.msra.mxu0 %v1234
      %4270 = vmatprep.subr.bf16.mxu0 0
      %4271 = vmatpush1.bf16.msra.mxu0 %v1235
      %4272 = vmatprep.subr.bf16.mxu0 0
      %4273 = vmatpush1.bf16.msra.mxu0 %v1236
      %4274 = vmatprep.subr.bf16.mxu0 0
      %4275 = vmatpush1.bf16.msra.mxu0 %v1237
      %4276 = vmatprep.subr.bf16.mxu0 0
      %4277 = vmatpush1.bf16.msra.mxu0 %v1238
      %4278 = vmatprep.subr.bf16.mxu0 0
      %4279 = vmatpush1.bf16.msra.mxu0 %v1239
      %4280 = vmatprep.subr.bf16.mxu0 0
      %4281 = vmatpush1.bf16.msra.mxu0 %v1240
      %4282 = vmatprep.subr.bf16.mxu0 0
      %4283 = vmatpush1.bf16.msra.mxu0 %v1241
      %4284 = vmatprep.subr.bf16.mxu0 0
      %4285 = vmatpush1.bf16.msra.mxu0 %v1242
      %4286 = vmatprep.subr.bf16.mxu0 0
      %4287 = vmatpush1.bf16.msra.mxu0 %v1243
      %4288 = vmatprep.subr.bf16.mxu0 0
      %4289 = vmatpush1.bf16.msra.mxu0 %v1244
      %4290 = vmatprep.subr.bf16.mxu0 0
      %4291 = vmatpush1.bf16.msra.mxu0 %v1245
      %4292 = vmatprep.subr.bf16.mxu0 0
      %4293 = vmatpush1.bf16.msra.mxu0 %v1246
      %4294 = vmatprep.mubr.bf16.mxu0 %v4041
      %4295 = vmatmul.mubr.bf16.gmra.mrb[0].mxu0 %v4040
      %v4296 = vpop.f32.mrb[0].mxu0
      %v4297 = vadd.f32 %v4257, %v4296
      %v4298 = vpop.f32.mrb[0].mxu0
      %v4299 = vpop.f32.mrb[0].mxu0
      %v4300 = vpop.f32.mrb[0].mxu0
      %4301 = vdwg.mxu0
      %4302 = vmatprep.subr.bf16.mxu0 0
      %4303 = vmatpush1.bf16.msra.mxu0 %v1247
      %4304 = vmatprep.subr.bf16.mxu0 0
      %4305 = vmatpush1.bf16.msra.mxu0 %v1248
      %4306 = vmatprep.subr.bf16.mxu0 0
      %4307 = vmatpush1.bf16.msra.mxu0 %v1249
      %4308 = vmatprep.subr.bf16.mxu0 0
      %4309 = vmatpush1.bf16.msra.mxu0 %v1250
      %4310 = vmatprep.subr.bf16.mxu0 0
      %4311 = vmatpush1.bf16.msra.mxu0 %v1251
      %4312 = vmatprep.subr.bf16.mxu0 0
      %4313 = vmatpush1.bf16.msra.mxu0 %v1252
      %4314 = vmatprep.subr.bf16.mxu0 0
      %4315 = vmatpush1.bf16.msra.mxu0 %v1253
      %4316 = vmatprep.subr.bf16.mxu0 0
      %4317 = vmatpush1.bf16.msra.mxu0 %v1254
      %4318 = vmatprep.subr.bf16.mxu0 0
      %4319 = vmatpush1.bf16.msra.mxu0 %v1255
      %4320 = vmatprep.subr.bf16.mxu0 0
      %4321 = vmatpush1.bf16.msra.mxu0 %v1256
      %4322 = vmatprep.subr.bf16.mxu0 0
      %4323 = vmatpush1.bf16.msra.mxu0 %v1257
      %4324 = vmatprep.subr.bf16.mxu0 0
      %4325 = vmatpush1.bf16.msra.mxu0 %v1258
      %4326 = vmatprep.subr.bf16.mxu0 0
      %4327 = vmatpush1.bf16.msra.mxu0 %v1259
      %4328 = vmatprep.subr.bf16.mxu0 0
      %4329 = vmatpush1.bf16.msra.mxu0 %v1260
      %4330 = vmatprep.subr.bf16.mxu0 0
      %4331 = vmatpush1.bf16.msra.mxu0 %v1261
      %4332 = vmatprep.subr.bf16.mxu0 0
      %4333 = vmatpush1.bf16.msra.mxu0 %v1262
      %4334 = vmatprep.mubr.bf16.mxu0 %v4043
      %4335 = vmatmul.mubr.bf16.gmra.mrb[0].mxu0 %v4042
      %v4336 = vpop.f32.mrb[0].mxu0
      %v4337 = vadd.f32 %v4297, %v4336
      %v4338 = vpop.f32.mrb[0].mxu0
      %v4339 = vpop.f32.mrb[0].mxu0
      %v4340 = vpop.f32.mrb[0].mxu0
      %4341 = vdwg.mxu0
      %4342 = vmatprep.subr.bf16.mxu0 0
      %4343 = vmatpush1.bf16.msra.mxu0 %v1263
      %4344 = vmatprep.subr.bf16.mxu0 0
      %4345 = vmatpush1.bf16.msra.mxu0 %v1264
      %4346 = vmatprep.subr.bf16.mxu0 0
      %4347 = vmatpush1.bf16.msra.mxu0 %v1265
      %4348 = vmatprep.subr.bf16.mxu0 0
      %4349 = vmatpush1.bf16.msra.mxu0 %v1266
      %4350 = vmatprep.subr.bf16.mxu0 0
      %4351 = vmatpush1.bf16.msra.mxu0 %v1267
      %4352 = vmatprep.subr.bf16.mxu0 0
      %4353 = vmatpush1.bf16.msra.mxu0 %v1268
      %4354 = vmatprep.subr.bf16.mxu0 0
      %4355 = vmatpush1.bf16.msra.mxu0 %v1269
      %4356 = vmatprep.subr.bf16.mxu0 0
      %4357 = vmatpush1.bf16.msra.mxu0 %v1270
      %4358 = vmatprep.subr.bf16.mxu0 0
      %4359 = vmatpush1.bf16.msra.mxu0 %v1271
      %4360 = vmatprep.subr.bf16.mxu0 0
      %4361 = vmatpush1.bf16.msra.mxu0 %v1272
      %4362 = vmatprep.subr.bf16.mxu0 0
      %4363 = vmatpush1.bf16.msra.mxu0 %v1273
      %4364 = vmatprep.subr.bf16.mxu0 0
      %4365 = vmatpush1.bf16.msra.mxu0 %v1274
      %4366 = vmatprep.subr.bf16.mxu0 0
      %4367 = vmatpush1.bf16.msra.mxu0 %v1275
      %4368 = vmatprep.subr.bf16.mxu0 0
      %4369 = vmatpush1.bf16.msra.mxu0 %v1276
      %4370 = vmatprep.subr.bf16.mxu0 0
      %4371 = vmatpush1.bf16.msra.mxu0 %v1277
      %4372 = vmatprep.subr.bf16.mxu0 0
      %4373 = vmatpush1.bf16.msra.mxu0 %v1278
      %4374 = vmatprep.mubr.bf16.mxu0 %v4045
      %4375 = vmatmul.mubr.bf16.gmra.mrb[0].mxu0 %v4044
      %v4376 = vpop.f32.mrb[0].mxu0
      %v4377 = vadd.f32 %v4337, %v4376
      %v4378 = vpop.f32.mrb[0].mxu0
      %v4379 = vpop.f32.mrb[0].mxu0
      %v4380 = vpop.f32.mrb[0].mxu0
      %4381 = vdwg.mxu0
      %v4382 = vmax.f32 %v4377, 0.0
      %v4383 = vpack.c.bf16 %v4382, %v4382
      %s4384 = scalar_lea.vmem %s274, 1024
      %v4385 = vld [vmem:[%s4384] sm:$0xff]
      %v4386 = vld [vmem:[%s4384 + $0x8] sm:$0xff]
      %v4387 = vld [vmem:[%s4384 + $0x10] sm:$0xff]
      %v4388 = vld [vmem:[%s4384 + $0x18] sm:$0xff]
      %v4389 = vld [vmem:[%s4384 + $0x20] sm:$0xff]
      %v4390 = vld [vmem:[%s4384 + $0x28] sm:$0xff]
      %v4391 = vld [vmem:[%s4384 + $0x30] sm:$0xff]
      %v4392 = vld [vmem:[%s4384 + $0x38] sm:$0xff]
      %v4393 = vld [vmem:[%s4384 + $0x40] sm:$0xff]
      %v4394 = vld [vmem:[%s4384 + $0x48] sm:$0xff]
      %v4395 = vld [vmem:[%s4384 + $0x50] sm:$0xff]
      %v4396 = vld [vmem:[%s4384 + $0x58] sm:$0xff]
      %v4397 = vld [vmem:[%s4384 + $0x60] sm:$0xff]
      %v4398 = vld [vmem:[%s4384 + $0x68] sm:$0xff]
      %v4399 = vld [vmem:[%s4384 + $0x70] sm:$0xff]
      %v4400 = vld [vmem:[%s4384 + $0x78] sm:$0xff]
      %v4401 = vld [vmem:[%s4384 + $0x80] sm:$0xff]
      %v4402 = vld [vmem:[%s4384 + $0x88] sm:$0xff]
      %v4403 = vld [vmem:[%s4384 + $0x90] sm:$0xff]
      %v4404 = vld [vmem:[%s4384 + $0x98] sm:$0xff]
      %v4405 = vld [vmem:[%s4384 + $0xa0] sm:$0xff]
      %v4406 = vld [vmem:[%s4384 + $0xa8] sm:$0xff]
      %v4407 = vld [vmem:[%s4384 + $0xb0] sm:$0xff]
      %v4408 = vld [vmem:[%s4384 + $0xb8] sm:$0xff]
      %v4409 = vld [vmem:[%s4384 + $0xc0] sm:$0xff]
      %v4410 = vld [vmem:[%s4384 + $0xc8] sm:$0xff]
      %v4411 = vld [vmem:[%s4384 + $0xd0] sm:$0xff]
      %v4412 = vld [vmem:[%s4384 + $0xd8] sm:$0xff]
      %v4413 = vld [vmem:[%s4384 + $0xe0] sm:$0xff]
      %v4414 = vld [vmem:[%s4384 + $0xe8] sm:$0xff]
      %v4415 = vld [vmem:[%s4384 + $0xf0] sm:$0xff]
      %v4416 = vld [vmem:[%s4384 + $0xf8] sm:$0xff]
      %v4449 = vunpack.c.l.b16 %v4385
      %v4450 = vunpack.c.h.b16 %v4385
      %v4451 = vunpack.c.l.b16 %v4386
      %v4452 = vunpack.c.h.b16 %v4386
      %v4453 = vunpack.c.l.b16 %v4387
      %v4454 = vunpack.c.h.b16 %v4387
      %v4455 = vunpack.c.l.b16 %v4388
      %v4456 = vunpack.c.h.b16 %v4388
      %v4457 = vunpack.c.l.b16 %v4389
      %v4458 = vunpack.c.h.b16 %v4389
      %v4459 = vunpack.c.l.b16 %v4390
      %v4460 = vunpack.c.h.b16 %v4390
      %v4461 = vunpack.c.l.b16 %v4391
      %v4462 = vunpack.c.h.b16 %v4391
      %v4463 = vunpack.c.l.b16 %v4392
      %v4464 = vunpack.c.h.b16 %v4392
      %v4465 = vunpack.c.l.b16 %v4393
      %v4466 = vunpack.c.h.b16 %v4393
      %v4467 = vunpack.c.l.b16 %v4394
      %v4468 = vunpack.c.h.b16 %v4394
      %v4469 = vunpack.c.l.b16 %v4395
      %v4470 = vunpack.c.h.b16 %v4395
      %v4471 = vunpack.c.l.b16 %v4396
      %v4472 = vunpack.c.h.b16 %v4396
      %v4473 = vunpack.c.l.b16 %v4397
      %v4474 = vunpack.c.h.b16 %v4397
      %v4475 = vunpack.c.l.b16 %v4398
      %v4476 = vunpack.c.h.b16 %v4398
      %v4477 = vunpack.c.l.b16 %v4399
      %v4478 = vunpack.c.h.b16 %v4399
      %v4479 = vunpack.c.l.b16 %v4400
      %v4480 = vunpack.c.h.b16 %v4400
      %v4481 = vunpack.c.l.b16 %v4401
      %v4482 = vunpack.c.h.b16 %v4401
      %v4483 = vunpack.c.l.b16 %v4402
      %v4484 = vunpack.c.h.b16 %v4402
      %v4485 = vunpack.c.l.b16 %v4403
      %v4486 = vunpack.c.h.b16 %v4403
      %v4487 = vunpack.c.l.b16 %v4404
      %v4488 = vunpack.c.h.b16 %v4404
      %v4489 = vunpack.c.l.b16 %v4405
      %v4490 = vunpack.c.h.b16 %v4405
      %v4491 = vunpack.c.l.b16 %v4406
      %v4492 = vunpack.c.h.b16 %v4406
      %v4493 = vunpack.c.l.b16 %v4407
      %v4494 = vunpack.c.h.b16 %v4407
      %v4495 = vunpack.c.l.b16 %v4408
      %v4496 = vunpack.c.h.b16 %v4408
      %v4497 = vunpack.c.l.b16 %v4409
      %v4498 = vunpack.c.h.b16 %v4409
      %v4499 = vunpack.c.l.b16 %v4410
      %v4500 = vunpack.c.h.b16 %v4410
      %v4501 = vunpack.c.l.b16 %v4411
      %v4502 = vunpack.c.h.b16 %v4411
      %v4503 = vunpack.c.l.b16 %v4412
      %v4504 = vunpack.c.h.b16 %v4412
      %v4505 = vunpack.c.l.b16 %v4413
      %v4506 = vunpack.c.h.b16 %v4413
      %v4507 = vunpack.c.l.b16 %v4414
      %v4508 = vunpack.c.h.b16 %v4414
      %v4509 = vunpack.c.l.b16 %v4415
      %v4510 = vunpack.c.h.b16 %v4415
      %v4511 = vunpack.c.l.b16 %v4416
      %v4512 = vunpack.c.h.b16 %v4416
      %v4513 = vpack.c.b16 %v4453, %v4449
      %v4514 = vpack.c.b16 %v4454, %v4450
      %v4515 = vpack.c.b16 %v4455, %v4451
      %v4516 = vpack.c.b16 %v4456, %v4452
      %v4517 = vpack.c.b16 %v4461, %v4457
      %v4518 = vpack.c.b16 %v4462, %v4458
      %v4519 = vpack.c.b16 %v4463, %v4459
      %v4520 = vpack.c.b16 %v4464, %v4460
      %v4521 = vpack.c.b16 %v4469, %v4465
      %v4522 = vpack.c.b16 %v4470, %v4466
      %v4523 = vpack.c.b16 %v4471, %v4467
      %v4524 = vpack.c.b16 %v4472, %v4468
      %v4525 = vpack.c.b16 %v4477, %v4473
      %v4526 = vpack.c.b16 %v4478, %v4474
      %v4527 = vpack.c.b16 %v4479, %v4475
      %v4528 = vpack.c.b16 %v4480, %v4476
      %v4529 = vpack.c.b16 %v4485, %v4481
      %v4530 = vpack.c.b16 %v4486, %v4482
      %v4531 = vpack.c.b16 %v4487, %v4483
      %v4532 = vpack.c.b16 %v4488, %v4484
      %v4533 = vpack.c.b16 %v4493, %v4489
      %v4534 = vpack.c.b16 %v4494, %v4490
      %v4535 = vpack.c.b16 %v4495, %v4491
      %v4536 = vpack.c.b16 %v4496, %v4492
      %v4537 = vpack.c.b16 %v4501, %v4497
      %v4538 = vpack.c.b16 %v4502, %v4498
      %v4539 = vpack.c.b16 %v4503, %v4499
      %v4540 = vpack.c.b16 %v4504, %v4500
      %v4541 = vpack.c.b16 %v4509, %v4505
      %v4542 = vpack.c.b16 %v4510, %v4506
      %v4543 = vpack.c.b16 %v4511, %v4507
      %v4544 = vpack.c.b16 %v4512, %v4508
      %4577 = vmatprep.subr.bf16.mxu0 %v4514
      %4578 = vmatpush1.bf16.msra.mxu0 %v4513
      %4579 = vmatprep.subr.bf16.mxu0 %v4518
      %4580 = vmatpush1.bf16.msra.mxu0 %v4517
      %4581 = vmatprep.subr.bf16.mxu0 %v4522
      %4582 = vmatpush1.bf16.msra.mxu0 %v4521
      %4583 = vmatprep.subr.bf16.mxu0 %v4526
      %4584 = vmatpush1.bf16.msra.mxu0 %v4525
      %4585 = vmatprep.subr.bf16.mxu0 %v4530
      %4586 = vmatpush1.bf16.msra.mxu0 %v4529
      %4587 = vmatprep.subr.bf16.mxu0 %v4534
      %4588 = vmatpush1.bf16.msra.mxu0 %v4533
      %4589 = vmatprep.subr.bf16.mxu0 %v4538
      %4590 = vmatpush1.bf16.msra.mxu0 %v4537
      %4591 = vmatprep.subr.bf16.mxu0 %v4542
      %4592 = vmatpush1.bf16.msra.mxu0 %v4541
      %4593 = vmatprep.subr.bf16.mxu0 0
      %4594 = vmatpush1.bf16.msra.mxu0 0
      %4595 = vmatprep.subr.bf16.mxu0 0
      %4596 = vmatpush1.bf16.msra.mxu0 0
      %4597 = vmatprep.subr.bf16.mxu0 0
      %4598 = vmatpush1.bf16.msra.mxu0 0
      %4599 = vmatprep.subr.bf16.mxu0 0
      %4600 = vmatpush1.bf16.msra.mxu0 0
      %4601 = vmatprep.subr.bf16.mxu0 0
      %4602 = vmatpush1.bf16.msra.mxu0 0
      %4603 = vmatprep.subr.bf16.mxu0 0
      %4604 = vmatpush1.bf16.msra.mxu0 0
      %4605 = vmatprep.subr.bf16.mxu0 0
      %4606 = vmatpush1.bf16.msra.mxu0 0
      %4607 = vmatprep.subr.bf16.mxu0 0
      %4608 = vmatpush1.bf16.msra.mxu0 0
      %4609 = vmatprep.mubr.bf16.mxu0 0
      %4610 = vmatmul.mubr.bf16.gmra.mrb[0].mxu0 %v4383
      %v4611 = vpop.f32.mrb[0].mxu0
      %v4612 = vadd.f32 0.0, %v4611
      %v4613 = vpop.f32.mrb[0].mxu0
      %v4614 = vadd.f32 0.0, %v4613
      %v4615 = vpop.f32.mrb[0].mxu0
      %v4616 = vpop.f32.mrb[0].mxu0
      %4617 = vdwg.mxu0
      %4618 = vmatprep.subr.bf16.mxu0 %v4516
      %4619 = vmatpush1.bf16.msra.mxu0 %v4515
      %4620 = vmatprep.subr.bf16.mxu0 %v4520
      %4621 = vmatpush1.bf16.msra.mxu0 %v4519
      %4622 = vmatprep.subr.bf16.mxu0 %v4524
      %4623 = vmatpush1.bf16.msra.mxu0 %v4523
      %4624 = vmatprep.subr.bf16.mxu0 %v4528
      %4625 = vmatpush1.bf16.msra.mxu0 %v4527
      %4626 = vmatprep.subr.bf16.mxu0 %v4532
      %4627 = vmatpush1.bf16.msra.mxu0 %v4531
      %4628 = vmatprep.subr.bf16.mxu0 %v4536
      %4629 = vmatpush1.bf16.msra.mxu0 %v4535
      %4630 = vmatprep.subr.bf16.mxu0 %v4540
      %4631 = vmatpush1.bf16.msra.mxu0 %v4539
      %4632 = vmatprep.subr.bf16.mxu0 %v4544
      %4633 = vmatpush1.bf16.msra.mxu0 %v4543
      %4634 = vmatprep.subr.bf16.mxu0 0
      %4635 = vmatpush1.bf16.msra.mxu0 0
      %4636 = vmatprep.subr.bf16.mxu0 0
      %4637 = vmatpush1.bf16.msra.mxu0 0
      %4638 = vmatprep.subr.bf16.mxu0 0
      %4639 = vmatpush1.bf16.msra.mxu0 0
      %4640 = vmatprep.subr.bf16.mxu0 0
      %4641 = vmatpush1.bf16.msra.mxu0 0
      %4642 = vmatprep.subr.bf16.mxu0 0
      %4643 = vmatpush1.bf16.msra.mxu0 0
      %4644 = vmatprep.subr.bf16.mxu0 0
      %4645 = vmatpush1.bf16.msra.mxu0 0
      %4646 = vmatprep.subr.bf16.mxu0 0
      %4647 = vmatpush1.bf16.msra.mxu0 0
      %4648 = vmatprep.subr.bf16.mxu0 0
      %4649 = vmatpush1.bf16.msra.mxu0 0
      %4650 = vmatprep.mubr.bf16.mxu0 0
      %4651 = vmatmul.mubr.bf16.gmra.mrb[0].mxu0 %v4383
      %v4652 = vpop.f32.mrb[0].mxu0
      %v4653 = vadd.f32 0.0, %v4652
      %v4654 = vpop.f32.mrb[0].mxu0
      %v4655 = vadd.f32 0.0, %v4654
      %v4656 = vpop.f32.mrb[0].mxu0
      %v4657 = vpop.f32.mrb[0].mxu0
      %4658 = vdwg.mxu0
      %v4659 = vadd.f32 %v3993, %v4612
      %v4660 = vadd.f32 %v3994, %v4614
      %v4661 = vadd.f32 %v3995, %v4653
      %v4662 = vadd.f32 %v3996, %v4655
      %v4663 = vld [vmem:[%s280] sm:$0xff]
      %v4664 = vld [vmem:[%s280 + $0x8] sm:$0xff]
      %v4665 = vld [vmem:[%s280 + $0x10] sm:$0xff]
      %v4666 = vld [vmem:[%s280 + $0x18] sm:$0xff]
      %v4667 = vadd.f32 %v4663, %v4659
      %v4668 = vadd.f32 %v4664, %v4660
      %v4669 = vadd.f32 %v4665, %v4661
      %v4670 = vadd.f32 %v4666, %v4662
      %4671 = vst [vmem:[%s280] sm:$0xff] %v4667
      %4672 = vst [vmem:[%s280 + $0x8] sm:$0xff] %v4668
      %4673 = vst [vmem:[%s280 + $0x10] sm:$0xff] %v4669
      %4674 = vst [vmem:[%s280 + $0x18] sm:$0xff] %v4670
      %p4675 = scmp.lt.s32.totalorder %s20, 0
      %s4676 = scalar_select %p4675, %s20, 0
      %s4677 = smul.addr %s4676, 4
      %s4678 = smul.addr %s4677, 8
      %s4679 = scalar_lea.vmem %s5, %s4678
      // Predicated region
      $region45: #{map_encoder_forward.3} parent=39 // pred_check
        %p4680 = pneg %p163
      $region46: #{map_encoder_forward.3} parent=39 // pred_check_branch
        %4682 = sbr.rel (%p4680) target = $region48
      $region47: #{map_encoder_forward.3} parent=39 // pred_region
        _
      $region48: #{map_encoder_forward.3} parent=39 // pred_fallthru
        _
      // Predicated region
      $region49: #{map_encoder_forward.3} parent=39 // pred_check
        %p4683 = pneg %p163
      $region50: #{map_encoder_forward.3} parent=39 // pred_check_branch
        %4685 = sbr.rel (%p4683) target = $region52
      $region51: #{map_encoder_forward.3} parent=39 // pred_region
        %p4686 = scmp.lt.s32.totalorder %s20, 0
        %s4687 = scalar_select %p4686, %s20, 0
        %s4688 = smul.addr %s4687, 4
        %s4689 = smul.addr %s4688, 8
        %s4690 = scalar_lea.vmem %s5, %s4689
      $region52: #{map_encoder_forward.3} parent=39 // pred_fallthru
        _
    $region40: #{map_encoder_forward.3} parent=5 // pred_fallthru
      _
    %p4691 = scmp.le.s32.totalorder 2, %s11
    // Predicated region
    $region53: #{map_encoder_forward.3} parent=5 // pred_check
      %p4692 = pneg %p4691
    $region54: #{map_encoder_forward.3} parent=5 // pred_check_branch
      %4694 = sbr.rel (%p4692) target = $region56
    $region55: #{map_encoder_forward.3} parent=5 // pred_region
      %s4695 = ssub.s32 %s11, 2
    $region56: #{map_encoder_forward.3} parent=5 // pred_fallthru
      _
  $region6: #{map_encoder_forward.3} parent=0 // loop_footer
    %s15 = sadd.s32 1, %s11
  $region7: #{map_encoder_forward.3} parent=0 // loop_footer_branch
    %10 = sbr.rel target = $region3
  $region8: #{map_encoder_forward.3} parent=0 // loop_exit
    _

</llo_original>
